<compile_context>
chip_gen: v5e
topology: v5e:2x2
jax: 0.10.0
libtpu: 0.0.40
codegen_flags: <defaults>
</compile_context>

<pallas_src>
import functools

import jax
import jax.numpy as jnp
from jax.experimental import pallas as pl
from jax.experimental.pallas import tpu as pltpu

BN_EPS = 1e-5
LANE = 128


def _round_up(x, m):
    return (x + m - 1) // m * m


def _cdiv(a, b):
    return (a + b - 1) // b


def _vmem_limit_bytes():
    """Generation-aware scoped-VMEM limit: ~3/4 of physical, capped."""
    cap = None
    try:
        cap = getattr(pltpu.get_tpu_info(), "vmem_capacity_bytes", None)
    except Exception:
        cap = None
    if not cap:
        return 64 * 1024 * 1024
    return max(32 * 1024 * 1024, min(100 * 1024 * 1024, (int(cap) * 3) // 4))


VMEM_LIMIT = _vmem_limit_bytes()


# ----------------------------------------------------------------------------
# Kernel 1: tiled  relu?((X @ W) + bias)  with f32 VMEM accumulator (P1 + P3)
# ----------------------------------------------------------------------------
def _matmul_bias_act_kernel(x_ref, w_ref, b_ref, o_ref, acc_ref, *, relu):
    k = pl.program_id(2)

    @pl.when(k == 0)
    def _():
        acc_ref[...] = jnp.zeros_like(acc_ref)

    acc_ref[...] += jnp.dot(x_ref[...], w_ref[...],
                            preferred_element_type=jnp.float32)

    @pl.when(k == pl.num_programs(2) - 1)
    def _():
        out = acc_ref[...] + b_ref[...]
        if relu:
            out = jnp.maximum(out, 0.0)
        o_ref[...] = out.astype(o_ref.dtype)


def matmul_bias_act(x, w, b, *, relu, out_dtype):
    """relu?((x @ w) + b).  x:(M,K) bf16, w:(K,N) bf16, b:(1,N) f32.

    K and N must be multiples of 128 (lane-dense).  M is zero-padded up to the
    row-tile size and the padding is sliced off afterwards."""
    M, K = x.shape
    Kw, N = w.shape
    assert K == Kw and K % LANE == 0 and N % LANE == 0

    tn = 256 if N % 256 == 0 else 128        # full 256-wide MXU on v6e/v7x
    tk = next(t for t in (512, 384, 256, 128) if K % t == 0)
    tm = min(512, _round_up(M, 8))           # big row tiles (mem-bound 1x1s)
    # v7x megacore: keep at least 2 parallel grid cells when the problem allows.
    if (N // tn) * _cdiv(M, tm) < 2 and M >= 16:
        tm = _round_up(_cdiv(M, 2), 8)
    Mp = _round_up(M, tm)
    if Mp != M:
        x = jnp.pad(x, ((0, Mp - M), (0, 0)))

    out = pl.pallas_call(
        functools.partial(_matmul_bias_act_kernel, relu=relu),
        out_shape=jax.ShapeDtypeStruct((Mp, N), out_dtype),
        grid=(Mp // tm, N // tn, K // tk),
        in_specs=[
            pl.BlockSpec((tm, tk), lambda i, j, k: (i, k)),
            pl.BlockSpec((tk, tn), lambda i, j, k: (k, j)),
            pl.BlockSpec((1, tn), lambda i, j, k: (0, j)),
        ],
        out_specs=pl.BlockSpec((tm, tn), lambda i, j, k: (i, j)),
        scratch_shapes=[pltpu.VMEM((tm, tn), jnp.float32)],
        compiler_params=pltpu.CompilerParams(
            dimension_semantics=("parallel", "parallel", "arbitrary"),
            vmem_limit_bytes=VMEM_LIMIT),
    )(x, w, b)
    return out[:M] if Mp != M else out


# ----------------------------------------------------------------------------
# Kernel 2: 3x3 conv (stride 1, pad 1) + bias + relu.
#   - halo/padding built in VMEM scratch (no HBM jnp.pad round-trip)
#   - full-width, contiguous row contractions per dh; dw shift folded into the
#     final accumulate (3 small full-width f32 accumulators, 2 shifted slices)
# ----------------------------------------------------------------------------
def _conv3x3_kernel(h1_ref, w_ref, b_ref, o_ref, xs_ref, *, th, H, W, Wp8, cp):
    h0 = pl.program_id(2) * th                  # first output row of this tile
    tn = o_ref.shape[-1]
    wo = o_ref.shape[2]

    # Build the (th+2, Wp8, cp) spatially padded halo slab in VMEM scratch:
    # borders stay zero, valid rows are contiguous full-width copies.
    xs_ref[...] = jnp.zeros_like(xs_ref)
    for r in range(th + 2):
        src = h0 + (r - 1)                      # real image row for slab row r

        @pl.when(jnp.logical_and(src >= 0, src < H))
        def _(r=r, src=src):
            xs_ref[r, pl.ds(1, W), :] = h1_ref[0, src, :, :]

    R = th * Wp8
    acc0 = jnp.zeros((R, tn), jnp.float32)
    acc1 = jnp.zeros((R, tn), jnp.float32)
    acc2 = jnp.zeros((R, tn), jnp.float32)
    for dh in range(3):
        # Contiguous flatten: Wp8 % 8 == 0 and cp % 128 == 0, so no retiling.
        x_flat = xs_ref[pl.ds(dh, th), :, :].reshape(R, cp)
        acc0 += jnp.dot(x_flat, w_ref[(dh * 3 + 0) * cp:(dh * 3 + 1) * cp, :],
                        preferred_element_type=jnp.float32)
        acc1 += jnp.dot(x_flat, w_ref[(dh * 3 + 1) * cp:(dh * 3 + 2) * cp, :],
                        preferred_element_type=jnp.float32)
        acc2 += jnp.dot(x_flat, w_ref[(dh * 3 + 2) * cp:(dh * 3 + 3) * cp, :],
                        preferred_element_type=jnp.float32)

    a0 = acc0.reshape(th, Wp8, tn)
    a1 = acc1.reshape(th, Wp8, tn)
    a2 = acc2.reshape(th, Wp8, tn)
    out = a0[:, 0:wo, :] + a1[:, 1:wo + 1, :] + a2[:, 2:wo + 2, :]
    out = jnp.maximum(out + b_ref[...], 0.0)
    o_ref[0] = out.astype(o_ref.dtype)


def conv3x3_bias_relu(h1_nhwc, w2, b2):
    """h1_nhwc: (N, H, W, cp) bf16 (unpadded), w2: (9*cp, coutp) bf16,
    b2: (1, coutp) f32.  Returns (N, H, W, coutp) bf16 (stride 1, pad 1)."""
    nb, H, W, cp = h1_nhwc.shape
    coutp = w2.shape[1]
    ho, wo = H, W
    Wp8 = _round_up(W + 2, 8)
    tn = 128

    # Small row tiles: 3 accumulators of (th*Wp8, tn) f32 must stay modest.
    th = 1
    for d in range(ho, 0, -1):
        if ho % d == 0 and d * wo <= 128:
            th = d
            break
    # v7x megacore: keep the parallel grid splittable across 2 TCs if possible.
    if nb * (ho // th) * (coutp // tn) < 2:
        for d in range(th - 1, 0, -1):
            if ho % d == 0:
                th = d
                break

    return pl.pallas_call(
        functools.partial(_conv3x3_kernel, th=th, H=H, W=W, Wp8=Wp8, cp=cp),
        out_shape=jax.ShapeDtypeStruct((nb, ho, wo, coutp), jnp.bfloat16),
        grid=(nb, coutp // tn, ho // th),       # h innermost: weights stay put
        in_specs=[
            pl.BlockSpec((1, H, W, cp), lambda n, j, h: (n, 0, 0, 0)),
            pl.BlockSpec((9 * cp, tn), lambda n, j, h: (0, j)),
            pl.BlockSpec((1, tn), lambda n, j, h: (0, j)),
        ],
        out_specs=pl.BlockSpec((1, th, wo, tn), lambda n, j, h: (n, h, 0, j)),
        scratch_shapes=[pltpu.VMEM((th + 2, Wp8, cp), jnp.bfloat16)],
        compiler_params=pltpu.CompilerParams(
            dimension_semantics=("parallel", "parallel", "parallel"),
            vmem_limit_bytes=VMEM_LIMIT),
    )(h1_nhwc, w2, b2)


# ----------------------------------------------------------------------------
# Kernel 3: fused  conv3(1x1) + bn3 + shortcut + residual add + relu
# ----------------------------------------------------------------------------
def _conv3_proj_kernel(h_ref, w3_ref, xs_ref, ws_ref, b_ref, o_ref):
    acc = jnp.dot(h_ref[...], w3_ref[...], preferred_element_type=jnp.float32)
    acc += jnp.dot(xs_ref[...], ws_ref[...], preferred_element_type=jnp.float32)
    acc += b_ref[...]
    o_ref[...] = jnp.maximum(acc, 0.0).astype(o_ref.dtype)


def _conv3_identity_kernel(h_ref, w3_ref, r_ref, b_ref, o_ref):
    acc = jnp.dot(h_ref[...], w3_ref[...], preferred_element_type=jnp.float32)
    acc += r_ref[...].astype(jnp.float32) + b_ref[...]        # f32 residual
    o_ref[...] = jnp.maximum(acc, 0.0).astype(o_ref.dtype)


def conv3_shortcut_fused(h, w3, shortcut_x, ws, bias, *, out_dtype):
    """relu(h @ w3 + shortcut + bias).  If ws is not None the shortcut is the
    projection shortcut_x @ ws computed in the same kernel; otherwise
    shortcut_x is the identity residual (kept in f32)."""
    M, K1 = h.shape
    N = w3.shape[1]
    tn = 256 if N % 256 == 0 else 128
    tm = min(512, _round_up(M, 8))
    if (N // tn) * _cdiv(M, tm) < 2 and M >= 16:
        tm = _round_up(_cdiv(M, 2), 8)
    Mp = _round_up(M, tm)
    if Mp != M:
        h = jnp.pad(h, ((0, Mp - M), (0, 0)))
        shortcut_x = jnp.pad(shortcut_x, ((0, Mp - M), (0, 0)))
    K2 = shortcut_x.shape[1]

    if ws is not None:
        kernel = _conv3_proj_kernel
        args = (h, w3, shortcut_x, ws, bias)
        in_specs = [
            pl.BlockSpec((tm, K1), lambda i, j: (i, 0)),
            pl.BlockSpec((K1, tn), lambda i, j: (0, j)),
            pl.BlockSpec((tm, K2), lambda i, j: (i, 0)),
            pl.BlockSpec((K2, tn), lambda i, j: (0, j)),
            pl.BlockSpec((1, tn), lambda i, j: (0, j)),
        ]
    else:
        kernel = _conv3_identity_kernel
        args = (h, w3, shortcut_x, bias)
        in_specs = [
            pl.BlockSpec((tm, K1), lambda i, j: (i, 0)),
            pl.BlockSpec((K1, tn), lambda i, j: (0, j)),
            pl.BlockSpec((tm, tn), lambda i, j: (i, j)),
            pl.BlockSpec((1, tn), lambda i, j: (0, j)),
        ]

    out = pl.pallas_call(
        kernel,
        out_shape=jax.ShapeDtypeStruct((Mp, N), out_dtype),
        grid=(Mp // tm, N // tn),
        in_specs=in_specs,
        out_specs=pl.BlockSpec((tm, tn), lambda i, j: (i, j)),
        compiler_params=pltpu.CompilerParams(
            dimension_semantics=("parallel", "parallel"),
            vmem_limit_bytes=VMEM_LIMIT),
    )(*args)
    return out[:M] if Mp != M else out


# ----------------------------------------------------------------------------
# Glue: BN folding, weight reshape/padding, im2col fallback (strided conv2)
# ----------------------------------------------------------------------------
def _fold_bn(gamma, beta, mean, var):
    scale = gamma / jnp.sqrt(var + BN_EPS)
    bias = beta - mean * scale
    return scale, bias


def _fold_pad_1x1(w_oihw, gamma, beta, mean, var, kin_p, kout_p):
    cout, cin = w_oihw.shape[:2]
    scale, bias = _fold_bn(gamma, beta, mean, var)
    wmat = jnp.transpose(w_oihw[:, :, 0, 0], (1, 0)) * scale[None, :]
    wpad = jnp.zeros((kin_p, kout_p), jnp.float32).at[:cin, :cout].set(wmat)
    bpad = jnp.zeros((1, kout_p), jnp.float32).at[0, :cout].set(bias)
    return wpad.astype(jnp.bfloat16), bpad


def _fold_pad_3x3(w_oihw, gamma, beta, mean, var, kin_p, kout_p):
    # rows ordered tap-major: row = (dh*3 + dw)*kin_p + cin
    cout, cin = w_oihw.shape[:2]
    scale, bias = _fold_bn(gamma, beta, mean, var)
    w = jnp.transpose(w_oihw, (2, 3, 1, 0)) * scale[None, None, None, :]
    wpad = jnp.zeros((3, 3, kin_p, kout_p), jnp.float32)
    wpad = wpad.at[:, :, :cin, :cout].set(w)
    bpad = jnp.zeros((1, kout_p), jnp.float32).at[0, :cout].set(bias)
    return wpad.reshape(9 * kin_p, kout_p).astype(jnp.bfloat16), bpad


def _im2col_3x3(x_nhwc, stride):
    """Fallback patch extraction (pad=1) -> (N*Ho*Wo, 9*C), used for stride>1."""
    n, h, w, c = x_nhwc.shape
    xp = jnp.pad(x_nhwc, ((0, 0), (1, 1), (1, 1), (0, 0)))
    ho = (h - 1) // stride + 1
    wo = (w - 1) // stride + 1
    cols = []
    for dh in range(3):
        for dw in range(3):
            cols.append(xp[:, dh:dh + stride * (ho - 1) + 1:stride,
                           dw:dw + stride * (wo - 1) + 1:stride, :])
    patches = jnp.concatenate(cols, axis=-1)
    return patches.reshape(n * ho * wo, 9 * c), (ho, wo)


# ----------------------------------------------------------------------------
# Bottleneck forward
# ----------------------------------------------------------------------------
def bottleneck_forward(x_nchw, params, stride=1):
    expansion = 4
    planes = params["conv1_w"].shape[0]
    n, cin, h, w = x_nchw.shape
    cout = expansion * planes
    ho = (h - 1) // stride + 1
    wo = (w - 1) // stride + 1

    cin_p = _round_up(cin, LANE)
    mid_p = _round_up(planes, LANE)
    cout_p = _round_up(cout, LANE)

    # NCHW -> lane-dense NHWC (channel-padded with zeros).
    x_f32 = jnp.transpose(x_nchw, (0, 2, 3, 1)).astype(jnp.float32)
    x_f32 = jnp.pad(x_f32, ((0, 0), (0, 0), (0, 0), (0, cin_p - cin)))
    x_bf16 = x_f32.astype(jnp.bfloat16)
    x2d = x_bf16.reshape(n * h * w, cin_p)

    # BN running stats folded into weights / bias (wrapper side, free).
    w1, b1 = _fold_pad_1x1(params["conv1_w"], params["bn1_g"], params["bn1_b"],
                           params["bn1_m"], params["bn1_v"], cin_p, mid_p)
    w2, b2 = _fold_pad_3x3(params["conv2_w"], params["bn2_g"], params["bn2_b"],
                           params["bn2_m"], params["bn2_v"], mid_p, mid_p)
    w3, b3 = _fold_pad_1x1(params["conv3_w"], params["bn3_g"], params["bn3_b"],
                           params["bn3_m"], params["bn3_v"], mid_p, cout_p)

    # conv1 (1x1) + bn1 + relu : tiled matmul kernel.
    # TODO(synk): conv1 could be fused into the conv2 kernel to avoid the
    # h1 HBM round-trip entirely (recomputes halo rows); not done here.
    h1 = matmul_bias_act(x2d, w1, b1, relu=True, out_dtype=jnp.bfloat16)
    h1_nhwc = h1.reshape(n, h, w, mid_p)

    # conv2 (3x3, pad=1) + bn2 + relu.
    if stride == 1:
        # In-kernel halo + full-width taps: no HBM pad, no per-tap retiling.
        h2 = conv3x3_bias_relu(h1_nhwc, w2, b2)
        h2 = h2.reshape(n * ho * wo, mid_p)
    else:
        # TODO(synk): strided 3x3 still uses wrapper im2col; a strided in-kernel
        # gather would avoid the 9x HBM blowup.
        cols, (ho, wo) = _im2col_3x3(h1_nhwc, stride)
        h2 = matmul_bias_act(cols, w2, b2, relu=True, out_dtype=jnp.bfloat16)

    # conv3 (1x1) + bn3 + shortcut + residual add + relu : one fused kernel.
    if stride != 1 or cin != cout:
        wsc, bsc = _fold_pad_1x1(params["convs_w"], params["bns_g"],
                                 params["bns_b"], params["bns_m"],
                                 params["bns_v"], cin_p, cout_p)
        # TODO(synk): the stride-s subsampling of x is a wrapper slice; it could
        # be folded into the fused kernel's index_map instead.
        xs = x_bf16[:, ::stride, ::stride, :].reshape(n * ho * wo, cin_p)
        out = conv3_shortcut_fused(h2, w3, xs, wsc, b3 + bsc,
                                   out_dtype=jnp.float32)
    else:
        res = x_f32.reshape(n * h * w, cin_p)          # identity residual, f32
        out = conv3_shortcut_fused(h2, w3, res, None, b3,
                                   out_dtype=jnp.float32)

    out = out.reshape(n, ho, wo, cout_p)[:, :, :, :cout]
    return jnp.transpose(out, (0, 3, 1, 2))            # back to NCHW


# ----------------------------------------------------------------------------
# Pure-JAX reference (NCHW, lax.conv) for correctness checking
# ----------------------------------------------------------------------------
def reference_forward(x, p, stride=1):
    def conv(x, w, s=1, pad=0):
        return jax.lax.conv_general_dilated(
            x, w, (s, s), [(pad, pad), (pad, pad)],
            dimension_numbers=("NCHW", "OIHW", "NCHW"))

    def bn(x, g, b, m, v):
        return ((x - m[None, :, None, None]) /
                jnp.sqrt(v[None, :, None, None] + BN_EPS) *
                g[None, :, None, None] + b[None, :, None, None])

    out = jax.nn.relu(bn(conv(x, p["conv1_w"]), p["bn1_g"], p["bn1_b"],
                         p["bn1_m"], p["bn1_v"]))
    out = jax.nn.relu(bn(conv(out, p["conv2_w"], s=stride, pad=1),
                         p["bn2_g"], p["bn2_b"], p["bn2_m"], p["bn2_v"]))
    out = bn(conv(out, p["conv3_w"]), p["bn3_g"], p["bn3_b"],
             p["bn3_m"], p["bn3_v"])
    expansion, planes = 4, p["conv1_w"].shape[0]
    if stride != 1 or x.shape[1] != expansion * planes:
        sc = bn(conv(x, p["convs_w"], s=stride), p["bns_g"], p["bns_b"],
                p["bns_m"], p["bns_v"])
    else:
        sc = x
    return jax.nn.relu(out + sc)


# ----------------------------------------------------------------------------
# Deterministic parameter construction
# ----------------------------------------------------------------------------
def init_params(key, in_planes, planes, stride=1):
    expansion = 4
    ks = jax.random.split(key, 8)
    p = {}
    p["conv1_w"] = 0.1 * jax.random.normal(ks[0], (planes, in_planes, 1, 1),
                                           jnp.float32)
    p["conv2_w"] = 0.1 * jax.random.normal(ks[1], (planes, planes, 3, 3),
                                           jnp.float32)
    p["conv3_w"] = 0.1 * jax.random.normal(
        ks[2], (expansion * planes, planes, 1, 1), jnp.float32)

    def bn_params(k, c):
        k1, k2, k3, k4 = jax.random.split(k, 4)
        return (1.0 + 0.1 * jax.random.normal(k1, (c,), jnp.float32),
                0.1 * jax.random.normal(k2, (c,), jnp.float32),
                0.1 * jax.random.normal(k3, (c,), jnp.float32),
                1.0 + 0.1 * jnp.abs(jax.random.normal(k4, (c,), jnp.float32)))

    p["bn1_g"], p["bn1_b"], p["bn1_m"], p["bn1_v"] = bn_params(ks[3], planes)
    p["bn2_g"], p["bn2_b"], p["bn2_m"], p["bn2_v"] = bn_params(ks[4], planes)
    p["bn3_g"], p["bn3_b"], p["bn3_m"], p["bn3_v"] = bn_params(
        ks[5], expansion * planes)

    if stride != 1 or in_planes != expansion * planes:
        p["convs_w"] = 0.1 * jax.random.normal(
            ks[6], (expansion * planes, in_planes, 1, 1), jnp.float32)
        p["bns_g"], p["bns_b"], p["bns_m"], p["bns_v"] = bn_params(
            ks[7], expansion * planes)
    return p


if __name__ == "__main__":
    key = jax.random.PRNGKey(0)
    configs = [
        (4, 4, 1),    # projection shortcut, in-kernel 3x3 path
        (16, 4, 1),   # identity shortcut (in_planes == 4*planes), f32 residual
        (4, 4, 2),    # stride 2: projection shortcut + im2col fallback path
    ]
    for in_planes, planes, stride in configs:
        key, k_x, k_p = jax.random.split(key, 3)
        x = jax.random.normal(k_x, (2, in_planes, 16, 16), jnp.float32)
        params = init_params(k_p, in_planes, planes, stride)

        fwd = jax.jit(functools.partial(bottleneck_forward, stride=stride))
        out = jax.block_until_ready(fwd(x, params))
        ref = reference_forward(x, params, stride=stride)

        assert out.shape == ref.shape, (out.shape, ref.shape)
        err = float(jnp.max(jnp.abs(out - ref)))
        # bf16 activations/weights (f32 accumulation) -> relaxed tolerance.
        assert jnp.allclose(out, ref, atol=5e-2, rtol=5e-2), (
            in_planes, planes, stride, err)
    print("KERNEL_OK")
</pallas_src>

<mosaic_0001>
module attributes {stable_mosaic.version = 11 : i64} {
  func.func @_matmul_bias_act_kernel(%arg0: i32, %arg1: i32, %arg2: i32, %arg3: memref<256x128xbf16, #tpu.memory_space<vmem>>, %arg4: memref<128x128xbf16, #tpu.memory_space<vmem>>, %arg5: memref<1x128xf32, #tpu.memory_space<vmem>>, %arg6: memref<256x128xbf16, #tpu.memory_space<vmem>>, %arg7: memref<256x128xf32, #tpu.memory_space<vmem>>) attributes {dimension_semantics = [#tpu.dimension_semantics<parallel>, #tpu.dimension_semantics<parallel>, #tpu.dimension_semantics<arbitrary>], iteration_bounds = array<i64: 2, 1, 1>, scalar_prefetch = 0 : i64, scratch_operands = 1 : i64, tpu.core_type = #tpu.core_type<tc>, window_params = [{transform_indices = @transform_0, window_bounds = array<i64: 256, 128>}, {transform_indices = @transform_1, window_bounds = array<i64: 128, 128>}, {transform_indices = @transform_2, window_bounds = array<i64: 1, 128>}, {transform_indices = @transform_3, window_bounds = array<i64: 256, 128>}]} {
    %c0_i32 = arith.constant 0 : i32
    %0 = arith.cmpi eq, %arg2, %c0_i32 : i32
    %1 = arith.extui %0 : i1 to i32
    %c0_i32_0 = arith.constant 0 : i32
    %2 = arith.cmpi ne, %1, %c0_i32_0 : i32
    scf.if %2 {
      %cst_10 = arith.constant 0.000000e+00 : f32
      %12 = vector.broadcast %cst_10 : f32 to vector<256x128xf32>
      %c0_11 = arith.constant 0 : index
      %c0_12 = arith.constant 0 : index
      %13 = vector.load %arg7[%c0_11, %c0_12] : memref<256x128xf32, #tpu.memory_space<vmem>>, vector<256x128xf32>
      tpu.vector_store %arg7[%c0_11, %c0_12], %12 {strides = array<i32>} : memref<256x128xf32, #tpu.memory_space<vmem>>, vector<256x128xf32>,
    } else {
    }
    %c0 = arith.constant 0 : index
    %c0_1 = arith.constant 0 : index
    %3 = vector.load %arg7[%c0, %c0_1] : memref<256x128xf32, #tpu.memory_space<vmem>>, vector<256x128xf32>
    %c0_2 = arith.constant 0 : index
    %c0_3 = arith.constant 0 : index
    %4 = vector.load %arg3[%c0_2, %c0_3] : memref<256x128xbf16, #tpu.memory_space<vmem>>, vector<256x128xbf16>
    %c0_4 = arith.constant 0 : index
    %c0_5 = arith.constant 0 : index
    %5 = vector.load %arg4[%c0_4, %c0_5] : memref<128x128xbf16, #tpu.memory_space<vmem>>, vector<128x128xbf16>
    %cst = arith.constant dense<0.000000e+00> : vector<256x128xf32>
    %6 = tpu.matmul %4, %5, %cst {dimension_numbers = #tpu.dot_dimension_numbers<[1], [0], [0], [1], [0, 0, 1, 1], [], []>} : vector<256x128xbf16>, vector<128x128xbf16>, vector<256x128xf32> -> vector<256x128xf32>
    %7 = arith.addf %3, %6 : vector<256x128xf32>
    %c0_6 = arith.constant 0 : index
    %c0_7 = arith.constant 0 : index
    %8 = vector.load %arg7[%c0_6, %c0_7] : memref<256x128xf32, #tpu.memory_space<vmem>>, vector<256x128xf32>
    tpu.vector_store %arg7[%c0_6, %c0_7], %7 {strides = array<i32>} : memref<256x128xf32, #tpu.memory_space<vmem>>, vector<256x128xf32>,
    %c0_i32_8 = arith.constant 0 : i32
    %9 = arith.cmpi eq, %arg2, %c0_i32_8 : i32
    %10 = arith.extui %9 : i1 to i32
    %c0_i32_9 = arith.constant 0 : i32
    %11 = arith.cmpi ne, %10, %c0_i32_9 : i32
    scf.if %11 {
      %c0_10 = arith.constant 0 : index
      %c0_11 = arith.constant 0 : index
      %12 = vector.load %arg7[%c0_10, %c0_11] : memref<256x128xf32, #tpu.memory_space<vmem>>, vector<256x128xf32>
      %c0_12 = arith.constant 0 : index
      %c0_13 = arith.constant 0 : index
      %13 = vector.load %arg5[%c0_12, %c0_13] : memref<1x128xf32, #tpu.memory_space<vmem>>, vector<1x128xf32>
      %14 = vector.broadcast %13 : vector<1x128xf32> to vector<256x128xf32>
      %15 = arith.addf %12, %14 : vector<256x128xf32>
      %cst_14 = arith.constant 0.000000e+00 : f32
      %16 = vector.broadcast %cst_14 : f32 to vector<256x128xf32>
      %17 = arith.maximumf %15, %16 : vector<256x128xf32>
      %18 = arith.truncf %17 : vector<256x128xf32> to vector<256x128xbf16>
      %c0_15 = arith.constant 0 : index
      %c0_16 = arith.constant 0 : index
      %19 = vector.load %arg6[%c0_15, %c0_16] : memref<256x128xbf16, #tpu.memory_space<vmem>>, vector<256x128xbf16>
      tpu.vector_store %arg6[%c0_15, %c0_16], %18 {strides = array<i32>} : memref<256x128xbf16, #tpu.memory_space<vmem>>, vector<256x128xbf16>,
    } else {
    }
    return
  }
  func.func @transform_0(%arg0: i32, %arg1: i32, %arg2: i32) -> (i32, i32) {
    %c0_i32 = arith.constant 0 : i32
    return %arg0, %arg2 : i32, i32
  }
  func.func @transform_1(%arg0: i32, %arg1: i32, %arg2: i32) -> (i32, i32) {
    %c0_i32 = arith.constant 0 : i32
    return %arg2, %arg1 : i32, i32
  }
  func.func @transform_2(%arg0: i32, %arg1: i32, %arg2: i32) -> (i32, i32) {
    %c0_i32 = arith.constant 0 : i32
    %c0_i32_0 = arith.constant 0 : i32
    return %c0_i32, %arg1 : i32, i32
  }
  func.func @transform_3(%arg0: i32, %arg1: i32, %arg2: i32) -> (i32, i32) {
    %c0_i32 = arith.constant 0 : i32
    return %arg0, %arg1 : i32, i32
  }
}

module attributes {stable_mosaic.version = 11 : i64} {
  func.func @_conv3x3_kernel(%arg0: i32, %arg1: i32, %arg2: i32, %arg3: memref<1x16x16x128xbf16, #tpu.memory_space<vmem>>, %arg4: memref<1152x128xbf16, #tpu.memory_space<vmem>>, %arg5: memref<1x128xf32, #tpu.memory_space<vmem>>, %arg6: memref<1x8x16x128xbf16, #tpu.memory_space<vmem>>, %arg7: memref<10x24x128xbf16, #tpu.memory_space<vmem>>) attributes {dimension_semantics = [#tpu.dimension_semantics<parallel>, #tpu.dimension_semantics<parallel>, #tpu.dimension_semantics<parallel>], iteration_bounds = array<i64: 2, 1, 2>, scalar_prefetch = 0 : i64, scratch_operands = 1 : i64, tpu.core_type = #tpu.core_type<tc>, window_params = [{transform_indices = @transform_0, window_bounds = array<i64: 1, 16, 16, 128>}, {transform_indices = @transform_1, window_bounds = array<i64: 1152, 128>}, {transform_indices = @transform_2, window_bounds = array<i64: 1, 128>}, {transform_indices = @transform_3, window_bounds = array<i64: 1, 8, 16, 128>}]} {
    %c8_i32 = arith.constant 8 : i32
    %0 = arith.muli %arg2, %c8_i32 : i32
    %cst = arith.constant 0.000000e+00 : bf16
    %1 = vector.broadcast %cst : bf16 to vector<10x24x128xbf16>
    %c0 = arith.constant 0 : index
    %c0_0 = arith.constant 0 : index
    %c0_1 = arith.constant 0 : index
    %2 = vector.load %arg7[%c0, %c0_0, %c0_1] : memref<10x24x128xbf16, #tpu.memory_space<vmem>>, vector<10x24x128xbf16>
    tpu.vector_store %arg7[%c0, %c0_0, %c0_1], %1 {strides = array<i32>} : memref<10x24x128xbf16, #tpu.memory_space<vmem>>, vector<10x24x128xbf16>,
    %c-1_i32 = arith.constant -1 : i32
    %3 = arith.addi %0, %c-1_i32 : i32
    %c0_i32 = arith.constant 0 : i32
    %4 = arith.cmpi sge, %3, %c0_i32 : i32
    %c16_i32 = arith.constant 16 : i32
    %5 = arith.cmpi slt, %3, %c16_i32 : i32
    %6 = arith.andi %4, %5 : i1
    %7 = arith.extui %6 : i1 to i32
    %c0_i32_2 = arith.constant 0 : i32
    %8 = arith.cmpi ne, %7, %c0_i32_2 : i32
    scf.if %8 {
      %c0_68 = arith.constant 0 : index
      %117 = arith.index_cast %3 : i32 to index
      %c0_69 = arith.constant 0 : index
      %c0_70 = arith.constant 0 : index
      %118 = vector.load %arg3[%c0_68, %117, %c0_69, %c0_70] : memref<1x16x16x128xbf16, #tpu.memory_space<vmem>>, vector<1x1x16x128xbf16>
      %119 = vector.shape_cast %118 : vector<1x1x16x128xbf16> to vector<16x128xbf16>
      %c0_71 = arith.constant 0 : index
      %c1_72 = arith.constant 1 : index
      %c0_73 = arith.constant 0 : index
      %120 = vector.load %arg7[%c0_71, %c1_72, %c0_73] : memref<10x24x128xbf16, #tpu.memory_space<vmem>>, vector<1x16x128xbf16>
      %121 = vector.shape_cast %120 : vector<1x16x128xbf16> to vector<16x128xbf16>
      %122 = vector.shape_cast %119 : vector<16x128xbf16> to vector<1x16x128xbf16>
      tpu.vector_store %arg7[%c0_71, %c1_72, %c0_73], %122 {strides = array<i32>} : memref<10x24x128xbf16, #tpu.memory_space<vmem>>, vector<1x16x128xbf16>,
    } else {
    }
    %c0_i32_3 = arith.constant 0 : i32
    %9 = arith.addi %0, %c0_i32_3 : i32
    %c0_i32_4 = arith.constant 0 : i32
    %10 = arith.cmpi sge, %9, %c0_i32_4 : i32
    %c16_i32_5 = arith.constant 16 : i32
    %11 = arith.cmpi slt, %9, %c16_i32_5 : i32
    %12 = arith.andi %10, %11 : i1
    %13 = arith.extui %12 : i1 to i32
    %c0_i32_6 = arith.constant 0 : i32
    %14 = arith.cmpi ne, %13, %c0_i32_6 : i32
    scf.if %14 {
      %c0_68 = arith.constant 0 : index
      %117 = arith.index_cast %9 : i32 to index
      %c0_69 = arith.constant 0 : index
      %c0_70 = arith.constant 0 : index
      %118 = vector.load %arg3[%c0_68, %117, %c0_69, %c0_70] : memref<1x16x16x128xbf16, #tpu.memory_space<vmem>>, vector<1x1x16x128xbf16>
      %119 = vector.shape_cast %118 : vector<1x1x16x128xbf16> to vector<16x128xbf16>
      %c1_71 = arith.constant 1 : index
      %c1_72 = arith.constant 1 : index
      %c0_73 = arith.constant 0 : index
      %120 = vector.load %arg7[%c1_71, %c1_72, %c0_73] : memref<10x24x128xbf16, #tpu.memory_space<vmem>>, vector<1x16x128xbf16>
      %121 = vector.shape_cast %120 : vector<1x16x128xbf16> to vector<16x128xbf16>
      %122 = vector.shape_cast %119 : vector<16x128xbf16> to vector<1x16x128xbf16>
      tpu.vector_store %arg7[%c1_71, %c1_72, %c0_73], %122 {strides = array<i32>} : memref<10x24x128xbf16, #tpu.memory_space<vmem>>, vector<1x16x128xbf16>,
    } else {
    }
    %c1_i32 = arith.constant 1 : i32
    %15 = arith.addi %0, %c1_i32 : i32
    %c0_i32_7 = arith.constant 0 : i32
    %16 = arith.cmpi sge, %15, %c0_i32_7 : i32
    %c16_i32_8 = arith.constant 16 : i32
    %17 = arith.cmpi slt, %15, %c16_i32_8 : i32
    %18 = arith.andi %16, %17 : i1
    %19 = arith.extui %18 : i1 to i32
    %c0_i32_9 = arith.constant 0 : i32
    %20 = arith.cmpi ne, %19, %c0_i32_9 : i32
    scf.if %20 {
      %c0_68 = arith.constant 0 : index
      %117 = arith.index_cast %15 : i32 to index
      %c0_69 = arith.constant 0 : index
      %c0_70 = arith.constant 0 : index
      %118 = vector.load %arg3[%c0_68, %117, %c0_69, %c0_70] : memref<1x16x16x128xbf16, #tpu.memory_space<vmem>>, vector<1x1x16x128xbf16>
      %119 = vector.shape_cast %118 : vector<1x1x16x128xbf16> to vector<16x128xbf16>
      %c2_71 = arith.constant 2 : index
      %c1_72 = arith.constant 1 : index
      %c0_73 = arith.constant 0 : index
      %120 = vector.load %arg7[%c2_71, %c1_72, %c0_73] : memref<10x24x128xbf16, #tpu.memory_space<vmem>>, vector<1x16x128xbf16>
      %121 = vector.shape_cast %120 : vector<1x16x128xbf16> to vector<16x128xbf16>
      %122 = vector.shape_cast %119 : vector<16x128xbf16> to vector<1x16x128xbf16>
      tpu.vector_store %arg7[%c2_71, %c1_72, %c0_73], %122 {strides = array<i32>} : memref<10x24x128xbf16, #tpu.memory_space<vmem>>, vector<1x16x128xbf16>,
    } else {
    }
    %c2_i32 = arith.constant 2 : i32
    %21 = arith.addi %0, %c2_i32 : i32
    %c0_i32_10 = arith.constant 0 : i32
    %22 = arith.cmpi sge, %21, %c0_i32_10 : i32
    %c16_i32_11 = arith.constant 16 : i32
    %23 = arith.cmpi slt, %21, %c16_i32_11 : i32
    %24 = arith.andi %22, %23 : i1
    %25 = arith.extui %24 : i1 to i32
    %c0_i32_12 = arith.constant 0 : i32
    %26 = arith.cmpi ne, %25, %c0_i32_12 : i32
    scf.if %26 {
      %c0_68 = arith.constant 0 : index
      %117 = arith.index_cast %21 : i32 to index
      %c0_69 = arith.constant 0 : index
      %c0_70 = arith.constant 0 : index
      %118 = vector.load %arg3[%c0_68, %117, %c0_69, %c0_70] : memref<1x16x16x128xbf16, #tpu.memory_space<vmem>>, vector<1x1x16x128xbf16>
      %119 = vector.shape_cast %118 : vector<1x1x16x128xbf16> to vector<16x128xbf16>
      %c3 = arith.constant 3 : index
      %c1_71 = arith.constant 1 : index
      %c0_72 = arith.constant 0 : index
      %120 = vector.load %arg7[%c3, %c1_71, %c0_72] : memref<10x24x128xbf16, #tpu.memory_space<vmem>>, vector<1x16x128xbf16>
      %121 = vector.shape_cast %120 : vector<1x16x128xbf16> to vector<16x128xbf16>
      %122 = vector.shape_cast %119 : vector<16x128xbf16> to vector<1x16x128xbf16>
      tpu.vector_store %arg7[%c3, %c1_71, %c0_72], %122 {strides = array<i32>} : memref<10x24x128xbf16, #tpu.memory_space<vmem>>, vector<1x16x128xbf16>,
    } else {
    }
    %c3_i32 = arith.constant 3 : i32
    %27 = arith.addi %0, %c3_i32 : i32
    %c0_i32_13 = arith.constant 0 : i32
    %28 = arith.cmpi sge, %27, %c0_i32_13 : i32
    %c16_i32_14 = arith.constant 16 : i32
    %29 = arith.cmpi slt, %27, %c16_i32_14 : i32
    %30 = arith.andi %28, %29 : i1
    %31 = arith.extui %30 : i1 to i32
    %c0_i32_15 = arith.constant 0 : i32
    %32 = arith.cmpi ne, %31, %c0_i32_15 : i32
    scf.if %32 {
      %c0_68 = arith.constant 0 : index
      %117 = arith.index_cast %27 : i32 to index
      %c0_69 = arith.constant 0 : index
      %c0_70 = arith.constant 0 : index
      %118 = vector.load %arg3[%c0_68, %117, %c0_69, %c0_70] : memref<1x16x16x128xbf16, #tpu.memory_space<vmem>>, vector<1x1x16x128xbf16>
      %119 = vector.shape_cast %118 : vector<1x1x16x128xbf16> to vector<16x128xbf16>
      %c4 = arith.constant 4 : index
      %c1_71 = arith.constant 1 : index
      %c0_72 = arith.constant 0 : index
      %120 = vector.load %arg7[%c4, %c1_71, %c0_72] : memref<10x24x128xbf16, #tpu.memory_space<vmem>>, vector<1x16x128xbf16>
      %121 = vector.shape_cast %120 : vector<1x16x128xbf16> to vector<16x128xbf16>
      %122 = vector.shape_cast %119 : vector<16x128xbf16> to vector<1x16x128xbf16>
      tpu.vector_store %arg7[%c4, %c1_71, %c0_72], %122 {strides = array<i32>} : memref<10x24x128xbf16, #tpu.memory_space<vmem>>, vector<1x16x128xbf16>,
    } else {
    }
    %c4_i32 = arith.constant 4 : i32
    %33 = arith.addi %0, %c4_i32 : i32
    %c0_i32_16 = arith.constant 0 : i32
    %34 = arith.cmpi sge, %33, %c0_i32_16 : i32
    %c16_i32_17 = arith.constant 16 : i32
    %35 = arith.cmpi slt, %33, %c16_i32_17 : i32
    %36 = arith.andi %34, %35 : i1
    %37 = arith.extui %36 : i1 to i32
    %c0_i32_18 = arith.constant 0 : i32
    %38 = arith.cmpi ne, %37, %c0_i32_18 : i32
    scf.if %38 {
      %c0_68 = arith.constant 0 : index
      %117 = arith.index_cast %33 : i32 to index
      %c0_69 = arith.constant 0 : index
      %c0_70 = arith.constant 0 : index
      %118 = vector.load %arg3[%c0_68, %117, %c0_69, %c0_70] : memref<1x16x16x128xbf16, #tpu.memory_space<vmem>>, vector<1x1x16x128xbf16>
      %119 = vector.shape_cast %118 : vector<1x1x16x128xbf16> to vector<16x128xbf16>
      %c5 = arith.constant 5 : index
      %c1_71 = arith.constant 1 : index
      %c0_72 = arith.constant 0 : index
      %120 = vector.load %arg7[%c5, %c1_71, %c0_72] : memref<10x24x128xbf16, #tpu.memory_space<vmem>>, vector<1x16x128xbf16>
      %121 = vector.shape_cast %120 : vector<1x16x128xbf16> to vector<16x128xbf16>
      %122 = vector.shape_cast %119 : vector<16x128xbf16> to vector<1x16x128xbf16>
      tpu.vector_store %arg7[%c5, %c1_71, %c0_72], %122 {strides = array<i32>} : memref<10x24x128xbf16, #tpu.memory_space<vmem>>, vector<1x16x128xbf16>,
    } else {
    }
    %c5_i32 = arith.constant 5 : i32
    %39 = arith.addi %0, %c5_i32 : i32
    %c0_i32_19 = arith.constant 0 : i32
    %40 = arith.cmpi sge, %39, %c0_i32_19 : i32
    %c16_i32_20 = arith.constant 16 : i32
    %41 = arith.cmpi slt, %39, %c16_i32_20 : i32
    %42 = arith.andi %40, %41 : i1
    %43 = arith.extui %42 : i1 to i32
    %c0_i32_21 = arith.constant 0 : i32
    %44 = arith.cmpi ne, %43, %c0_i32_21 : i32
    scf.if %44 {
      %c0_68 = arith.constant 0 : index
      %117 = arith.index_cast %39 : i32 to index
      %c0_69 = arith.constant 0 : index
      %c0_70 = arith.constant 0 : index
      %118 = vector.load %arg3[%c0_68, %117, %c0_69, %c0_70] : memref<1x16x16x128xbf16, #tpu.memory_space<vmem>>, vector<1x1x16x128xbf16>
      %119 = vector.shape_cast %118 : vector<1x1x16x128xbf16> to vector<16x128xbf16>
      %c6 = arith.constant 6 : index
      %c1_71 = arith.constant 1 : index
      %c0_72 = arith.constant 0 : index
      %120 = vector.load %arg7[%c6, %c1_71, %c0_72] : memref<10x24x128xbf16, #tpu.memory_space<vmem>>, vector<1x16x128xbf16>
      %121 = vector.shape_cast %120 : vector<1x16x128xbf16> to vector<16x128xbf16>
      %122 = vector.shape_cast %119 : vector<16x128xbf16> to vector<1x16x128xbf16>
      tpu.vector_store %arg7[%c6, %c1_71, %c0_72], %122 {strides = array<i32>} : memref<10x24x128xbf16, #tpu.memory_space<vmem>>, vector<1x16x128xbf16>,
    } else {
    }
    %c6_i32 = arith.constant 6 : i32
    %45 = arith.addi %0, %c6_i32 : i32
    %c0_i32_22 = arith.constant 0 : i32
    %46 = arith.cmpi sge, %45, %c0_i32_22 : i32
    %c16_i32_23 = arith.constant 16 : i32
    %47 = arith.cmpi slt, %45, %c16_i32_23 : i32
    %48 = arith.andi %46, %47 : i1
    %49 = arith.extui %48 : i1 to i32
    %c0_i32_24 = arith.constant 0 : i32
    %50 = arith.cmpi ne, %49, %c0_i32_24 : i32
    scf.if %50 {
      %c0_68 = arith.constant 0 : index
      %117 = arith.index_cast %45 : i32 to index
      %c0_69 = arith.constant 0 : index
      %c0_70 = arith.constant 0 : index
      %118 = vector.load %arg3[%c0_68, %117, %c0_69, %c0_70] : memref<1x16x16x128xbf16, #tpu.memory_space<vmem>>, vector<1x1x16x128xbf16>
      %119 = vector.shape_cast %118 : vector<1x1x16x128xbf16> to vector<16x128xbf16>
      %c7 = arith.constant 7 : index
      %c1_71 = arith.constant 1 : index
      %c0_72 = arith.constant 0 : index
      %120 = vector.load %arg7[%c7, %c1_71, %c0_72] : memref<10x24x128xbf16, #tpu.memory_space<vmem>>, vector<1x16x128xbf16>
      %121 = vector.shape_cast %120 : vector<1x16x128xbf16> to vector<16x128xbf16>
      %122 = vector.shape_cast %119 : vector<16x128xbf16> to vector<1x16x128xbf16>
      tpu.vector_store %arg7[%c7, %c1_71, %c0_72], %122 {strides = array<i32>} : memref<10x24x128xbf16, #tpu.memory_space<vmem>>, vector<1x16x128xbf16>,
    } else {
    }
    %c7_i32 = arith.constant 7 : i32
    %51 = arith.addi %0, %c7_i32 : i32
    %c0_i32_25 = arith.constant 0 : i32
    %52 = arith.cmpi sge, %51, %c0_i32_25 : i32
    %c16_i32_26 = arith.constant 16 : i32
    %53 = arith.cmpi slt, %51, %c16_i32_26 : i32
    %54 = arith.andi %52, %53 : i1
    %55 = arith.extui %54 : i1 to i32
    %c0_i32_27 = arith.constant 0 : i32
    %56 = arith.cmpi ne, %55, %c0_i32_27 : i32
    scf.if %56 {
      %c0_68 = arith.constant 0 : index
      %117 = arith.index_cast %51 : i32 to index
      %c0_69 = arith.constant 0 : index
      %c0_70 = arith.constant 0 : index
      %118 = vector.load %arg3[%c0_68, %117, %c0_69, %c0_70] : memref<1x16x16x128xbf16, #tpu.memory_space<vmem>>, vector<1x1x16x128xbf16>
      %119 = vector.shape_cast %118 : vector<1x1x16x128xbf16> to vector<16x128xbf16>
      %c8 = arith.constant 8 : index
      %c1_71 = arith.constant 1 : index
      %c0_72 = arith.constant 0 : index
      %120 = vector.load %arg7[%c8, %c1_71, %c0_72] : memref<10x24x128xbf16, #tpu.memory_space<vmem>>, vector<1x16x128xbf16>
      %121 = vector.shape_cast %120 : vector<1x16x128xbf16> to vector<16x128xbf16>
      %122 = vector.shape_cast %119 : vector<16x128xbf16> to vector<1x16x128xbf16>
      tpu.vector_store %arg7[%c8, %c1_71, %c0_72], %122 {strides = array<i32>} : memref<10x24x128xbf16, #tpu.memory_space<vmem>>, vector<1x16x128xbf16>,
    } else {
    }
    %c8_i32_28 = arith.constant 8 : i32
    %57 = arith.addi %0, %c8_i32_28 : i32
    %c0_i32_29 = arith.constant 0 : i32
    %58 = arith.cmpi sge, %57, %c0_i32_29 : i32
    %c16_i32_30 = arith.constant 16 : i32
    %59 = arith.cmpi slt, %57, %c16_i32_30 : i32
    %60 = arith.andi %58, %59 : i1
    %61 = arith.extui %60 : i1 to i32
    %c0_i32_31 = arith.constant 0 : i32
    %62 = arith.cmpi ne, %61, %c0_i32_31 : i32
    scf.if %62 {
      %c0_68 = arith.constant 0 : index
      %117 = arith.index_cast %57 : i32 to index
      %c0_69 = arith.constant 0 : index
      %c0_70 = arith.constant 0 : index
      %118 = vector.load %arg3[%c0_68, %117, %c0_69, %c0_70] : memref<1x16x16x128xbf16, #tpu.memory_space<vmem>>, vector<1x1x16x128xbf16>
      %119 = vector.shape_cast %118 : vector<1x1x16x128xbf16> to vector<16x128xbf16>
      %c9 = arith.constant 9 : index
      %c1_71 = arith.constant 1 : index
      %c0_72 = arith.constant 0 : index
      %120 = vector.load %arg7[%c9, %c1_71, %c0_72] : memref<10x24x128xbf16, #tpu.memory_space<vmem>>, vector<1x16x128xbf16>
      %121 = vector.shape_cast %120 : vector<1x16x128xbf16> to vector<16x128xbf16>
      %122 = vector.shape_cast %119 : vector<16x128xbf16> to vector<1x16x128xbf16>
      tpu.vector_store %arg7[%c9, %c1_71, %c0_72], %122 {strides = array<i32>} : memref<10x24x128xbf16, #tpu.memory_space<vmem>>, vector<1x16x128xbf16>,
    } else {
    }
    %cst_32 = arith.constant 0.000000e+00 : f32
    %63 = vector.broadcast %cst_32 : f32 to vector<192x128xf32>
    %cst_33 = arith.constant 0.000000e+00 : f32
    %64 = vector.broadcast %cst_33 : f32 to vector<192x128xf32>
    %cst_34 = arith.constant 0.000000e+00 : f32
    %65 = vector.broadcast %cst_34 : f32 to vector<192x128xf32>
    %c0_35 = arith.constant 0 : index
    %c0_36 = arith.constant 0 : index
    %c0_37 = arith.constant 0 : index
    %66 = vector.load %arg7[%c0_35, %c0_36, %c0_37] : memref<10x24x128xbf16, #tpu.memory_space<vmem>>, vector<8x24x128xbf16>
    %67 = vector.shape_cast %66 : vector<8x24x128xbf16> to vector<192x128xbf16>
    %c0_38 = arith.constant 0 : index
    %c0_39 = arith.constant 0 : index
    %68 = vector.load %arg4[%c0_38, %c0_39] : memref<1152x128xbf16, #tpu.memory_space<vmem>>, vector<128x128xbf16>
    %cst_40 = arith.constant dense<0.000000e+00> : vector<192x128xf32>
    %69 = tpu.matmul %67, %68, %cst_40 {dimension_numbers = #tpu.dot_dimension_numbers<[1], [0], [0], [1], [0, 0, 1, 1], [], []>} : vector<192x128xbf16>, vector<128x128xbf16>, vector<192x128xf32> -> vector<192x128xf32>
    %70 = arith.addf %63, %69 : vector<192x128xf32>
    %c128 = arith.constant 128 : index
    %c0_41 = arith.constant 0 : index
    %71 = vector.load %arg4[%c128, %c0_41] : memref<1152x128xbf16, #tpu.memory_space<vmem>>, vector<128x128xbf16>
    %cst_42 = arith.constant dense<0.000000e+00> : vector<192x128xf32>
    %72 = tpu.matmul %67, %71, %cst_42 {dimension_numbers = #tpu.dot_dimension_numbers<[1], [0], [0], [1], [0, 0, 1, 1], [], []>} : vector<192x128xbf16>, vector<128x128xbf16>, vector<192x128xf32> -> vector<192x128xf32>
    %73 = arith.addf %64, %72 : vector<192x128xf32>
    %c256 = arith.constant 256 : index
    %c0_43 = arith.constant 0 : index
    %74 = vector.load %arg4[%c256, %c0_43] : memref<1152x128xbf16, #tpu.memory_space<vmem>>, vector<128x128xbf16>
    %cst_44 = arith.constant dense<0.000000e+00> : vector<192x128xf32>
    %75 = tpu.matmul %67, %74, %cst_44 {dimension_numbers = #tpu.dot_dimension_numbers<[1], [0], [0], [1], [0, 0, 1, 1], [], []>} : vector<192x128xbf16>, vector<128x128xbf16>, vector<192x128xf32> -> vector<192x128xf32>
    %76 = arith.addf %65, %75 : vector<192x128xf32>
    %c1 = arith.constant 1 : index
    %c0_45 = arith.constant 0 : index
    %c0_46 = arith.constant 0 : index
    %77 = vector.load %arg7[%c1, %c0_45, %c0_46] : memref<10x24x128xbf16, #tpu.memory_space<vmem>>, vector<8x24x128xbf16>
    %78 = vector.shape_cast %77 : vector<8x24x128xbf16> to vector<192x128xbf16>
    %c384 = arith.constant 384 : index
    %c0_47 = arith.constant 0 : index
    %79 = vector.load %arg4[%c384, %c0_47] : memref<1152x128xbf16, #tpu.memory_space<vmem>>, vector<128x128xbf16>
    %cst_48 = arith.constant dense<0.000000e+00> : vector<192x128xf32>
    %80 = tpu.matmul %78, %79, %cst_48 {dimension_numbers = #tpu.dot_dimension_numbers<[1], [0], [0], [1], [0, 0, 1, 1], [], []>} : vector<192x128xbf16>, vector<128x128xbf16>, vector<192x128xf32> -> vector<192x128xf32>
    %81 = arith.addf %70, %80 : vector<192x128xf32>
    %c512 = arith.constant 512 : index
    %c0_49 = arith.constant 0 : index
    %82 = vector.load %arg4[%c512, %c0_49] : memref<1152x128xbf16, #tpu.memory_space<vmem>>, vector<128x128xbf16>
    %cst_50 = arith.constant dense<0.000000e+00> : vector<192x128xf32>
    %83 = tpu.matmul %78, %82, %cst_50 {dimension_numbers = #tpu.dot_dimension_numbers<[1], [0], [0], [1], [0, 0, 1, 1], [], []>} : vector<192x128xbf16>, vector<128x128xbf16>, vector<192x128xf32> -> vector<192x128xf32>
    %84 = arith.addf %73, %83 : vector<192x128xf32>
    %c640 = arith.constant 640 : index
    %c0_51 = arith.constant 0 : index
    %85 = vector.load %arg4[%c640, %c0_51] : memref<1152x128xbf16, #tpu.memory_space<vmem>>, vector<128x128xbf16>
    %cst_52 = arith.constant dense<0.000000e+00> : vector<192x128xf32>
    %86 = tpu.matmul %78, %85, %cst_52 {dimension_numbers = #tpu.dot_dimension_numbers<[1], [0], [0], [1], [0, 0, 1, 1], [], []>} : vector<192x128xbf16>, vector<128x128xbf16>, vector<192x128xf32> -> vector<192x128xf32>
    %87 = arith.addf %76, %86 : vector<192x128xf32>
    %c2 = arith.constant 2 : index
    %c0_53 = arith.constant 0 : index
    %c0_54 = arith.constant 0 : index
    %88 = vector.load %arg7[%c2, %c0_53, %c0_54] : memref<10x24x128xbf16, #tpu.memory_space<vmem>>, vector<8x24x128xbf16>
    %89 = vector.shape_cast %88 : vector<8x24x128xbf16> to vector<192x128xbf16>
    %c768 = arith.constant 768 : index
    %c0_55 = arith.constant 0 : index
    %90 = vector.load %arg4[%c768, %c0_55] : memref<1152x128xbf16, #tpu.memory_space<vmem>>, vector<128x128xbf16>
    %cst_56 = arith.constant dense<0.000000e+00> : vector<192x128xf32>
    %91 = tpu.matmul %89, %90, %cst_56 {dimension_numbers = #tpu.dot_dimension_numbers<[1], [0], [0], [1], [0, 0, 1, 1], [], []>} : vector<192x128xbf16>, vector<128x128xbf16>, vector<192x128xf32> -> vector<192x128xf32>
    %92 = arith.addf %81, %91 : vector<192x128xf32>
    %c896 = arith.constant 896 : index
    %c0_57 = arith.constant 0 : index
    %93 = vector.load %arg4[%c896, %c0_57] : memref<1152x128xbf16, #tpu.memory_space<vmem>>, vector<128x128xbf16>
    %cst_58 = arith.constant dense<0.000000e+00> : vector<192x128xf32>
    %94 = tpu.matmul %89, %93, %cst_58 {dimension_numbers = #tpu.dot_dimension_numbers<[1], [0], [0], [1], [0, 0, 1, 1], [], []>} : vector<192x128xbf16>, vector<128x128xbf16>, vector<192x128xf32> -> vector<192x128xf32>
    %95 = arith.addf %84, %94 : vector<192x128xf32>
    %c1024 = arith.constant 1024 : index
    %c0_59 = arith.constant 0 : index
    %96 = vector.load %arg4[%c1024, %c0_59] : memref<1152x128xbf16, #tpu.memory_space<vmem>>, vector<128x128xbf16>
    %cst_60 = arith.constant dense<0.000000e+00> : vector<192x128xf32>
    %97 = tpu.matmul %89, %96, %cst_60 {dimension_numbers = #tpu.dot_dimension_numbers<[1], [0], [0], [1], [0, 0, 1, 1], [], []>} : vector<192x128xbf16>, vector<128x128xbf16>, vector<192x128xf32> -> vector<192x128xf32>
    %98 = arith.addf %87, %97 : vector<192x128xf32>
    %99 = vector.shape_cast %92 : vector<192x128xf32> to vector<8x24x128xf32>
    %100 = vector.shape_cast %95 : vector<192x128xf32> to vector<8x24x128xf32>
    %101 = vector.shape_cast %98 : vector<192x128xf32> to vector<8x24x128xf32>
    %102 = vector.extract_strided_slice %99 {offsets = [0, 0, 0], sizes = [8, 16, 128], strides = [1, 1, 1]} : vector<8x24x128xf32> to vector<8x16x128xf32>
    %103 = vector.extract_strided_slice %100 {offsets = [0, 1, 0], sizes = [8, 16, 128], strides = [1, 1, 1]} : vector<8x24x128xf32> to vector<8x16x128xf32>
    %104 = arith.addf %102, %103 : vector<8x16x128xf32>
    %105 = vector.extract_strided_slice %101 {offsets = [0, 2, 0], sizes = [8, 16, 128], strides = [1, 1, 1]} : vector<8x24x128xf32> to vector<8x16x128xf32>
    %106 = arith.addf %104, %105 : vector<8x16x128xf32>
    %c0_61 = arith.constant 0 : index
    %c0_62 = arith.constant 0 : index
    %107 = vector.load %arg5[%c0_61, %c0_62] : memref<1x128xf32, #tpu.memory_space<vmem>>, vector<1x128xf32>
    %108 = vector.shape_cast %107 : vector<1x128xf32> to vector<1x1x128xf32>
    %109 = vector.broadcast %108 : vector<1x1x128xf32> to vector<8x16x128xf32>
    %110 = arith.addf %106, %109 : vector<8x16x128xf32>
    %cst_63 = arith.constant 0.000000e+00 : f32
    %111 = vector.broadcast %cst_63 : f32 to vector<8x16x128xf32>
    %112 = arith.maximumf %110, %111 : vector<8x16x128xf32>
    %113 = arith.truncf %112 : vector<8x16x128xf32> to vector<8x16x128xbf16>
    %c0_64 = arith.constant 0 : index
    %c0_65 = arith.constant 0 : index
    %c0_66 = arith.constant 0 : index
    %c0_67 = arith.constant 0 : index
    %114 = vector.load %arg6[%c0_64, %c0_65, %c0_66, %c0_67] : memref<1x8x16x128xbf16, #tpu.memory_space<vmem>>, vector<1x8x16x128xbf16>
    %115 = vector.shape_cast %114 : vector<1x8x16x128xbf16> to vector<8x16x128xbf16>
    %116 = vector.shape_cast %113 : vector<8x16x128xbf16> to vector<1x8x16x128xbf16>
    tpu.vector_store %arg6[%c0_64, %c0_65, %c0_66, %c0_67], %116 {strides = array<i32>} : memref<1x8x16x128xbf16, #tpu.memory_space<vmem>>, vector<1x8x16x128xbf16>,
    return
  }
  func.func @transform_0(%arg0: i32, %arg1: i32, %arg2: i32) -> (i32, i32, i32, i32) {
    %c0_i32 = arith.constant 0 : i32
    %c0_i32_0 = arith.constant 0 : i32
    %c0_i32_1 = arith.constant 0 : i32
    %c0_i32_2 = arith.constant 0 : i32
    return %arg0, %c0_i32, %c0_i32_0, %c0_i32_1 : i32, i32, i32, i32
  }
  func.func @transform_1(%arg0: i32, %arg1: i32, %arg2: i32) -> (i32, i32) {
    %c0_i32 = arith.constant 0 : i32
    %c0_i32_0 = arith.constant 0 : i32
    return %c0_i32, %arg1 : i32, i32
  }
  func.func @transform_2(%arg0: i32, %arg1: i32, %arg2: i32) -> (i32, i32) {
    %c0_i32 = arith.constant 0 : i32
    %c0_i32_0 = arith.constant 0 : i32
    return %c0_i32, %arg1 : i32, i32
  }
  func.func @transform_3(%arg0: i32, %arg1: i32, %arg2: i32) -> (i32, i32, i32, i32) {
    %c0_i32 = arith.constant 0 : i32
    %c0_i32_0 = arith.constant 0 : i32
    return %arg0, %arg2, %c0_i32, %arg1 : i32, i32, i32, i32
  }
}

module attributes {stable_mosaic.version = 11 : i64} {
  func.func @_conv3_proj_kernel(%arg0: i32, %arg1: i32, %arg2: memref<256x128xbf16, #tpu.memory_space<vmem>>, %arg3: memref<128x128xbf16, #tpu.memory_space<vmem>>, %arg4: memref<256x128xbf16, #tpu.memory_space<vmem>>, %arg5: memref<128x128xbf16, #tpu.memory_space<vmem>>, %arg6: memref<1x128xf32, #tpu.memory_space<vmem>>, %arg7: memref<256x128xf32, #tpu.memory_space<vmem>>) attributes {dimension_semantics = [#tpu.dimension_semantics<parallel>, #tpu.dimension_semantics<parallel>], iteration_bounds = array<i64: 2, 1>, scalar_prefetch = 0 : i64, scratch_operands = 0 : i64, tpu.core_type = #tpu.core_type<tc>, window_params = [{transform_indices = @transform_0, window_bounds = array<i64: 256, 128>}, {transform_indices = @transform_1, window_bounds = array<i64: 128, 128>}, {transform_indices = @transform_2, window_bounds = array<i64: 256, 128>}, {transform_indices = @transform_3, window_bounds = array<i64: 128, 128>}, {transform_indices = @transform_4, window_bounds = array<i64: 1, 128>}, {transform_indices = @transform_5, window_bounds = array<i64: 256, 128>}]} {
    %c0 = arith.constant 0 : index
    %c0_0 = arith.constant 0 : index
    %0 = vector.load %arg2[%c0, %c0_0] : memref<256x128xbf16, #tpu.memory_space<vmem>>, vector<256x128xbf16>
    %c0_1 = arith.constant 0 : index
    %c0_2 = arith.constant 0 : index
    %1 = vector.load %arg3[%c0_1, %c0_2] : memref<128x128xbf16, #tpu.memory_space<vmem>>, vector<128x128xbf16>
    %cst = arith.constant dense<0.000000e+00> : vector<256x128xf32>
    %2 = tpu.matmul %0, %1, %cst {dimension_numbers = #tpu.dot_dimension_numbers<[1], [0], [0], [1], [0, 0, 1, 1], [], []>} : vector<256x128xbf16>, vector<128x128xbf16>, vector<256x128xf32> -> vector<256x128xf32>
    %c0_3 = arith.constant 0 : index
    %c0_4 = arith.constant 0 : index
    %3 = vector.load %arg4[%c0_3, %c0_4] : memref<256x128xbf16, #tpu.memory_space<vmem>>, vector<256x128xbf16>
    %c0_5 = arith.constant 0 : index
    %c0_6 = arith.constant 0 : index
    %4 = vector.load %arg5[%c0_5, %c0_6] : memref<128x128xbf16, #tpu.memory_space<vmem>>, vector<128x128xbf16>
    %cst_7 = arith.constant dense<0.000000e+00> : vector<256x128xf32>
    %5 = tpu.matmul %3, %4, %cst_7 {dimension_numbers = #tpu.dot_dimension_numbers<[1], [0], [0], [1], [0, 0, 1, 1], [], []>} : vector<256x128xbf16>, vector<128x128xbf16>, vector<256x128xf32> -> vector<256x128xf32>
    %6 = arith.addf %2, %5 : vector<256x128xf32>
    %c0_8 = arith.constant 0 : index
    %c0_9 = arith.constant 0 : index
    %7 = vector.load %arg6[%c0_8, %c0_9] : memref<1x128xf32, #tpu.memory_space<vmem>>, vector<1x128xf32>
    %8 = vector.broadcast %7 : vector<1x128xf32> to vector<256x128xf32>
    %9 = arith.addf %6, %8 : vector<256x128xf32>
    %cst_10 = arith.constant 0.000000e+00 : f32
    %10 = vector.broadcast %cst_10 : f32 to vector<256x128xf32>
    %11 = arith.maximumf %9, %10 : vector<256x128xf32>
    %c0_11 = arith.constant 0 : index
    %c0_12 = arith.constant 0 : index
    %12 = vector.load %arg7[%c0_11, %c0_12] : memref<256x128xf32, #tpu.memory_space<vmem>>, vector<256x128xf32>
    tpu.vector_store %arg7[%c0_11, %c0_12], %11 {strides = array<i32>} : memref<256x128xf32, #tpu.memory_space<vmem>>, vector<256x128xf32>,
    return
  }
  func.func @transform_0(%arg0: i32, %arg1: i32) -> (i32, i32) {
    %c0_i32 = arith.constant 0 : i32
    %c0_i32_0 = arith.constant 0 : i32
    return %arg0, %c0_i32 : i32, i32
  }
  func.func @transform_1(%arg0: i32, %arg1: i32) -> (i32, i32) {
    %c0_i32 = arith.constant 0 : i32
    %c0_i32_0 = arith.constant 0 : i32
    return %c0_i32, %arg1 : i32, i32
  }
  func.func @transform_2(%arg0: i32, %arg1: i32) -> (i32, i32) {
    %c0_i32 = arith.constant 0 : i32
    %c0_i32_0 = arith.constant 0 : i32
    return %arg0, %c0_i32 : i32, i32
  }
  func.func @transform_3(%arg0: i32, %arg1: i32) -> (i32, i32) {
    %c0_i32 = arith.constant 0 : i32
    %c0_i32_0 = arith.constant 0 : i32
    return %c0_i32, %arg1 : i32, i32
  }
  func.func @transform_4(%arg0: i32, %arg1: i32) -> (i32, i32) {
    %c0_i32 = arith.constant 0 : i32
    %c0_i32_0 = arith.constant 0 : i32
    return %c0_i32, %arg1 : i32, i32
  }
  func.func @transform_5(%arg0: i32, %arg1: i32) -> (i32, i32) {
    %c0_i32 = arith.constant 0 : i32
    return %arg0, %arg1 : i32, i32
  }
}

</mosaic_0001>

<llo_original>
// kernel: bottleneck_forward.3
$region0: #{bottleneck_forward.3}
  #allocation0 [shape = 'u32[]', space=smem, size = 0x4, offset = 0x4, fixed_abs, tag = 'smem constant byte address 0x4 - core index']
  #allocation1 [shape = 'u32[72,128]{1,0:T(1,128)}', space=vmem, size = 0x9000, scoped, tag = 'internal scratch']
  #allocation2 [shape = 'f32[256,128]{1,0:T(8,128)}', space=vmem, size = 0x20000, scoped, tag = 'scratch operand']
  %s0 = inlined_call_operand.vmem [shape: bf16[512,128], index: 0, kind: input, shape index: {}]
  %s1 = inlined_call_operand.vmem [shape: bf16[128,128], index: 1, kind: input, shape index: {}]
  %s2 = inlined_call_operand.vmem [shape: f32[1,128], index: 2, kind: input, shape index: {}]
  %s3 = inlined_call_operand.vmem [shape: bf16[512,128], index: 3, kind: output, shape index: {}]
  %s4 = sld [smem:[#allocation0]]
  $region53: #{bottleneck_forward.3} parent=0
    _
  %s6 = ssub.s32 1, %s4
  %s7 = scalar_select 0, %s6, %s4
  loop: start=0, step=1, limit=4
  $region2: #{bottleneck_forward.3} parent=0 // loop_pre_header
    _
  $region3: #{bottleneck_forward.3} parent=0 // loop_header
    %s9 = sphi 0, %s13
    %p10 = scmp.ge.s32.totalorder %s9, 4
    %s16 = sphi 0, %s35
    %s17 = sphi 0, %s31
    %s18 = sphi 0, %s27
    %s19 = sphi 0, %s16
    %s20 = sphi 0, %s17
    %s21 = sphi 0, %s18
    %s22 = sphi 0, %s19
    %s23 = sphi 0, %s20
    %s24 = sphi 0, %s21
    %s40 = sphi 0, %s42
    %s43 = sphi 0, %s40
    %s44 = sphi 0, %s43
    %s60 = sphi 0, %s44
    %s68 = sphi 0, %s70
    %s71 = sphi 0, %s68
    %s72 = sphi 0, %s71
    %s88 = sphi 0, %s72
    %s94 = sphi 0, %s96
    %s97 = sphi 0, %s94
    %s98 = sphi 0, %s97
    %s114 = sphi 0, %s98
    %s122 = sphi 0, %s124
    %s125 = sphi 0, %s122
    %s126 = sphi 0, %s125
    %s142 = sphi 0, %s126
  $region4: #{bottleneck_forward.3} parent=0 // loop_header_branch
    %12 = sbr.rel (%p10) target = $region8
  $region5: #{bottleneck_forward.3} parent=0 // loop_body
    %s14 = ssub.s32 %s9, 1
    %s15 = ssub.s32 %s9, 2
    %s25 = sadd.s32 1, %s18
    %p26 = scmp.ge.s32.totalorder %s25, 1
    %s27 = scalar_select %p26, 0, %s25
    %s28 = sadd.s32 1, %s17
    %s29 = scalar_select %p26, %s28, %s17
    %p30 = scmp.ge.s32.totalorder %s29, 1
    %s31 = scalar_select %p30, 0, %s29
    %s32 = sadd.s32 1, %s16
    %s33 = scalar_select %p30, %s32, %s16
    %p34 = scmp.ge.s32.totalorder %s33, 2
    %s35 = scalar_select %p34, 0, %s33
    %s36 = ssub.s32 %s16, %s35
    %s37 = ssub.s32 %s18, %s27
    %s38 = sor.u32 %s36, %s37
    %p39 = scmp.eq.s32.totalorder %s38, 0
    %s41 = sadd.s32 %s40, 1
    %s42 = scalar_select %p39, %s40, %s41
    %p45 = pneg %p39
    %p46 = scmp.eq.s32.totalorder %s9, 1
    %p47 = por %p45, %p46
    %p48 = scmp.ne.s32.totalorder %s40, %s43
    %p49 = scmp.eq.s32.totalorder %s9, 0
    %p50 = por %p48, %p49
    %p51 = scmp.ne.s32.totalorder %s40, %s43
    %p52 = scmp.eq.s32.totalorder %s14, 1
    %p53 = por %p51, %p52
    %p54 = scmp.ne.s32.totalorder %s43, %s44
    %p55 = scmp.eq.s32.totalorder %s14, 0
    %p56 = por %p54, %p55
    %p57 = scmp.ne.s32.totalorder %s43, %s44
    %p58 = scmp.eq.s32.totalorder %s15, 1
    %p59 = por %p57, %p58
    %p61 = scmp.ne.s32.totalorder %s44, %s60
    %p62 = scmp.eq.s32.totalorder %s15, 0
    %p63 = por %p61, %p62
    %s64 = ssub.s32 %s18, %s27
    %s65 = ssub.s32 %s17, %s31
    %s66 = sor.u32 %s64, %s65
    %p67 = scmp.eq.s32.totalorder %s66, 0
    %s69 = sadd.s32 %s68, 1
    %s70 = scalar_select %p67, %s68, %s69
    %p73 = pneg %p67
    %p74 = scmp.eq.s32.totalorder %s9, 1
    %p75 = por %p73, %p74
    %p76 = scmp.ne.s32.totalorder %s68, %s71
    %p77 = scmp.eq.s32.totalorder %s9, 0
    %p78 = por %p76, %p77
    %p79 = scmp.ne.s32.totalorder %s68, %s71
    %p80 = scmp.eq.s32.totalorder %s14, 1
    %p81 = por %p79, %p80
    %p82 = scmp.ne.s32.totalorder %s71, %s72
    %p83 = scmp.eq.s32.totalorder %s14, 0
    %p84 = por %p82, %p83
    %p85 = scmp.ne.s32.totalorder %s71, %s72
    %p86 = scmp.eq.s32.totalorder %s15, 1
    %p87 = por %p85, %p86
    %p89 = scmp.ne.s32.totalorder %s72, %s88
    %p90 = scmp.eq.s32.totalorder %s15, 0
    %p91 = por %p89, %p90
    %s92 = ssub.s32 %s17, %s31
    %p93 = scmp.eq.s32.totalorder %s92, 0
    %s95 = sadd.s32 %s94, 1
    %s96 = scalar_select %p93, %s94, %s95
    %p99 = pneg %p93
    %p100 = scmp.eq.s32.totalorder %s9, 1
    %p101 = por %p99, %p100
    %p102 = scmp.ne.s32.totalorder %s94, %s97
    %p103 = scmp.eq.s32.totalorder %s9, 0
    %p104 = por %p102, %p103
    %p105 = scmp.ne.s32.totalorder %s94, %s97
    %p106 = scmp.eq.s32.totalorder %s14, 1
    %p107 = por %p105, %p106
    %p108 = scmp.ne.s32.totalorder %s97, %s98
    %p109 = scmp.eq.s32.totalorder %s14, 0
    %p110 = por %p108, %p109
    %p111 = scmp.ne.s32.totalorder %s97, %s98
    %p112 = scmp.eq.s32.totalorder %s15, 1
    %p113 = por %p111, %p112
    %p115 = scmp.ne.s32.totalorder %s98, %s114
    %p116 = scmp.eq.s32.totalorder %s15, 0
    %p117 = por %p115, %p116
    %s118 = ssub.s32 %s16, %s35
    %s119 = ssub.s32 %s17, %s31
    %s120 = sor.u32 %s118, %s119
    %p121 = scmp.eq.s32.totalorder %s120, 0
    %s123 = sadd.s32 %s122, 1
    %s124 = scalar_select %p121, %s122, %s123
    %p127 = pneg %p121
    %p128 = scmp.eq.s32.totalorder %s9, 1
    %p129 = por %p127, %p128
    %p130 = scmp.ne.s32.totalorder %s122, %s125
    %p131 = scmp.eq.s32.totalorder %s9, 0
    %p132 = por %p130, %p131
    %p133 = scmp.ne.s32.totalorder %s122, %s125
    %p134 = scmp.eq.s32.totalorder %s14, 1
    %p135 = por %p133, %p134
    %p136 = scmp.ne.s32.totalorder %s125, %s126
    %p137 = scmp.eq.s32.totalorder %s14, 0
    %p138 = por %p136, %p137
    %p139 = scmp.ne.s32.totalorder %s125, %s126
    %p140 = scmp.eq.s32.totalorder %s15, 1
    %p141 = por %p139, %p140
    %p143 = scmp.ne.s32.totalorder %s126, %s142
    %p144 = scmp.eq.s32.totalorder %s15, 0
    %p145 = por %p143, %p144
    %p146 = scmp.le.s32.totalorder 1, %s9
    %p147 = scmp.lt.s32.totalorder %s9, 3
    %p148 = pnand %p146, %p147
    %p149 = pneg %p148
    // Predicated region
    $region9: #{bottleneck_forward.3} parent=5 // pred_check
      _
    $region10: #{bottleneck_forward.3} parent=5 // pred_check_branch
      %151 = sbr.rel (%p148) target = $region12
    $region11: #{bottleneck_forward.3} parent=5 // pred_region
      %s152 = ssub.s32 %s9, 1
      // Predicated region
      $region13: #{bottleneck_forward.3} parent=11 // pred_check
        %p153 = pneg %p84
      $region14: #{bottleneck_forward.3} parent=11 // pred_check_branch
        %155 = sbr.rel (%p153) target = $region16
      $region15: #{bottleneck_forward.3} parent=11 // pred_region
        %s156 = smul.u32 16, %s21
        %p157 = scmp.lt.s32.totalorder %s156, 15
        %s158 = scalar_select %p157, %s156, 15
        %p159 = scmp.lt.s32.totalorder %s20, 0
        %s160 = scalar_select %p159, %s20, 0
        %s161 = sadd.s32 %s160, %s158
        %s162 = smul.addr %s161, 4
        %s163 = scalar_lea.vmem %s1, %s162
        %s164 = smul.u32 16, %s21
      $region16: #{bottleneck_forward.3} parent=11 // pred_fallthru
        _
      // Predicated region
      $region17: #{bottleneck_forward.3} parent=11 // pred_check
        %p165 = pneg %p110
      $region18: #{bottleneck_forward.3} parent=11 // pred_check_branch
        %167 = sbr.rel (%p165) target = $region20
      $region19: #{bottleneck_forward.3} parent=11 // pred_region
        %p168 = scmp.lt.s32.totalorder %s20, 0
        %s169 = scalar_select %p168, %s20, 0
        %s170 = scalar_lea.vmem %s2, %s169
      $region20: #{bottleneck_forward.3} parent=11 // pred_fallthru
        _
    $region12: #{bottleneck_forward.3} parent=5 // pred_fallthru
      _
    %p171 = scmp.lt.s32.totalorder %s9, 2
    // Predicated region
    $region21: #{bottleneck_forward.3} parent=5 // pred_check
      %p172 = pneg %p171
    $region22: #{bottleneck_forward.3} parent=5 // pred_check_branch
      %174 = sbr.rel (%p172) target = $region24
    $region23: #{bottleneck_forward.3} parent=5 // pred_region
      // Predicated region
      $region25: #{bottleneck_forward.3} parent=23 // pred_check
        %p175 = pneg %p50
      $region26: #{bottleneck_forward.3} parent=23 // pred_check_branch
        %177 = sbr.rel (%p175) target = $region28
      $region27: #{bottleneck_forward.3} parent=23 // pred_region
        %s178 = smul.u32 32, %s16
        %p179 = scmp.lt.s32.totalorder %s178, 63
        %s180 = scalar_select %p179, %s178, 63
        %p181 = scmp.lt.s32.totalorder %s18, 0
        %s182 = scalar_select %p181, %s18, 0
        %s183 = sadd.s32 %s182, %s180
        %s184 = smul.addr %s183, 4
        %s185 = scalar_lea.vmem %s0, %s184
        %s186 = smul.u32 32, %s16
      $region28: #{bottleneck_forward.3} parent=23 // pred_fallthru
        _
    $region24: #{bottleneck_forward.3} parent=5 // pred_fallthru
      _
    %p187 = scmp.le.s32.totalorder 1, %s9
    %p188 = scmp.lt.s32.totalorder %s9, 3
    %p189 = pnand %p187, %p188
    %p190 = pneg %p189
    // Predicated region
    $region29: #{bottleneck_forward.3} parent=5 // pred_check
      _
    $region30: #{bottleneck_forward.3} parent=5 // pred_check_branch
      %192 = sbr.rel (%p189) target = $region32
    $region31: #{bottleneck_forward.3} parent=5 // pred_region
      %s193 = ssub.s32 %s9, 1
      %s194 = smul.u32 32, %s19
      %p195 = scmp.lt.s32.totalorder %s194, 63
      %s196 = scalar_select %p195, %s194, 63
      %p197 = scmp.lt.s32.totalorder %s21, 0
      %s198 = scalar_select %p197, %s21, 0
      %s199 = sadd.s32 %s198, %s196
      %s200 = smul.addr %s199, 4
      %s201 = scalar_lea.vmem %s0, %s200
      %p202 = pneg %p56
      %p203 = pneg %p53
      %s204 = smul.u32 16, %s21
      %p205 = scmp.lt.s32.totalorder %s204, 15
      %s206 = scalar_select %p205, %s204, 15
      %p207 = scmp.lt.s32.totalorder %s20, 0
      %s208 = scalar_select %p207, %s20, 0
      %s209 = sadd.s32 %s208, %s206
      %s210 = smul.addr %s209, 4
      %s211 = scalar_lea.vmem %s1, %s210
      %p212 = pneg %p84
      %p213 = pneg %p81
      %p214 = scmp.lt.s32.totalorder %s20, 0
      %s215 = scalar_select %p214, %s20, 0
      %s216 = scalar_lea.vmem %s2, %s215
      %p217 = pneg %p110
      %p218 = pneg %p107
      %p219 = pneg %p138
      %p220 = pneg %p135
      %s221 = smul.u32 32, %s19
      %p222 = scmp.lt.s32.totalorder %s221, 63
      %s223 = scalar_select %p222, %s221, 63
      %p224 = scmp.lt.s32.totalorder %s20, 0
      %s225 = scalar_select %p224, %s20, 0
      %s226 = sadd.s32 %s225, %s223
      %s227 = smul.addr %s226, 4
      %s228 = scalar_lea.vmem %s3, %s227
      %s229 = smul.u32 32, %s19
      %p230 = scmp.lt.s32.totalorder %s229, 63
      %s231 = scalar_select %p230, %s229, 63
      %p232 = scmp.lt.s32.totalorder %s21, 0
      %s233 = scalar_select %p232, %s21, 0
      %s234 = sadd.s32 %s233, %s231
      %s235 = smul.addr %s234, 4
      %s236 = scalar_lea.vmem %s0, %s235
      %s237 = smul.u32 32, %s19
      %s238 = smul.u32 16, %s21
      %p239 = scmp.lt.s32.totalorder %s238, 15
      %s240 = scalar_select %p239, %s238, 15
      %p241 = scmp.lt.s32.totalorder %s20, 0
      %s242 = scalar_select %p241, %s20, 0
      %s243 = sadd.s32 %s242, %s240
      %s244 = smul.addr %s243, 4
      %s245 = scalar_lea.vmem %s1, %s244
      %s246 = smul.u32 16, %s21
      %p247 = scmp.lt.s32.totalorder %s20, 0
      %s248 = scalar_select %p247, %s20, 0
      %s249 = scalar_lea.vmem %s2, %s248
      %s250 = smul.u32 32, %s19
      %p251 = scmp.lt.s32.totalorder %s250, 63
      %s252 = scalar_select %p251, %s250, 63
      %p253 = scmp.lt.s32.totalorder %s20, 0
      %s254 = scalar_select %p253, %s20, 0
      %s255 = sadd.s32 %s254, %s252
      %s256 = smul.addr %s255, 4
      %s257 = scalar_lea.vmem %s3, %s256
      %s258 = smul.u32 32, %s19
      %p259 = scmp.eq.s32.totalorder %s21, 0
      // Predicated region
      $region33: #{bottleneck_forward.3} parent=31 // pred_check
        %p260 = pneg %p259
      $region34: #{bottleneck_forward.3} parent=31 // pred_check_branch
        %262 = sbr.rel (%p260) target = $region36
      $region35: #{bottleneck_forward.3} parent=31 // pred_region
        %263 = vst [vmem:[#allocation2] sm:$0xff] 0.0
        %264 = vst [vmem:[#allocation2 + $0x8] sm:$0xff] 0.0
        %265 = vst [vmem:[#allocation2 + $0x10] sm:$0xff] 0.0
        %266 = vst [vmem:[#allocation2 + $0x18] sm:$0xff] 0.0
        %267 = vst [vmem:[#allocation2 + $0x20] sm:$0xff] 0.0
        %268 = vst [vmem:[#allocation2 + $0x28] sm:$0xff] 0.0
        %269 = vst [vmem:[#allocation2 + $0x30] sm:$0xff] 0.0
        %270 = vst [vmem:[#allocation2 + $0x38] sm:$0xff] 0.0
        %271 = vst [vmem:[#allocation2 + $0x40] sm:$0xff] 0.0
        %272 = vst [vmem:[#allocation2 + $0x48] sm:$0xff] 0.0
        %273 = vst [vmem:[#allocation2 + $0x50] sm:$0xff] 0.0
        %274 = vst [vmem:[#allocation2 + $0x58] sm:$0xff] 0.0
        %275 = vst [vmem:[#allocation2 + $0x60] sm:$0xff] 0.0
        %276 = vst [vmem:[#allocation2 + $0x68] sm:$0xff] 0.0
        %277 = vst [vmem:[#allocation2 + $0x70] sm:$0xff] 0.0
        %278 = vst [vmem:[#allocation2 + $0x78] sm:$0xff] 0.0
        %279 = vst [vmem:[#allocation2 + $0x80] sm:$0xff] 0.0
        %280 = vst [vmem:[#allocation2 + $0x88] sm:$0xff] 0.0
        %281 = vst [vmem:[#allocation2 + $0x90] sm:$0xff] 0.0
        %282 = vst [vmem:[#allocation2 + $0x98] sm:$0xff] 0.0
        %283 = vst [vmem:[#allocation2 + $0xa0] sm:$0xff] 0.0
        %284 = vst [vmem:[#allocation2 + $0xa8] sm:$0xff] 0.0
        %285 = vst [vmem:[#allocation2 + $0xb0] sm:$0xff] 0.0
        %286 = vst [vmem:[#allocation2 + $0xb8] sm:$0xff] 0.0
        %287 = vst [vmem:[#allocation2 + $0xc0] sm:$0xff] 0.0
        %288 = vst [vmem:[#allocation2 + $0xc8] sm:$0xff] 0.0
        %289 = vst [vmem:[#allocation2 + $0xd0] sm:$0xff] 0.0
        %290 = vst [vmem:[#allocation2 + $0xd8] sm:$0xff] 0.0
        %291 = vst [vmem:[#allocation2 + $0xe0] sm:$0xff] 0.0
        %292 = vst [vmem:[#allocation2 + $0xe8] sm:$0xff] 0.0
        %293 = vst [vmem:[#allocation2 + $0xf0] sm:$0xff] 0.0
        %294 = vst [vmem:[#allocation2 + $0xf8] sm:$0xff] 0.0
      $region36: #{bottleneck_forward.3} parent=31 // pred_fallthru
        _
      %v295 = vld [vmem:[#allocation2] sm:$0xff]
      %v296 = vld [vmem:[#allocation2 + $0x8] sm:$0xff]
      %v297 = vld [vmem:[#allocation2 + $0x10] sm:$0xff]
      %v298 = vld [vmem:[#allocation2 + $0x18] sm:$0xff]
      %v299 = vld [vmem:[#allocation2 + $0x20] sm:$0xff]
      %v300 = vld [vmem:[#allocation2 + $0x28] sm:$0xff]
      %v301 = vld [vmem:[#allocation2 + $0x30] sm:$0xff]
      %v302 = vld [vmem:[#allocation2 + $0x38] sm:$0xff]
      %v303 = vld [vmem:[#allocation2 + $0x40] sm:$0xff]
      %v304 = vld [vmem:[#allocation2 + $0x48] sm:$0xff]
      %v305 = vld [vmem:[#allocation2 + $0x50] sm:$0xff]
      %v306 = vld [vmem:[#allocation2 + $0x58] sm:$0xff]
      %v307 = vld [vmem:[#allocation2 + $0x60] sm:$0xff]
      %v308 = vld [vmem:[#allocation2 + $0x68] sm:$0xff]
      %v309 = vld [vmem:[#allocation2 + $0x70] sm:$0xff]
      %v310 = vld [vmem:[#allocation2 + $0x78] sm:$0xff]
      %v311 = vld [vmem:[#allocation2 + $0x80] sm:$0xff]
      %v312 = vld [vmem:[#allocation2 + $0x88] sm:$0xff]
      %v313 = vld [vmem:[#allocation2 + $0x90] sm:$0xff]
      %v314 = vld [vmem:[#allocation2 + $0x98] sm:$0xff]
      %v315 = vld [vmem:[#allocation2 + $0xa0] sm:$0xff]
      %v316 = vld [vmem:[#allocation2 + $0xa8] sm:$0xff]
      %v317 = vld [vmem:[#allocation2 + $0xb0] sm:$0xff]
      %v318 = vld [vmem:[#allocation2 + $0xb8] sm:$0xff]
      %v319 = vld [vmem:[#allocation2 + $0xc0] sm:$0xff]
      %v320 = vld [vmem:[#allocation2 + $0xc8] sm:$0xff]
      %v321 = vld [vmem:[#allocation2 + $0xd0] sm:$0xff]
      %v322 = vld [vmem:[#allocation2 + $0xd8] sm:$0xff]
      %v323 = vld [vmem:[#allocation2 + $0xe0] sm:$0xff]
      %v324 = vld [vmem:[#allocation2 + $0xe8] sm:$0xff]
      %v325 = vld [vmem:[#allocation2 + $0xf0] sm:$0xff]
      %v326 = vld [vmem:[#allocation2 + $0xf8] sm:$0xff]
      %v327 = vld [vmem:[%s236] sm:$0xf]
      %v328 = vld [vmem:[%s236 + $0x4] sm:$0xf]
      %v329 = vld [vmem:[%s236 + $0x8] sm:$0xf]
      %v330 = vld [vmem:[%s236 + $0xc] sm:$0xf]
      %v331 = vld [vmem:[%s236 + $0x10] sm:$0xf]
      %v332 = vld [vmem:[%s236 + $0x14] sm:$0xf]
      %v333 = vld [vmem:[%s236 + $0x18] sm:$0xf]
      %v334 = vld [vmem:[%s236 + $0x1c] sm:$0xf]
      %v335 = vld [vmem:[%s236 + $0x20] sm:$0xf]
      %v336 = vld [vmem:[%s236 + $0x24] sm:$0xf]
      %v337 = vld [vmem:[%s236 + $0x28] sm:$0xf]
      %v338 = vld [vmem:[%s236 + $0x2c] sm:$0xf]
      %v339 = vld [vmem:[%s236 + $0x30] sm:$0xf]
      %v340 = vld [vmem:[%s236 + $0x34] sm:$0xf]
      %v341 = vld [vmem:[%s236 + $0x38] sm:$0xf]
      %v342 = vld [vmem:[%s236 + $0x3c] sm:$0xf]
      %v343 = vld [vmem:[%s236 + $0x40] sm:$0xf]
      %v344 = vld [vmem:[%s236 + $0x44] sm:$0xf]
      %v345 = vld [vmem:[%s236 + $0x48] sm:$0xf]
      %v346 = vld [vmem:[%s236 + $0x4c] sm:$0xf]
      %v347 = vld [vmem:[%s236 + $0x50] sm:$0xf]
      %v348 = vld [vmem:[%s236 + $0x54] sm:$0xf]
      %v349 = vld [vmem:[%s236 + $0x58] sm:$0xf]
      %v350 = vld [vmem:[%s236 + $0x5c] sm:$0xf]
      %v351 = vld [vmem:[%s236 + $0x60] sm:$0xf]
      %v352 = vld [vmem:[%s236 + $0x64] sm:$0xf]
      %v353 = vld [vmem:[%s236 + $0x68] sm:$0xf]
      %v354 = vld [vmem:[%s236 + $0x6c] sm:$0xf]
      %v355 = vld [vmem:[%s236 + $0x70] sm:$0xf]
      %v356 = vld [vmem:[%s236 + $0x74] sm:$0xf]
      %v357 = vld [vmem:[%s236 + $0x78] sm:$0xf]
      %v358 = vld [vmem:[%s236 + $0x7c] sm:$0xf]
      %v359 = vld [vmem:[%s245] sm:$0xf]
      %v360 = vld [vmem:[%s245 + $0x4] sm:$0xf]
      %v361 = vld [vmem:[%s245 + $0x8] sm:$0xf]
      %v362 = vld [vmem:[%s245 + $0xc] sm:$0xf]
      %v363 = vld [vmem:[%s245 + $0x10] sm:$0xf]
      %v364 = vld [vmem:[%s245 + $0x14] sm:$0xf]
      %v365 = vld [vmem:[%s245 + $0x18] sm:$0xf]
      %v366 = vld [vmem:[%s245 + $0x1c] sm:$0xf]
      %v367 = vld [vmem:[%s245 + $0x20] sm:$0xf]
      %v368 = vld [vmem:[%s245 + $0x24] sm:$0xf]
      %v369 = vld [vmem:[%s245 + $0x28] sm:$0xf]
      %v370 = vld [vmem:[%s245 + $0x2c] sm:$0xf]
      %v371 = vld [vmem:[%s245 + $0x30] sm:$0xf]
      %v372 = vld [vmem:[%s245 + $0x34] sm:$0xf]
      %v373 = vld [vmem:[%s245 + $0x38] sm:$0xf]
      %v374 = vld [vmem:[%s245 + $0x3c] sm:$0xf]
      %v407 = vunpack.c.l.b16 %v327
      %v408 = vunpack.c.l.b16 %v328
      %v409 = vunpack.c.l.b16 %v329
      %v410 = vunpack.c.l.b16 %v330
      %v411 = vunpack.c.l.b16 %v331
      %v412 = vunpack.c.l.b16 %v332
      %v413 = vunpack.c.l.b16 %v333
      %v414 = vunpack.c.l.b16 %v334
      %v415 = vunpack.c.l.b16 %v335
      %v416 = vunpack.c.l.b16 %v336
      %v417 = vunpack.c.l.b16 %v337
      %v418 = vunpack.c.l.b16 %v338
      %v419 = vunpack.c.l.b16 %v339
      %v420 = vunpack.c.l.b16 %v340
      %v421 = vunpack.c.l.b16 %v341
      %v422 = vunpack.c.l.b16 %v342
      %v423 = vunpack.c.l.b16 %v343
      %v424 = vunpack.c.l.b16 %v344
      %v425 = vunpack.c.l.b16 %v345
      %v426 = vunpack.c.l.b16 %v346
      %v427 = vunpack.c.l.b16 %v347
      %v428 = vunpack.c.l.b16 %v348
      %v429 = vunpack.c.l.b16 %v349
      %v430 = vunpack.c.l.b16 %v350
      %v431 = vunpack.c.l.b16 %v351
      %v432 = vunpack.c.l.b16 %v352
      %v433 = vunpack.c.l.b16 %v353
      %v434 = vunpack.c.l.b16 %v354
      %v435 = vunpack.c.l.b16 %v355
      %v436 = vunpack.c.l.b16 %v356
      %v437 = vunpack.c.l.b16 %v357
      %v438 = vunpack.c.l.b16 %v358
      %v439 = vpack.c.b16 %v408, %v407
      %v440 = vpack.c.b16 %v410, %v409
      %v441 = vpack.c.b16 %v412, %v411
      %v442 = vpack.c.b16 %v414, %v413
      %v443 = vpack.c.b16 %v416, %v415
      %v444 = vpack.c.b16 %v418, %v417
      %v445 = vpack.c.b16 %v420, %v419
      %v446 = vpack.c.b16 %v422, %v421
      %v447 = vpack.c.b16 %v424, %v423
      %v448 = vpack.c.b16 %v426, %v425
      %v449 = vpack.c.b16 %v428, %v427
      %v450 = vpack.c.b16 %v430, %v429
      %v451 = vpack.c.b16 %v432, %v431
      %v452 = vpack.c.b16 %v434, %v433
      %v453 = vpack.c.b16 %v436, %v435
      %v454 = vpack.c.b16 %v438, %v437
      %v487 = vunpack.c.l.b16 %v359
      %v488 = vunpack.c.l.b16 %v360
      %v489 = vunpack.c.l.b16 %v361
      %v490 = vunpack.c.l.b16 %v362
      %v491 = vunpack.c.l.b16 %v363
      %v492 = vunpack.c.l.b16 %v364
      %v493 = vunpack.c.l.b16 %v365
      %v494 = vunpack.c.l.b16 %v366
      %v495 = vunpack.c.l.b16 %v367
      %v496 = vunpack.c.l.b16 %v368
      %v497 = vunpack.c.l.b16 %v369
      %v498 = vunpack.c.l.b16 %v370
      %v499 = vunpack.c.l.b16 %v371
      %v500 = vunpack.c.l.b16 %v372
      %v501 = vunpack.c.l.b16 %v373
      %v502 = vunpack.c.l.b16 %v374
      %v503 = vpack.c.b16 %v488, %v487
      %v504 = vpack.c.b16 %v490, %v489
      %v505 = vpack.c.b16 %v492, %v491
      %v506 = vpack.c.b16 %v494, %v493
      %v507 = vpack.c.b16 %v496, %v495
      %v508 = vpack.c.b16 %v498, %v497
      %v509 = vpack.c.b16 %v500, %v499
      %v510 = vpack.c.b16 %v502, %v501
      %519 = vmatpush.bf16.msra.mxu0 %v510
      %520 = vmatpush.bf16.msra.mxu0 %v509
      %521 = vmatpush.bf16.msra.mxu0 %v508
      %522 = vmatpush.bf16.msra.mxu0 %v507
      %523 = vmatpush.bf16.msra.mxu0 %v506
      %524 = vmatpush.bf16.msra.mxu0 %v505
      %525 = vmatpush.bf16.msra.mxu0 %v504
      %526 = vmatpush.bf16.msra.mxu0 %v503
      %527 = vmatmul.bf16.gmra.mxu0 %v439
      %v528 = vpop.f32.mrf.mxu0
      %v529 = vadd.f32 0.0, %v528
      %v530 = vpop.f32.mrf.mxu0
      %v531 = vadd.f32 0.0, %v530
      %532 = vmatmul.bf16.gmra.mxu0 %v440
      %v533 = vpop.f32.mrf.mxu0
      %v534 = vadd.f32 0.0, %v533
      %v535 = vpop.f32.mrf.mxu0
      %v536 = vadd.f32 0.0, %v535
      %537 = vmatmul.bf16.gmra.mxu0 %v441
      %v538 = vpop.f32.mrf.mxu0
      %v539 = vadd.f32 0.0, %v538
      %v540 = vpop.f32.mrf.mxu0
      %v541 = vadd.f32 0.0, %v540
      %542 = vmatmul.bf16.gmra.mxu0 %v442
      %v543 = vpop.f32.mrf.mxu0
      %v544 = vadd.f32 0.0, %v543
      %v545 = vpop.f32.mrf.mxu0
      %v546 = vadd.f32 0.0, %v545
      %547 = vmatmul.bf16.gmra.mxu0 %v443
      %v548 = vpop.f32.mrf.mxu0
      %v549 = vadd.f32 0.0, %v548
      %v550 = vpop.f32.mrf.mxu0
      %v551 = vadd.f32 0.0, %v550
      %552 = vmatmul.bf16.gmra.mxu0 %v444
      %v553 = vpop.f32.mrf.mxu0
      %v554 = vadd.f32 0.0, %v553
      %v555 = vpop.f32.mrf.mxu0
      %v556 = vadd.f32 0.0, %v555
      %557 = vmatmul.bf16.gmra.mxu0 %v445
      %v558 = vpop.f32.mrf.mxu0
      %v559 = vadd.f32 0.0, %v558
      %v560 = vpop.f32.mrf.mxu0
      %v561 = vadd.f32 0.0, %v560
      %562 = vmatmul.bf16.gmra.mxu0 %v446
      %v563 = vpop.f32.mrf.mxu0
      %v564 = vadd.f32 0.0, %v563
      %v565 = vpop.f32.mrf.mxu0
      %v566 = vadd.f32 0.0, %v565
      %567 = vmatmul.bf16.gmra.mxu0 %v447
      %v568 = vpop.f32.mrf.mxu0
      %v569 = vadd.f32 0.0, %v568
      %v570 = vpop.f32.mrf.mxu0
      %v571 = vadd.f32 0.0, %v570
      %572 = vmatmul.bf16.gmra.mxu0 %v448
      %v573 = vpop.f32.mrf.mxu0
      %v574 = vadd.f32 0.0, %v573
      %v575 = vpop.f32.mrf.mxu0
      %v576 = vadd.f32 0.0, %v575
      %577 = vmatmul.bf16.gmra.mxu0 %v449
      %v578 = vpop.f32.mrf.mxu0
      %v579 = vadd.f32 0.0, %v578
      %v580 = vpop.f32.mrf.mxu0
      %v581 = vadd.f32 0.0, %v580
      %582 = vmatmul.bf16.gmra.mxu0 %v450
      %v583 = vpop.f32.mrf.mxu0
      %v584 = vadd.f32 0.0, %v583
      %v585 = vpop.f32.mrf.mxu0
      %v586 = vadd.f32 0.0, %v585
      %587 = vmatmul.bf16.gmra.mxu0 %v451
      %v588 = vpop.f32.mrf.mxu0
      %v589 = vadd.f32 0.0, %v588
      %v590 = vpop.f32.mrf.mxu0
      %v591 = vadd.f32 0.0, %v590
      %592 = vmatmul.bf16.gmra.mxu0 %v452
      %v593 = vpop.f32.mrf.mxu0
      %v594 = vadd.f32 0.0, %v593
      %v595 = vpop.f32.mrf.mxu0
      %v596 = vadd.f32 0.0, %v595
      %597 = vmatmul.bf16.gmra.mxu0 %v453
      %v598 = vpop.f32.mrf.mxu0
      %v599 = vadd.f32 0.0, %v598
      %v600 = vpop.f32.mrf.mxu0
      %v601 = vadd.f32 0.0, %v600
      %602 = vmatmul.bf16.gmra.mxu0 %v454
      %v603 = vpop.f32.mrf.mxu0
      %v604 = vadd.f32 0.0, %v603
      %v605 = vpop.f32.mrf.mxu0
      %v606 = vadd.f32 0.0, %v605
      %607 = vdwg.mxu0
      %v608 = vadd.f32 %v295, %v529
      %v609 = vadd.f32 %v296, %v531
      %v610 = vadd.f32 %v297, %v534
      %v611 = vadd.f32 %v298, %v536
      %v612 = vadd.f32 %v299, %v539
      %v613 = vadd.f32 %v300, %v541
      %v614 = vadd.f32 %v301, %v544
      %v615 = vadd.f32 %v302, %v546
      %v616 = vadd.f32 %v303, %v549
      %v617 = vadd.f32 %v304, %v551
      %v618 = vadd.f32 %v305, %v554
      %v619 = vadd.f32 %v306, %v556
      %v620 = vadd.f32 %v307, %v559
      %v621 = vadd.f32 %v308, %v561
      %v622 = vadd.f32 %v309, %v564
      %v623 = vadd.f32 %v310, %v566
      %v624 = vadd.f32 %v311, %v569
      %v625 = vadd.f32 %v312, %v571
      %v626 = vadd.f32 %v313, %v574
      %v627 = vadd.f32 %v314, %v576
      %v628 = vadd.f32 %v315, %v579
      %v629 = vadd.f32 %v316, %v581
      %v630 = vadd.f32 %v317, %v584
      %v631 = vadd.f32 %v318, %v586
      %v632 = vadd.f32 %v319, %v589
      %v633 = vadd.f32 %v320, %v591
      %v634 = vadd.f32 %v321, %v594
      %v635 = vadd.f32 %v322, %v596
      %v636 = vadd.f32 %v323, %v599
      %v637 = vadd.f32 %v324, %v601
      %v638 = vadd.f32 %v325, %v604
      %v639 = vadd.f32 %v326, %v606
      %640 = vst [vmem:[#allocation2] sm:$0xff] %v608
      %641 = vst [vmem:[#allocation2 + $0x8] sm:$0xff] %v609
      %642 = vst [vmem:[#allocation2 + $0x10] sm:$0xff] %v610
      %643 = vst [vmem:[#allocation2 + $0x18] sm:$0xff] %v611
      %644 = vst [vmem:[#allocation2 + $0x20] sm:$0xff] %v612
      %645 = vst [vmem:[#allocation2 + $0x28] sm:$0xff] %v613
      %646 = vst [vmem:[#allocation2 + $0x30] sm:$0xff] %v614
      %647 = vst [vmem:[#allocation2 + $0x38] sm:$0xff] %v615
      %648 = vst [vmem:[#allocation2 + $0x40] sm:$0xff] %v616
      %649 = vst [vmem:[#allocation2 + $0x48] sm:$0xff] %v617
      %650 = vst [vmem:[#allocation2 + $0x50] sm:$0xff] %v618
      %651 = vst [vmem:[#allocation2 + $0x58] sm:$0xff] %v619
      %652 = vst [vmem:[#allocation2 + $0x60] sm:$0xff] %v620
      %653 = vst [vmem:[#allocation2 + $0x68] sm:$0xff] %v621
      %654 = vst [vmem:[#allocation2 + $0x70] sm:$0xff] %v622
      %655 = vst [vmem:[#allocation2 + $0x78] sm:$0xff] %v623
      %656 = vst [vmem:[#allocation2 + $0x80] sm:$0xff] %v624
      %657 = vst [vmem:[#allocation2 + $0x88] sm:$0xff] %v625
      %658 = vst [vmem:[#allocation2 + $0x90] sm:$0xff] %v626
      %659 = vst [vmem:[#allocation2 + $0x98] sm:$0xff] %v627
      %660 = vst [vmem:[#allocation2 + $0xa0] sm:$0xff] %v628
      %661 = vst [vmem:[#allocation2 + $0xa8] sm:$0xff] %v629
      %662 = vst [vmem:[#allocation2 + $0xb0] sm:$0xff] %v630
      %663 = vst [vmem:[#allocation2 + $0xb8] sm:$0xff] %v631
      %664 = vst [vmem:[#allocation2 + $0xc0] sm:$0xff] %v632
      %665 = vst [vmem:[#allocation2 + $0xc8] sm:$0xff] %v633
      %666 = vst [vmem:[#allocation2 + $0xd0] sm:$0xff] %v634
      %667 = vst [vmem:[#allocation2 + $0xd8] sm:$0xff] %v635
      %668 = vst [vmem:[#allocation2 + $0xe0] sm:$0xff] %v636
      %669 = vst [vmem:[#allocation2 + $0xe8] sm:$0xff] %v637
      %670 = vst [vmem:[#allocation2 + $0xf0] sm:$0xff] %v638
      %671 = vst [vmem:[#allocation2 + $0xf8] sm:$0xff] %v639
      // Predicated region
      $region37: #{bottleneck_forward.3} parent=31 // pred_check
        %p672 = pneg %p259
      $region38: #{bottleneck_forward.3} parent=31 // pred_check_branch
        %674 = sbr.rel (%p672) target = $region40
      $region39: #{bottleneck_forward.3} parent=31 // pred_region
        %v675 = vld [vmem:[#allocation2] sm:$0xff]
        %v676 = vld [vmem:[#allocation2 + $0x8] sm:$0xff]
        %v677 = vld [vmem:[#allocation2 + $0x10] sm:$0xff]
        %v678 = vld [vmem:[#allocation2 + $0x18] sm:$0xff]
        %v679 = vld [vmem:[#allocation2 + $0x20] sm:$0xff]
        %v680 = vld [vmem:[#allocation2 + $0x28] sm:$0xff]
        %v681 = vld [vmem:[#allocation2 + $0x30] sm:$0xff]
        %v682 = vld [vmem:[#allocation2 + $0x38] sm:$0xff]
        %v683 = vld [vmem:[#allocation2 + $0x40] sm:$0xff]
        %v684 = vld [vmem:[#allocation2 + $0x48] sm:$0xff]
        %v685 = vld [vmem:[#allocation2 + $0x50] sm:$0xff]
        %v686 = vld [vmem:[#allocation2 + $0x58] sm:$0xff]
        %v687 = vld [vmem:[#allocation2 + $0x60] sm:$0xff]
        %v688 = vld [vmem:[#allocation2 + $0x68] sm:$0xff]
        %v689 = vld [vmem:[#allocation2 + $0x70] sm:$0xff]
        %v690 = vld [vmem:[#allocation2 + $0x78] sm:$0xff]
        %v691 = vld [vmem:[#allocation2 + $0x80] sm:$0xff]
        %v692 = vld [vmem:[#allocation2 + $0x88] sm:$0xff]
        %v693 = vld [vmem:[#allocation2 + $0x90] sm:$0xff]
        %v694 = vld [vmem:[#allocation2 + $0x98] sm:$0xff]
        %v695 = vld [vmem:[#allocation2 + $0xa0] sm:$0xff]
        %v696 = vld [vmem:[#allocation2 + $0xa8] sm:$0xff]
        %v697 = vld [vmem:[#allocation2 + $0xb0] sm:$0xff]
        %v698 = vld [vmem:[#allocation2 + $0xb8] sm:$0xff]
        %v699 = vld [vmem:[#allocation2 + $0xc0] sm:$0xff]
        %v700 = vld [vmem:[#allocation2 + $0xc8] sm:$0xff]
        %v701 = vld [vmem:[#allocation2 + $0xd0] sm:$0xff]
        %v702 = vld [vmem:[#allocation2 + $0xd8] sm:$0xff]
        %v703 = vld [vmem:[#allocation2 + $0xe0] sm:$0xff]
        %v704 = vld [vmem:[#allocation2 + $0xe8] sm:$0xff]
        %v705 = vld [vmem:[#allocation2 + $0xf0] sm:$0xff]
        %v706 = vld [vmem:[#allocation2 + $0xf8] sm:$0xff]
        %v707 = vld [vmem:[%s249] sm:$0x1]
        %v709 = vperm.slane %v707, 0
        %v711 = vadd.f32 %v675, %v709
        %v712 = vadd.f32 %v676, %v709
        %v713 = vadd.f32 %v677, %v709
        %v714 = vadd.f32 %v678, %v709
        %v715 = vadd.f32 %v679, %v709
        %v716 = vadd.f32 %v680, %v709
        %v717 = vadd.f32 %v681, %v709
        %v718 = vadd.f32 %v682, %v709
        %v719 = vadd.f32 %v683, %v709
        %v720 = vadd.f32 %v684, %v709
        %v721 = vadd.f32 %v685, %v709
        %v722 = vadd.f32 %v686, %v709
        %v723 = vadd.f32 %v687, %v709
        %v724 = vadd.f32 %v688, %v709
        %v725 = vadd.f32 %v689, %v709
        %v726 = vadd.f32 %v690, %v709
        %v727 = vadd.f32 %v691, %v709
        %v728 = vadd.f32 %v692, %v709
        %v729 = vadd.f32 %v693, %v709
        %v730 = vadd.f32 %v694, %v709
        %v731 = vadd.f32 %v695, %v709
        %v732 = vadd.f32 %v696, %v709
        %v733 = vadd.f32 %v697, %v709
        %v734 = vadd.f32 %v698, %v709
        %v735 = vadd.f32 %v699, %v709
        %v736 = vadd.f32 %v700, %v709
        %v737 = vadd.f32 %v701, %v709
        %v738 = vadd.f32 %v702, %v709
        %v739 = vadd.f32 %v703, %v709
        %v740 = vadd.f32 %v704, %v709
        %v741 = vadd.f32 %v705, %v709
        %v742 = vadd.f32 %v706, %v709
        %v743 = vmax.f32 %v711, 0.0
        %v744 = vmax.f32 %v712, 0.0
        %v745 = vmax.f32 %v713, 0.0
        %v746 = vmax.f32 %v714, 0.0
        %v747 = vmax.f32 %v715, 0.0
        %v748 = vmax.f32 %v716, 0.0
        %v749 = vmax.f32 %v717, 0.0
        %v750 = vmax.f32 %v718, 0.0
        %v751 = vmax.f32 %v719, 0.0
        %v752 = vmax.f32 %v720, 0.0
        %v753 = vmax.f32 %v721, 0.0
        %v754 = vmax.f32 %v722, 0.0
        %v755 = vmax.f32 %v723, 0.0
        %v756 = vmax.f32 %v724, 0.0
        %v757 = vmax.f32 %v725, 0.0
        %v758 = vmax.f32 %v726, 0.0
        %v759 = vmax.f32 %v727, 0.0
        %v760 = vmax.f32 %v728, 0.0
        %v761 = vmax.f32 %v729, 0.0
        %v762 = vmax.f32 %v730, 0.0
        %v763 = vmax.f32 %v731, 0.0
        %v764 = vmax.f32 %v732, 0.0
        %v765 = vmax.f32 %v733, 0.0
        %v766 = vmax.f32 %v734, 0.0
        %v767 = vmax.f32 %v735, 0.0
        %v768 = vmax.f32 %v736, 0.0
        %v769 = vmax.f32 %v737, 0.0
        %v770 = vmax.f32 %v738, 0.0
        %v771 = vmax.f32 %v739, 0.0
        %v772 = vmax.f32 %v740, 0.0
        %v773 = vmax.f32 %v741, 0.0
        %v774 = vmax.f32 %v742, 0.0
        %v775 = vpack.c.bf16 %v743, %v743
        %v776 = vpack.c.bf16 %v744, %v744
        %v777 = vpack.c.bf16 %v745, %v745
        %v778 = vpack.c.bf16 %v746, %v746
        %v779 = vpack.c.bf16 %v747, %v747
        %v780 = vpack.c.bf16 %v748, %v748
        %v781 = vpack.c.bf16 %v749, %v749
        %v782 = vpack.c.bf16 %v750, %v750
        %v783 = vpack.c.bf16 %v751, %v751
        %v784 = vpack.c.bf16 %v752, %v752
        %v785 = vpack.c.bf16 %v753, %v753
        %v786 = vpack.c.bf16 %v754, %v754
        %v787 = vpack.c.bf16 %v755, %v755
        %v788 = vpack.c.bf16 %v756, %v756
        %v789 = vpack.c.bf16 %v757, %v757
        %v790 = vpack.c.bf16 %v758, %v758
        %v791 = vpack.c.bf16 %v759, %v759
        %v792 = vpack.c.bf16 %v760, %v760
        %v793 = vpack.c.bf16 %v761, %v761
        %v794 = vpack.c.bf16 %v762, %v762
        %v795 = vpack.c.bf16 %v763, %v763
        %v796 = vpack.c.bf16 %v764, %v764
        %v797 = vpack.c.bf16 %v765, %v765
        %v798 = vpack.c.bf16 %v766, %v766
        %v799 = vpack.c.bf16 %v767, %v767
        %v800 = vpack.c.bf16 %v768, %v768
        %v801 = vpack.c.bf16 %v769, %v769
        %v802 = vpack.c.bf16 %v770, %v770
        %v803 = vpack.c.bf16 %v771, %v771
        %v804 = vpack.c.bf16 %v772, %v772
        %v805 = vpack.c.bf16 %v773, %v773
        %v806 = vpack.c.bf16 %v774, %v774
        %807 = vst [vmem:[%s257] sm:$0xf] %v775
        %808 = vst [vmem:[%s257 + $0x4] sm:$0xf] %v776
        %809 = vst [vmem:[%s257 + $0x8] sm:$0xf] %v777
        %810 = vst [vmem:[%s257 + $0xc] sm:$0xf] %v778
        %811 = vst [vmem:[%s257 + $0x10] sm:$0xf] %v779
        %812 = vst [vmem:[%s257 + $0x14] sm:$0xf] %v780
        %813 = vst [vmem:[%s257 + $0x18] sm:$0xf] %v781
        %814 = vst [vmem:[%s257 + $0x1c] sm:$0xf] %v782
        %815 = vst [vmem:[%s257 + $0x20] sm:$0xf] %v783
        %816 = vst [vmem:[%s257 + $0x24] sm:$0xf] %v784
        %817 = vst [vmem:[%s257 + $0x28] sm:$0xf] %v785
        %818 = vst [vmem:[%s257 + $0x2c] sm:$0xf] %v786
        %819 = vst [vmem:[%s257 + $0x30] sm:$0xf] %v787
        %820 = vst [vmem:[%s257 + $0x34] sm:$0xf] %v788
        %821 = vst [vmem:[%s257 + $0x38] sm:$0xf] %v789
        %822 = vst [vmem:[%s257 + $0x3c] sm:$0xf] %v790
        %823 = vst [vmem:[%s257 + $0x40] sm:$0xf] %v791
        %824 = vst [vmem:[%s257 + $0x44] sm:$0xf] %v792
        %825 = vst [vmem:[%s257 + $0x48] sm:$0xf] %v793
        %826 = vst [vmem:[%s257 + $0x4c] sm:$0xf] %v794
        %827 = vst [vmem:[%s257 + $0x50] sm:$0xf] %v795
        %828 = vst [vmem:[%s257 + $0x54] sm:$0xf] %v796
        %829 = vst [vmem:[%s257 + $0x58] sm:$0xf] %v797
        %830 = vst [vmem:[%s257 + $0x5c] sm:$0xf] %v798
        %831 = vst [vmem:[%s257 + $0x60] sm:$0xf] %v799
        %832 = vst [vmem:[%s257 + $0x64] sm:$0xf] %v800
        %833 = vst [vmem:[%s257 + $0x68] sm:$0xf] %v801
        %834 = vst [vmem:[%s257 + $0x6c] sm:$0xf] %v802
        %835 = vst [vmem:[%s257 + $0x70] sm:$0xf] %v803
        %836 = vst [vmem:[%s257 + $0x74] sm:$0xf] %v804
        %837 = vst [vmem:[%s257 + $0x78] sm:$0xf] %v805
        %838 = vst [vmem:[%s257 + $0x7c] sm:$0xf] %v806
      $region40: #{bottleneck_forward.3} parent=31 // pred_fallthru
        _
      %s839 = smul.u32 32, %s19
      %p840 = scmp.lt.s32.totalorder %s839, 63
      %s841 = scalar_select %p840, %s839, 63
      %p842 = scmp.lt.s32.totalorder %s20, 0
      %s843 = scalar_select %p842, %s20, 0
      %s844 = sadd.s32 %s843, %s841
      %s845 = smul.addr %s844, 4
      %s846 = scalar_lea.vmem %s3, %s845
      // Predicated region
      $region41: #{bottleneck_forward.3} parent=31 // pred_check
        %p847 = pneg %p135
      $region42: #{bottleneck_forward.3} parent=31 // pred_check_branch
        %849 = sbr.rel (%p847) target = $region44
      $region43: #{bottleneck_forward.3} parent=31 // pred_region
        %s850 = smul.u32 32, %s19
      $region44: #{bottleneck_forward.3} parent=31 // pred_fallthru
        _
    $region32: #{bottleneck_forward.3} parent=5 // pred_fallthru
      _
    %p851 = scmp.le.s32.totalorder 2, %s9
    // Predicated region
    $region45: #{bottleneck_forward.3} parent=5 // pred_check
      %p852 = pneg %p851
    $region46: #{bottleneck_forward.3} parent=5 // pred_check_branch
      %854 = sbr.rel (%p852) target = $region48
    $region47: #{bottleneck_forward.3} parent=5 // pred_region
      %s855 = ssub.s32 %s9, 2
      // Predicated region
      $region49: #{bottleneck_forward.3} parent=47 // pred_check
        %p856 = pneg %p141
      $region50: #{bottleneck_forward.3} parent=47 // pred_check_branch
        %858 = sbr.rel (%p856) target = $region52
      $region51: #{bottleneck_forward.3} parent=47 // pred_region
        %s859 = smul.u32 32, %s22
        %p860 = scmp.lt.s32.totalorder %s859, 63
        %s861 = scalar_select %p860, %s859, 63
        %p862 = scmp.lt.s32.totalorder %s23, 0
        %s863 = scalar_select %p862, %s23, 0
        %s864 = sadd.s32 %s863, %s861
        %s865 = smul.addr %s864, 4
        %s866 = scalar_lea.vmem %s3, %s865
      $region52: #{bottleneck_forward.3} parent=47 // pred_fallthru
        _
    $region48: #{bottleneck_forward.3} parent=5 // pred_fallthru
      _
  $region6: #{bottleneck_forward.3} parent=0 // loop_footer
    %s13 = sadd.s32 1, %s9
  $region7: #{bottleneck_forward.3} parent=0 // loop_footer_branch
    %8 = sbr.rel target = $region3
  $region8: #{bottleneck_forward.3} parent=0 // loop_exit
    _

// kernel: bottleneck_forward.5
$region0: #{bottleneck_forward.5}
  #allocation0 [shape = 'u32[]', space=smem, size = 0x4, offset = 0x4, fixed_abs, tag = 'smem constant byte address 0x4 - core index']
  #allocation1 [shape = 'u32[72,128]{1,0:T(1,128)}', space=vmem, size = 0x9000, scoped, tag = 'internal scratch']
  %s0 = inlined_call_operand.vmem [shape: bf16[512,128], index: 0, kind: input, shape index: {}]
  %s1 = inlined_call_operand.vmem [shape: bf16[128,128], index: 1, kind: input, shape index: {}]
  %s2 = inlined_call_operand.vmem [shape: bf16[512,128], index: 2, kind: input, shape index: {}]
  %s3 = inlined_call_operand.vmem [shape: bf16[128,128], index: 3, kind: input, shape index: {}]
  %s4 = inlined_call_operand.vmem [shape: f32[1,128], index: 4, kind: input, shape index: {}]
  %s5 = inlined_call_operand.vmem [shape: f32[512,128], index: 5, kind: output, shape index: {}]
  %s6 = sld [smem:[#allocation0]]
  $region53: #{bottleneck_forward.5} parent=0
    _
  %s8 = ssub.s32 1, %s6
  %s9 = scalar_select 0, %s8, %s6
  loop: start=0, step=1, limit=4
  $region2: #{bottleneck_forward.5} parent=0 // loop_pre_header
    _
  $region3: #{bottleneck_forward.5} parent=0 // loop_header
    %s11 = sphi 0, %s15
    %p12 = scmp.ge.s32.totalorder %s11, 4
    %s18 = sphi 0, %s30
    %s19 = sphi 0, %s26
    %s20 = sphi 0, %s18
    %s21 = sphi 0, %s19
    %s22 = sphi 0, %s20
    %s23 = sphi 0, %s21
    %s33 = sphi 0, %s35
    %s36 = sphi 0, %s33
    %s37 = sphi 0, %s36
    %s53 = sphi 0, %s37
    %s59 = sphi 0, %s61
    %s62 = sphi 0, %s59
    %s63 = sphi 0, %s62
    %s79 = sphi 0, %s63
    %s85 = sphi 0, %s87
    %s88 = sphi 0, %s85
    %s89 = sphi 0, %s88
    %s105 = sphi 0, %s89
    %s111 = sphi 0, %s113
    %s114 = sphi 0, %s111
    %s115 = sphi 0, %s114
    %s131 = sphi 0, %s115
    %s137 = sphi 0, %s139
    %s140 = sphi 0, %s137
    %s141 = sphi 0, %s140
    %s157 = sphi 0, %s141
    %s165 = sphi 0, %s167
    %s168 = sphi 0, %s165
    %s169 = sphi 0, %s168
    %s185 = sphi 0, %s169
  $region4: #{bottleneck_forward.5} parent=0 // loop_header_branch
    %14 = sbr.rel (%p12) target = $region8
  $region5: #{bottleneck_forward.5} parent=0 // loop_body
    %s16 = ssub.s32 %s11, 1
    %s17 = ssub.s32 %s11, 2
    %s24 = sadd.s32 1, %s19
    %p25 = scmp.ge.s32.totalorder %s24, 1
    %s26 = scalar_select %p25, 0, %s24
    %s27 = sadd.s32 1, %s18
    %s28 = scalar_select %p25, %s27, %s18
    %p29 = scmp.ge.s32.totalorder %s28, 2
    %s30 = scalar_select %p29, 0, %s28
    %s31 = ssub.s32 %s18, %s30
    %p32 = scmp.eq.s32.totalorder %s31, 0
    %s34 = sadd.s32 %s33, 1
    %s35 = scalar_select %p32, %s33, %s34
    %p38 = pneg %p32
    %p39 = scmp.eq.s32.totalorder %s11, 1
    %p40 = por %p38, %p39
    %p41 = scmp.ne.s32.totalorder %s33, %s36
    %p42 = scmp.eq.s32.totalorder %s11, 0
    %p43 = por %p41, %p42
    %p44 = scmp.ne.s32.totalorder %s33, %s36
    %p45 = scmp.eq.s32.totalorder %s16, 1
    %p46 = por %p44, %p45
    %p47 = scmp.ne.s32.totalorder %s36, %s37
    %p48 = scmp.eq.s32.totalorder %s16, 0
    %p49 = por %p47, %p48
    %p50 = scmp.ne.s32.totalorder %s36, %s37
    %p51 = scmp.eq.s32.totalorder %s17, 1
    %p52 = por %p50, %p51
    %p54 = scmp.ne.s32.totalorder %s37, %s53
    %p55 = scmp.eq.s32.totalorder %s17, 0
    %p56 = por %p54, %p55
    %s57 = ssub.s32 %s19, %s26
    %p58 = scmp.eq.s32.totalorder %s57, 0
    %s60 = sadd.s32 %s59, 1
    %s61 = scalar_select %p58, %s59, %s60
    %p64 = pneg %p58
    %p65 = scmp.eq.s32.totalorder %s11, 1
    %p66 = por %p64, %p65
    %p67 = scmp.ne.s32.totalorder %s59, %s62
    %p68 = scmp.eq.s32.totalorder %s11, 0
    %p69 = por %p67, %p68
    %p70 = scmp.ne.s32.totalorder %s59, %s62
    %p71 = scmp.eq.s32.totalorder %s16, 1
    %p72 = por %p70, %p71
    %p73 = scmp.ne.s32.totalorder %s62, %s63
    %p74 = scmp.eq.s32.totalorder %s16, 0
    %p75 = por %p73, %p74
    %p76 = scmp.ne.s32.totalorder %s62, %s63
    %p77 = scmp.eq.s32.totalorder %s17, 1
    %p78 = por %p76, %p77
    %p80 = scmp.ne.s32.totalorder %s63, %s79
    %p81 = scmp.eq.s32.totalorder %s17, 0
    %p82 = por %p80, %p81
    %s83 = ssub.s32 %s18, %s30
    %p84 = scmp.eq.s32.totalorder %s83, 0
    %s86 = sadd.s32 %s85, 1
    %s87 = scalar_select %p84, %s85, %s86
    %p90 = pneg %p84
    %p91 = scmp.eq.s32.totalorder %s11, 1
    %p92 = por %p90, %p91
    %p93 = scmp.ne.s32.totalorder %s85, %s88
    %p94 = scmp.eq.s32.totalorder %s11, 0
    %p95 = por %p93, %p94
    %p96 = scmp.ne.s32.totalorder %s85, %s88
    %p97 = scmp.eq.s32.totalorder %s16, 1
    %p98 = por %p96, %p97
    %p99 = scmp.ne.s32.totalorder %s88, %s89
    %p100 = scmp.eq.s32.totalorder %s16, 0
    %p101 = por %p99, %p100
    %p102 = scmp.ne.s32.totalorder %s88, %s89
    %p103 = scmp.eq.s32.totalorder %s17, 1
    %p104 = por %p102, %p103
    %p106 = scmp.ne.s32.totalorder %s89, %s105
    %p107 = scmp.eq.s32.totalorder %s17, 0
    %p108 = por %p106, %p107
    %s109 = ssub.s32 %s19, %s26
    %p110 = scmp.eq.s32.totalorder %s109, 0
    %s112 = sadd.s32 %s111, 1
    %s113 = scalar_select %p110, %s111, %s112
    %p116 = pneg %p110
    %p117 = scmp.eq.s32.totalorder %s11, 1
    %p118 = por %p116, %p117
    %p119 = scmp.ne.s32.totalorder %s111, %s114
    %p120 = scmp.eq.s32.totalorder %s11, 0
    %p121 = por %p119, %p120
    %p122 = scmp.ne.s32.totalorder %s111, %s114
    %p123 = scmp.eq.s32.totalorder %s16, 1
    %p124 = por %p122, %p123
    %p125 = scmp.ne.s32.totalorder %s114, %s115
    %p126 = scmp.eq.s32.totalorder %s16, 0
    %p127 = por %p125, %p126
    %p128 = scmp.ne.s32.totalorder %s114, %s115
    %p129 = scmp.eq.s32.totalorder %s17, 1
    %p130 = por %p128, %p129
    %p132 = scmp.ne.s32.totalorder %s115, %s131
    %p133 = scmp.eq.s32.totalorder %s17, 0
    %p134 = por %p132, %p133
    %s135 = ssub.s32 %s19, %s26
    %p136 = scmp.eq.s32.totalorder %s135, 0
    %s138 = sadd.s32 %s137, 1
    %s139 = scalar_select %p136, %s137, %s138
    %p142 = pneg %p136
    %p143 = scmp.eq.s32.totalorder %s11, 1
    %p144 = por %p142, %p143
    %p145 = scmp.ne.s32.totalorder %s137, %s140
    %p146 = scmp.eq.s32.totalorder %s11, 0
    %p147 = por %p145, %p146
    %p148 = scmp.ne.s32.totalorder %s137, %s140
    %p149 = scmp.eq.s32.totalorder %s16, 1
    %p150 = por %p148, %p149
    %p151 = scmp.ne.s32.totalorder %s140, %s141
    %p152 = scmp.eq.s32.totalorder %s16, 0
    %p153 = por %p151, %p152
    %p154 = scmp.ne.s32.totalorder %s140, %s141
    %p155 = scmp.eq.s32.totalorder %s17, 1
    %p156 = por %p154, %p155
    %p158 = scmp.ne.s32.totalorder %s141, %s157
    %p159 = scmp.eq.s32.totalorder %s17, 0
    %p160 = por %p158, %p159
    %s161 = ssub.s32 %s18, %s30
    %s162 = ssub.s32 %s19, %s26
    %s163 = sor.u32 %s161, %s162
    %p164 = scmp.eq.s32.totalorder %s163, 0
    %s166 = sadd.s32 %s165, 1
    %s167 = scalar_select %p164, %s165, %s166
    %p170 = pneg %p164
    %p171 = scmp.eq.s32.totalorder %s11, 1
    %p172 = por %p170, %p171
    %p173 = scmp.ne.s32.totalorder %s165, %s168
    %p174 = scmp.eq.s32.totalorder %s11, 0
    %p175 = por %p173, %p174
    %p176 = scmp.ne.s32.totalorder %s165, %s168
    %p177 = scmp.eq.s32.totalorder %s16, 1
    %p178 = por %p176, %p177
    %p179 = scmp.ne.s32.totalorder %s168, %s169
    %p180 = scmp.eq.s32.totalorder %s16, 0
    %p181 = por %p179, %p180
    %p182 = scmp.ne.s32.totalorder %s168, %s169
    %p183 = scmp.eq.s32.totalorder %s17, 1
    %p184 = por %p182, %p183
    %p186 = scmp.ne.s32.totalorder %s169, %s185
    %p187 = scmp.eq.s32.totalorder %s17, 0
    %p188 = por %p186, %p187
    %p189 = scmp.le.s32.totalorder 1, %s11
    %p190 = scmp.lt.s32.totalorder %s11, 3
    %p191 = pnand %p189, %p190
    %p192 = pneg %p191
    // Predicated region
    $region9: #{bottleneck_forward.5} parent=5 // pred_check
      _
    $region10: #{bottleneck_forward.5} parent=5 // pred_check_branch
      %194 = sbr.rel (%p191) target = $region12
    $region11: #{bottleneck_forward.5} parent=5 // pred_region
      %s195 = ssub.s32 %s11, 1
      // Predicated region
      $region13: #{bottleneck_forward.5} parent=11 // pred_check
        %p196 = pneg %p75
      $region14: #{bottleneck_forward.5} parent=11 // pred_check_branch
        %198 = sbr.rel (%p196) target = $region16
      $region15: #{bottleneck_forward.5} parent=11 // pred_region
        %p199 = scmp.lt.s32.totalorder %s21, 0
        %s200 = scalar_select %p199, %s21, 0
        %s201 = smul.addr %s200, 4
        %s202 = scalar_lea.vmem %s1, %s201
      $region16: #{bottleneck_forward.5} parent=11 // pred_fallthru
        _
      // Predicated region
      $region17: #{bottleneck_forward.5} parent=11 // pred_check
        %p203 = pneg %p127
      $region18: #{bottleneck_forward.5} parent=11 // pred_check_branch
        %205 = sbr.rel (%p203) target = $region20
      $region19: #{bottleneck_forward.5} parent=11 // pred_region
        %p206 = scmp.lt.s32.totalorder %s21, 0
        %s207 = scalar_select %p206, %s21, 0
        %s208 = smul.addr %s207, 4
        %s209 = scalar_lea.vmem %s3, %s208
      $region20: #{bottleneck_forward.5} parent=11 // pred_fallthru
        _
      // Predicated region
      $region21: #{bottleneck_forward.5} parent=11 // pred_check
        %p210 = pneg %p153
      $region22: #{bottleneck_forward.5} parent=11 // pred_check_branch
        %212 = sbr.rel (%p210) target = $region24
      $region23: #{bottleneck_forward.5} parent=11 // pred_region
        %p213 = scmp.lt.s32.totalorder %s21, 0
        %s214 = scalar_select %p213, %s21, 0
        %s215 = scalar_lea.vmem %s4, %s214
      $region24: #{bottleneck_forward.5} parent=11 // pred_fallthru
        _
    $region12: #{bottleneck_forward.5} parent=5 // pred_fallthru
      _
    %p216 = scmp.lt.s32.totalorder %s11, 2
    // Predicated region
    $region25: #{bottleneck_forward.5} parent=5 // pred_check
      %p217 = pneg %p216
    $region26: #{bottleneck_forward.5} parent=5 // pred_check_branch
      %219 = sbr.rel (%p217) target = $region28
    $region27: #{bottleneck_forward.5} parent=5 // pred_region
      // Predicated region
      $region29: #{bottleneck_forward.5} parent=27 // pred_check
        %p220 = pneg %p43
      $region30: #{bottleneck_forward.5} parent=27 // pred_check_branch
        %222 = sbr.rel (%p220) target = $region32
      $region31: #{bottleneck_forward.5} parent=27 // pred_region
        %s223 = smul.u32 32, %s18
        %p224 = scmp.lt.s32.totalorder %s223, 63
        %s225 = scalar_select %p224, %s223, 63
        %s226 = smul.addr %s225, 4
        %s227 = scalar_lea.vmem %s0, %s226
        %s228 = smul.u32 32, %s18
      $region32: #{bottleneck_forward.5} parent=27 // pred_fallthru
        _
      // Predicated region
      $region33: #{bottleneck_forward.5} parent=27 // pred_check
        %p229 = pneg %p95
      $region34: #{bottleneck_forward.5} parent=27 // pred_check_branch
        %231 = sbr.rel (%p229) target = $region36
      $region35: #{bottleneck_forward.5} parent=27 // pred_region
        %s232 = smul.u32 32, %s18
        %p233 = scmp.lt.s32.totalorder %s232, 63
        %s234 = scalar_select %p233, %s232, 63
        %s235 = smul.addr %s234, 4
        %s236 = scalar_lea.vmem %s2, %s235
        %s237 = smul.u32 32, %s18
      $region36: #{bottleneck_forward.5} parent=27 // pred_fallthru
        _
    $region28: #{bottleneck_forward.5} parent=5 // pred_fallthru
      _
    %p238 = scmp.le.s32.totalorder 1, %s11
    %p239 = scmp.lt.s32.totalorder %s11, 3
    %p240 = pnand %p238, %p239
    %p241 = pneg %p240
    // Predicated region
    $region37: #{bottleneck_forward.5} parent=5 // pred_check
      _
    $region38: #{bottleneck_forward.5} parent=5 // pred_check_branch
      %243 = sbr.rel (%p240) target = $region40
    $region39: #{bottleneck_forward.5} parent=5 // pred_region
      %s244 = ssub.s32 %s11, 1
      %s245 = smul.u32 32, %s20
      %p246 = scmp.lt.s32.totalorder %s245, 63
      %s247 = scalar_select %p246, %s245, 63
      %s248 = smul.addr %s247, 4
      %s249 = scalar_lea.vmem %s0, %s248
      %p250 = pneg %p49
      %p251 = pneg %p46
      %p252 = scmp.lt.s32.totalorder %s21, 0
      %s253 = scalar_select %p252, %s21, 0
      %s254 = smul.addr %s253, 4
      %s255 = scalar_lea.vmem %s1, %s254
      %p256 = pneg %p75
      %p257 = pneg %p72
      %s258 = smul.u32 32, %s20
      %p259 = scmp.lt.s32.totalorder %s258, 63
      %s260 = scalar_select %p259, %s258, 63
      %s261 = smul.addr %s260, 4
      %s262 = scalar_lea.vmem %s2, %s261
      %p263 = pneg %p101
      %p264 = pneg %p98
      %p265 = scmp.lt.s32.totalorder %s21, 0
      %s266 = scalar_select %p265, %s21, 0
      %s267 = smul.addr %s266, 4
      %s268 = scalar_lea.vmem %s3, %s267
      %p269 = pneg %p127
      %p270 = pneg %p124
      %p271 = scmp.lt.s32.totalorder %s21, 0
      %s272 = scalar_select %p271, %s21, 0
      %s273 = scalar_lea.vmem %s4, %s272
      %p274 = pneg %p153
      %p275 = pneg %p150
      %p276 = pneg %p181
      %p277 = pneg %p178
      %s278 = smul.u32 32, %s20
      %p279 = scmp.lt.s32.totalorder %s278, 63
      %s280 = scalar_select %p279, %s278, 63
      %p281 = scmp.lt.s32.totalorder %s21, 0
      %s282 = scalar_select %p281, %s21, 0
      %s283 = sadd.s32 %s282, %s280
      %s284 = smul.addr %s283, 8
      %s285 = scalar_lea.vmem %s5, %s284
      %s286 = smul.u32 32, %s20
      %p287 = scmp.lt.s32.totalorder %s286, 63
      %s288 = scalar_select %p287, %s286, 63
      %s289 = smul.addr %s288, 4
      %s290 = scalar_lea.vmem %s0, %s289
      %s291 = smul.u32 32, %s20
      %p292 = scmp.lt.s32.totalorder %s21, 0
      %s293 = scalar_select %p292, %s21, 0
      %s294 = smul.addr %s293, 4
      %s295 = scalar_lea.vmem %s1, %s294
      %s296 = smul.u32 32, %s20
      %p297 = scmp.lt.s32.totalorder %s296, 63
      %s298 = scalar_select %p297, %s296, 63
      %s299 = smul.addr %s298, 4
      %s300 = scalar_lea.vmem %s2, %s299
      %s301 = smul.u32 32, %s20
      %p302 = scmp.lt.s32.totalorder %s21, 0
      %s303 = scalar_select %p302, %s21, 0
      %s304 = smul.addr %s303, 4
      %s305 = scalar_lea.vmem %s3, %s304
      %p306 = scmp.lt.s32.totalorder %s21, 0
      %s307 = scalar_select %p306, %s21, 0
      %s308 = scalar_lea.vmem %s4, %s307
      %s309 = smul.u32 32, %s20
      %p310 = scmp.lt.s32.totalorder %s309, 63
      %s311 = scalar_select %p310, %s309, 63
      %p312 = scmp.lt.s32.totalorder %s21, 0
      %s313 = scalar_select %p312, %s21, 0
      %s314 = sadd.s32 %s313, %s311
      %s315 = smul.addr %s314, 8
      %s316 = scalar_lea.vmem %s5, %s315
      %s317 = smul.u32 32, %s20
      %v318 = vld [vmem:[%s290] sm:$0xf]
      %v319 = vld [vmem:[%s290 + $0x4] sm:$0xf]
      %v320 = vld [vmem:[%s290 + $0x8] sm:$0xf]
      %v321 = vld [vmem:[%s290 + $0xc] sm:$0xf]
      %v322 = vld [vmem:[%s290 + $0x10] sm:$0xf]
      %v323 = vld [vmem:[%s290 + $0x14] sm:$0xf]
      %v324 = vld [vmem:[%s290 + $0x18] sm:$0xf]
      %v325 = vld [vmem:[%s290 + $0x1c] sm:$0xf]
      %v326 = vld [vmem:[%s290 + $0x20] sm:$0xf]
      %v327 = vld [vmem:[%s290 + $0x24] sm:$0xf]
      %v328 = vld [vmem:[%s290 + $0x28] sm:$0xf]
      %v329 = vld [vmem:[%s290 + $0x2c] sm:$0xf]
      %v330 = vld [vmem:[%s290 + $0x30] sm:$0xf]
      %v331 = vld [vmem:[%s290 + $0x34] sm:$0xf]
      %v332 = vld [vmem:[%s290 + $0x38] sm:$0xf]
      %v333 = vld [vmem:[%s290 + $0x3c] sm:$0xf]
      %v334 = vld [vmem:[%s290 + $0x40] sm:$0xf]
      %v335 = vld [vmem:[%s290 + $0x44] sm:$0xf]
      %v336 = vld [vmem:[%s290 + $0x48] sm:$0xf]
      %v337 = vld [vmem:[%s290 + $0x4c] sm:$0xf]
      %v338 = vld [vmem:[%s290 + $0x50] sm:$0xf]
      %v339 = vld [vmem:[%s290 + $0x54] sm:$0xf]
      %v340 = vld [vmem:[%s290 + $0x58] sm:$0xf]
      %v341 = vld [vmem:[%s290 + $0x5c] sm:$0xf]
      %v342 = vld [vmem:[%s290 + $0x60] sm:$0xf]
      %v343 = vld [vmem:[%s290 + $0x64] sm:$0xf]
      %v344 = vld [vmem:[%s290 + $0x68] sm:$0xf]
      %v345 = vld [vmem:[%s290 + $0x6c] sm:$0xf]
      %v346 = vld [vmem:[%s290 + $0x70] sm:$0xf]
      %v347 = vld [vmem:[%s290 + $0x74] sm:$0xf]
      %v348 = vld [vmem:[%s290 + $0x78] sm:$0xf]
      %v349 = vld [vmem:[%s290 + $0x7c] sm:$0xf]
      %v350 = vld [vmem:[%s295] sm:$0xf]
      %v351 = vld [vmem:[%s295 + $0x4] sm:$0xf]
      %v352 = vld [vmem:[%s295 + $0x8] sm:$0xf]
      %v353 = vld [vmem:[%s295 + $0xc] sm:$0xf]
      %v354 = vld [vmem:[%s295 + $0x10] sm:$0xf]
      %v355 = vld [vmem:[%s295 + $0x14] sm:$0xf]
      %v356 = vld [vmem:[%s295 + $0x18] sm:$0xf]
      %v357 = vld [vmem:[%s295 + $0x1c] sm:$0xf]
      %v358 = vld [vmem:[%s295 + $0x20] sm:$0xf]
      %v359 = vld [vmem:[%s295 + $0x24] sm:$0xf]
      %v360 = vld [vmem:[%s295 + $0x28] sm:$0xf]
      %v361 = vld [vmem:[%s295 + $0x2c] sm:$0xf]
      %v362 = vld [vmem:[%s295 + $0x30] sm:$0xf]
      %v363 = vld [vmem:[%s295 + $0x34] sm:$0xf]
      %v364 = vld [vmem:[%s295 + $0x38] sm:$0xf]
      %v365 = vld [vmem:[%s295 + $0x3c] sm:$0xf]
      %v366 = vld [vmem:[%s300] sm:$0xf]
      %v367 = vld [vmem:[%s300 + $0x4] sm:$0xf]
      %v368 = vld [vmem:[%s300 + $0x8] sm:$0xf]
      %v369 = vld [vmem:[%s300 + $0xc] sm:$0xf]
      %v370 = vld [vmem:[%s300 + $0x10] sm:$0xf]
      %v371 = vld [vmem:[%s300 + $0x14] sm:$0xf]
      %v372 = vld [vmem:[%s300 + $0x18] sm:$0xf]
      %v373 = vld [vmem:[%s300 + $0x1c] sm:$0xf]
      %v374 = vld [vmem:[%s300 + $0x20] sm:$0xf]
      %v375 = vld [vmem:[%s300 + $0x24] sm:$0xf]
      %v376 = vld [vmem:[%s300 + $0x28] sm:$0xf]
      %v377 = vld [vmem:[%s300 + $0x2c] sm:$0xf]
      %v378 = vld [vmem:[%s300 + $0x30] sm:$0xf]
      %v379 = vld [vmem:[%s300 + $0x34] sm:$0xf]
      %v380 = vld [vmem:[%s300 + $0x38] sm:$0xf]
      %v381 = vld [vmem:[%s300 + $0x3c] sm:$0xf]
      %v382 = vld [vmem:[%s300 + $0x40] sm:$0xf]
      %v383 = vld [vmem:[%s300 + $0x44] sm:$0xf]
      %v384 = vld [vmem:[%s300 + $0x48] sm:$0xf]
      %v385 = vld [vmem:[%s300 + $0x4c] sm:$0xf]
      %v386 = vld [vmem:[%s300 + $0x50] sm:$0xf]
      %v387 = vld [vmem:[%s300 + $0x54] sm:$0xf]
      %v388 = vld [vmem:[%s300 + $0x58] sm:$0xf]
      %v389 = vld [vmem:[%s300 + $0x5c] sm:$0xf]
      %v390 = vld [vmem:[%s300 + $0x60] sm:$0xf]
      %v391 = vld [vmem:[%s300 + $0x64] sm:$0xf]
      %v392 = vld [vmem:[%s300 + $0x68] sm:$0xf]
      %v393 = vld [vmem:[%s300 + $0x6c] sm:$0xf]
      %v394 = vld [vmem:[%s300 + $0x70] sm:$0xf]
      %v395 = vld [vmem:[%s300 + $0x74] sm:$0xf]
      %v396 = vld [vmem:[%s300 + $0x78] sm:$0xf]
      %v397 = vld [vmem:[%s300 + $0x7c] sm:$0xf]
      %v398 = vld [vmem:[%s305] sm:$0xf]
      %v399 = vld [vmem:[%s305 + $0x4] sm:$0xf]
      %v400 = vld [vmem:[%s305 + $0x8] sm:$0xf]
      %v401 = vld [vmem:[%s305 + $0xc] sm:$0xf]
      %v402 = vld [vmem:[%s305 + $0x10] sm:$0xf]
      %v403 = vld [vmem:[%s305 + $0x14] sm:$0xf]
      %v404 = vld [vmem:[%s305 + $0x18] sm:$0xf]
      %v405 = vld [vmem:[%s305 + $0x1c] sm:$0xf]
      %v406 = vld [vmem:[%s305 + $0x20] sm:$0xf]
      %v407 = vld [vmem:[%s305 + $0x24] sm:$0xf]
      %v408 = vld [vmem:[%s305 + $0x28] sm:$0xf]
      %v409 = vld [vmem:[%s305 + $0x2c] sm:$0xf]
      %v410 = vld [vmem:[%s305 + $0x30] sm:$0xf]
      %v411 = vld [vmem:[%s305 + $0x34] sm:$0xf]
      %v412 = vld [vmem:[%s305 + $0x38] sm:$0xf]
      %v413 = vld [vmem:[%s305 + $0x3c] sm:$0xf]
      %v446 = vunpack.c.l.b16 %v366
      %v447 = vunpack.c.l.b16 %v367
      %v448 = vunpack.c.l.b16 %v368
      %v449 = vunpack.c.l.b16 %v369
      %v450 = vunpack.c.l.b16 %v370
      %v451 = vunpack.c.l.b16 %v371
      %v452 = vunpack.c.l.b16 %v372
      %v453 = vunpack.c.l.b16 %v373
      %v454 = vunpack.c.l.b16 %v374
      %v455 = vunpack.c.l.b16 %v375
      %v456 = vunpack.c.l.b16 %v376
      %v457 = vunpack.c.l.b16 %v377
      %v458 = vunpack.c.l.b16 %v378
      %v459 = vunpack.c.l.b16 %v379
      %v460 = vunpack.c.l.b16 %v380
      %v461 = vunpack.c.l.b16 %v381
      %v462 = vunpack.c.l.b16 %v382
      %v463 = vunpack.c.l.b16 %v383
      %v464 = vunpack.c.l.b16 %v384
      %v465 = vunpack.c.l.b16 %v385
      %v466 = vunpack.c.l.b16 %v386
      %v467 = vunpack.c.l.b16 %v387
      %v468 = vunpack.c.l.b16 %v388
      %v469 = vunpack.c.l.b16 %v389
      %v470 = vunpack.c.l.b16 %v390
      %v471 = vunpack.c.l.b16 %v391
      %v472 = vunpack.c.l.b16 %v392
      %v473 = vunpack.c.l.b16 %v393
      %v474 = vunpack.c.l.b16 %v394
      %v475 = vunpack.c.l.b16 %v395
      %v476 = vunpack.c.l.b16 %v396
      %v477 = vunpack.c.l.b16 %v397
      %v478 = vpack.c.b16 %v447, %v446
      %v479 = vpack.c.b16 %v449, %v448
      %v480 = vpack.c.b16 %v451, %v450
      %v481 = vpack.c.b16 %v453, %v452
      %v482 = vpack.c.b16 %v455, %v454
      %v483 = vpack.c.b16 %v457, %v456
      %v484 = vpack.c.b16 %v459, %v458
      %v485 = vpack.c.b16 %v461, %v460
      %v486 = vpack.c.b16 %v463, %v462
      %v487 = vpack.c.b16 %v465, %v464
      %v488 = vpack.c.b16 %v467, %v466
      %v489 = vpack.c.b16 %v469, %v468
      %v490 = vpack.c.b16 %v471, %v470
      %v491 = vpack.c.b16 %v473, %v472
      %v492 = vpack.c.b16 %v475, %v474
      %v493 = vpack.c.b16 %v477, %v476
      %v526 = vunpack.c.l.b16 %v398
      %v527 = vunpack.c.l.b16 %v399
      %v528 = vunpack.c.l.b16 %v400
      %v529 = vunpack.c.l.b16 %v401
      %v530 = vunpack.c.l.b16 %v402
      %v531 = vunpack.c.l.b16 %v403
      %v532 = vunpack.c.l.b16 %v404
      %v533 = vunpack.c.l.b16 %v405
      %v534 = vunpack.c.l.b16 %v406
      %v535 = vunpack.c.l.b16 %v407
      %v536 = vunpack.c.l.b16 %v408
      %v537 = vunpack.c.l.b16 %v409
      %v538 = vunpack.c.l.b16 %v410
      %v539 = vunpack.c.l.b16 %v411
      %v540 = vunpack.c.l.b16 %v412
      %v541 = vunpack.c.l.b16 %v413
      %v542 = vpack.c.b16 %v527, %v526
      %v543 = vpack.c.b16 %v529, %v528
      %v544 = vpack.c.b16 %v531, %v530
      %v545 = vpack.c.b16 %v533, %v532
      %v546 = vpack.c.b16 %v535, %v534
      %v547 = vpack.c.b16 %v537, %v536
      %v548 = vpack.c.b16 %v539, %v538
      %v549 = vpack.c.b16 %v541, %v540
      %558 = vmatpush.bf16.msra.mxu0 %v549
      %559 = vmatpush.bf16.msra.mxu0 %v548
      %560 = vmatpush.bf16.msra.mxu0 %v547
      %561 = vmatpush.bf16.msra.mxu0 %v546
      %562 = vmatpush.bf16.msra.mxu0 %v545
      %563 = vmatpush.bf16.msra.mxu0 %v544
      %564 = vmatpush.bf16.msra.mxu0 %v543
      %565 = vmatpush.bf16.msra.mxu0 %v542
      %566 = vmatmul.bf16.gmra.mxu0 %v478
      %v567 = vpop.f32.mrf.mxu0
      %v568 = vadd.f32 0.0, %v567
      %v569 = vpop.f32.mrf.mxu0
      %v570 = vadd.f32 0.0, %v569
      %571 = vmatmul.bf16.gmra.mxu0 %v479
      %v572 = vpop.f32.mrf.mxu0
      %v573 = vadd.f32 0.0, %v572
      %v574 = vpop.f32.mrf.mxu0
      %v575 = vadd.f32 0.0, %v574
      %576 = vmatmul.bf16.gmra.mxu0 %v480
      %v577 = vpop.f32.mrf.mxu0
      %v578 = vadd.f32 0.0, %v577
      %v579 = vpop.f32.mrf.mxu0
      %v580 = vadd.f32 0.0, %v579
      %581 = vmatmul.bf16.gmra.mxu0 %v481
      %v582 = vpop.f32.mrf.mxu0
      %v583 = vadd.f32 0.0, %v582
      %v584 = vpop.f32.mrf.mxu0
      %v585 = vadd.f32 0.0, %v584
      %586 = vmatmul.bf16.gmra.mxu0 %v482
      %v587 = vpop.f32.mrf.mxu0
      %v588 = vadd.f32 0.0, %v587
      %v589 = vpop.f32.mrf.mxu0
      %v590 = vadd.f32 0.0, %v589
      %591 = vmatmul.bf16.gmra.mxu0 %v483
      %v592 = vpop.f32.mrf.mxu0
      %v593 = vadd.f32 0.0, %v592
      %v594 = vpop.f32.mrf.mxu0
      %v595 = vadd.f32 0.0, %v594
      %596 = vmatmul.bf16.gmra.mxu0 %v484
      %v597 = vpop.f32.mrf.mxu0
      %v598 = vadd.f32 0.0, %v597
      %v599 = vpop.f32.mrf.mxu0
      %v600 = vadd.f32 0.0, %v599
      %601 = vmatmul.bf16.gmra.mxu0 %v485
      %v602 = vpop.f32.mrf.mxu0
      %v603 = vadd.f32 0.0, %v602
      %v604 = vpop.f32.mrf.mxu0
      %v605 = vadd.f32 0.0, %v604
      %606 = vmatmul.bf16.gmra.mxu0 %v486
      %v607 = vpop.f32.mrf.mxu0
      %v608 = vadd.f32 0.0, %v607
      %v609 = vpop.f32.mrf.mxu0
      %v610 = vadd.f32 0.0, %v609
      %611 = vmatmul.bf16.gmra.mxu0 %v487
      %v612 = vpop.f32.mrf.mxu0
      %v613 = vadd.f32 0.0, %v612
      %v614 = vpop.f32.mrf.mxu0
      %v615 = vadd.f32 0.0, %v614
      %616 = vmatmul.bf16.gmra.mxu0 %v488
      %v617 = vpop.f32.mrf.mxu0
      %v618 = vadd.f32 0.0, %v617
      %v619 = vpop.f32.mrf.mxu0
      %v620 = vadd.f32 0.0, %v619
      %621 = vmatmul.bf16.gmra.mxu0 %v489
      %v622 = vpop.f32.mrf.mxu0
      %v623 = vadd.f32 0.0, %v622
      %v624 = vpop.f32.mrf.mxu0
      %v625 = vadd.f32 0.0, %v624
      %626 = vmatmul.bf16.gmra.mxu0 %v490
      %v627 = vpop.f32.mrf.mxu0
      %v628 = vadd.f32 0.0, %v627
      %v629 = vpop.f32.mrf.mxu0
      %v630 = vadd.f32 0.0, %v629
      %631 = vmatmul.bf16.gmra.mxu0 %v491
      %v632 = vpop.f32.mrf.mxu0
      %v633 = vadd.f32 0.0, %v632
      %v634 = vpop.f32.mrf.mxu0
      %v635 = vadd.f32 0.0, %v634
      %636 = vmatmul.bf16.gmra.mxu0 %v492
      %v637 = vpop.f32.mrf.mxu0
      %v638 = vadd.f32 0.0, %v637
      %v639 = vpop.f32.mrf.mxu0
      %v640 = vadd.f32 0.0, %v639
      %641 = vmatmul.bf16.gmra.mxu0 %v493
      %v642 = vpop.f32.mrf.mxu0
      %v643 = vadd.f32 0.0, %v642
      %v644 = vpop.f32.mrf.mxu0
      %v645 = vadd.f32 0.0, %v644
      %646 = vdwg.mxu0
      %v679 = vunpack.c.l.b16 %v318
      %v680 = vunpack.c.l.b16 %v319
      %v681 = vunpack.c.l.b16 %v320
      %v682 = vunpack.c.l.b16 %v321
      %v683 = vunpack.c.l.b16 %v322
      %v684 = vunpack.c.l.b16 %v323
      %v685 = vunpack.c.l.b16 %v324
      %v686 = vunpack.c.l.b16 %v325
      %v687 = vunpack.c.l.b16 %v326
      %v688 = vunpack.c.l.b16 %v327
      %v689 = vunpack.c.l.b16 %v328
      %v690 = vunpack.c.l.b16 %v329
      %v691 = vunpack.c.l.b16 %v330
      %v692 = vunpack.c.l.b16 %v331
      %v693 = vunpack.c.l.b16 %v332
      %v694 = vunpack.c.l.b16 %v333
      %v695 = vunpack.c.l.b16 %v334
      %v696 = vunpack.c.l.b16 %v335
      %v697 = vunpack.c.l.b16 %v336
      %v698 = vunpack.c.l.b16 %v337
      %v699 = vunpack.c.l.b16 %v338
      %v700 = vunpack.c.l.b16 %v339
      %v701 = vunpack.c.l.b16 %v340
      %v702 = vunpack.c.l.b16 %v341
      %v703 = vunpack.c.l.b16 %v342
      %v704 = vunpack.c.l.b16 %v343
      %v705 = vunpack.c.l.b16 %v344
      %v706 = vunpack.c.l.b16 %v345
      %v707 = vunpack.c.l.b16 %v346
      %v708 = vunpack.c.l.b16 %v347
      %v709 = vunpack.c.l.b16 %v348
      %v710 = vunpack.c.l.b16 %v349
      %v711 = vpack.c.b16 %v680, %v679
      %v712 = vpack.c.b16 %v682, %v681
      %v713 = vpack.c.b16 %v684, %v683
      %v714 = vpack.c.b16 %v686, %v685
      %v715 = vpack.c.b16 %v688, %v687
      %v716 = vpack.c.b16 %v690, %v689
      %v717 = vpack.c.b16 %v692, %v691
      %v718 = vpack.c.b16 %v694, %v693
      %v719 = vpack.c.b16 %v696, %v695
      %v720 = vpack.c.b16 %v698, %v697
      %v721 = vpack.c.b16 %v700, %v699
      %v722 = vpack.c.b16 %v702, %v701
      %v723 = vpack.c.b16 %v704, %v703
      %v724 = vpack.c.b16 %v706, %v705
      %v725 = vpack.c.b16 %v708, %v707
      %v726 = vpack.c.b16 %v710, %v709
      %v759 = vunpack.c.l.b16 %v350
      %v760 = vunpack.c.l.b16 %v351
      %v761 = vunpack.c.l.b16 %v352
      %v762 = vunpack.c.l.b16 %v353
      %v763 = vunpack.c.l.b16 %v354
      %v764 = vunpack.c.l.b16 %v355
      %v765 = vunpack.c.l.b16 %v356
      %v766 = vunpack.c.l.b16 %v357
      %v767 = vunpack.c.l.b16 %v358
      %v768 = vunpack.c.l.b16 %v359
      %v769 = vunpack.c.l.b16 %v360
      %v770 = vunpack.c.l.b16 %v361
      %v771 = vunpack.c.l.b16 %v362
      %v772 = vunpack.c.l.b16 %v363
      %v773 = vunpack.c.l.b16 %v364
      %v774 = vunpack.c.l.b16 %v365
      %v775 = vpack.c.b16 %v760, %v759
      %v776 = vpack.c.b16 %v762, %v761
      %v777 = vpack.c.b16 %v764, %v763
      %v778 = vpack.c.b16 %v766, %v765
      %v779 = vpack.c.b16 %v768, %v767
      %v780 = vpack.c.b16 %v770, %v769
      %v781 = vpack.c.b16 %v772, %v771
      %v782 = vpack.c.b16 %v774, %v773
      %791 = vmatpush.bf16.msra.mxu0 %v782
      %792 = vmatpush.bf16.msra.mxu0 %v781
      %793 = vmatpush.bf16.msra.mxu0 %v780
      %794 = vmatpush.bf16.msra.mxu0 %v779
      %795 = vmatpush.bf16.msra.mxu0 %v778
      %796 = vmatpush.bf16.msra.mxu0 %v777
      %797 = vmatpush.bf16.msra.mxu0 %v776
      %798 = vmatpush.bf16.msra.mxu0 %v775
      %799 = vmatmul.bf16.gmra.mxu0 %v711
      %v800 = vpop.f32.mrf.mxu0
      %v801 = vadd.f32 %v568, %v800
      %v802 = vpop.f32.mrf.mxu0
      %v803 = vadd.f32 %v570, %v802
      %804 = vmatmul.bf16.gmra.mxu0 %v712
      %v805 = vpop.f32.mrf.mxu0
      %v806 = vadd.f32 %v573, %v805
      %v807 = vpop.f32.mrf.mxu0
      %v808 = vadd.f32 %v575, %v807
      %809 = vmatmul.bf16.gmra.mxu0 %v713
      %v810 = vpop.f32.mrf.mxu0
      %v811 = vadd.f32 %v578, %v810
      %v812 = vpop.f32.mrf.mxu0
      %v813 = vadd.f32 %v580, %v812
      %814 = vmatmul.bf16.gmra.mxu0 %v714
      %v815 = vpop.f32.mrf.mxu0
      %v816 = vadd.f32 %v583, %v815
      %v817 = vpop.f32.mrf.mxu0
      %v818 = vadd.f32 %v585, %v817
      %819 = vmatmul.bf16.gmra.mxu0 %v715
      %v820 = vpop.f32.mrf.mxu0
      %v821 = vadd.f32 %v588, %v820
      %v822 = vpop.f32.mrf.mxu0
      %v823 = vadd.f32 %v590, %v822
      %824 = vmatmul.bf16.gmra.mxu0 %v716
      %v825 = vpop.f32.mrf.mxu0
      %v826 = vadd.f32 %v593, %v825
      %v827 = vpop.f32.mrf.mxu0
      %v828 = vadd.f32 %v595, %v827
      %829 = vmatmul.bf16.gmra.mxu0 %v717
      %v830 = vpop.f32.mrf.mxu0
      %v831 = vadd.f32 %v598, %v830
      %v832 = vpop.f32.mrf.mxu0
      %v833 = vadd.f32 %v600, %v832
      %834 = vmatmul.bf16.gmra.mxu0 %v718
      %v835 = vpop.f32.mrf.mxu0
      %v836 = vadd.f32 %v603, %v835
      %v837 = vpop.f32.mrf.mxu0
      %v838 = vadd.f32 %v605, %v837
      %839 = vmatmul.bf16.gmra.mxu0 %v719
      %v840 = vpop.f32.mrf.mxu0
      %v841 = vadd.f32 %v608, %v840
      %v842 = vpop.f32.mrf.mxu0
      %v843 = vadd.f32 %v610, %v842
      %844 = vmatmul.bf16.gmra.mxu0 %v720
      %v845 = vpop.f32.mrf.mxu0
      %v846 = vadd.f32 %v613, %v845
      %v847 = vpop.f32.mrf.mxu0
      %v848 = vadd.f32 %v615, %v847
      %849 = vmatmul.bf16.gmra.mxu0 %v721
      %v850 = vpop.f32.mrf.mxu0
      %v851 = vadd.f32 %v618, %v850
      %v852 = vpop.f32.mrf.mxu0
      %v853 = vadd.f32 %v620, %v852
      %854 = vmatmul.bf16.gmra.mxu0 %v722
      %v855 = vpop.f32.mrf.mxu0
      %v856 = vadd.f32 %v623, %v855
      %v857 = vpop.f32.mrf.mxu0
      %v858 = vadd.f32 %v625, %v857
      %859 = vmatmul.bf16.gmra.mxu0 %v723
      %v860 = vpop.f32.mrf.mxu0
      %v861 = vadd.f32 %v628, %v860
      %v862 = vpop.f32.mrf.mxu0
      %v863 = vadd.f32 %v630, %v862
      %864 = vmatmul.bf16.gmra.mxu0 %v724
      %v865 = vpop.f32.mrf.mxu0
      %v866 = vadd.f32 %v633, %v865
      %v867 = vpop.f32.mrf.mxu0
      %v868 = vadd.f32 %v635, %v867
      %869 = vmatmul.bf16.gmra.mxu0 %v725
      %v870 = vpop.f32.mrf.mxu0
      %v871 = vadd.f32 %v638, %v870
      %v872 = vpop.f32.mrf.mxu0
      %v873 = vadd.f32 %v640, %v872
      %874 = vmatmul.bf16.gmra.mxu0 %v726
      %v875 = vpop.f32.mrf.mxu0
      %v876 = vadd.f32 %v643, %v875
      %v877 = vpop.f32.mrf.mxu0
      %v878 = vadd.f32 %v645, %v877
      %879 = vdwg.mxu0
      %v880 = vld [vmem:[%s308] sm:$0x1]
      %v882 = vperm.slane %v880, 0
      %v884 = vadd.f32 %v801, %v882
      %v885 = vadd.f32 %v803, %v882
      %v886 = vadd.f32 %v806, %v882
      %v887 = vadd.f32 %v808, %v882
      %v888 = vadd.f32 %v811, %v882
      %v889 = vadd.f32 %v813, %v882
      %v890 = vadd.f32 %v816, %v882
      %v891 = vadd.f32 %v818, %v882
      %v892 = vadd.f32 %v821, %v882
      %v893 = vadd.f32 %v823, %v882
      %v894 = vadd.f32 %v826, %v882
      %v895 = vadd.f32 %v828, %v882
      %v896 = vadd.f32 %v831, %v882
      %v897 = vadd.f32 %v833, %v882
      %v898 = vadd.f32 %v836, %v882
      %v899 = vadd.f32 %v838, %v882
      %v900 = vadd.f32 %v841, %v882
      %v901 = vadd.f32 %v843, %v882
      %v902 = vadd.f32 %v846, %v882
      %v903 = vadd.f32 %v848, %v882
      %v904 = vadd.f32 %v851, %v882
      %v905 = vadd.f32 %v853, %v882
      %v906 = vadd.f32 %v856, %v882
      %v907 = vadd.f32 %v858, %v882
      %v908 = vadd.f32 %v861, %v882
      %v909 = vadd.f32 %v863, %v882
      %v910 = vadd.f32 %v866, %v882
      %v911 = vadd.f32 %v868, %v882
      %v912 = vadd.f32 %v871, %v882
      %v913 = vadd.f32 %v873, %v882
      %v914 = vadd.f32 %v876, %v882
      %v915 = vadd.f32 %v878, %v882
      %v916 = vmax.f32 %v884, 0.0
      %v917 = vmax.f32 %v885, 0.0
      %v918 = vmax.f32 %v886, 0.0
      %v919 = vmax.f32 %v887, 0.0
      %v920 = vmax.f32 %v888, 0.0
      %v921 = vmax.f32 %v889, 0.0
      %v922 = vmax.f32 %v890, 0.0
      %v923 = vmax.f32 %v891, 0.0
      %v924 = vmax.f32 %v892, 0.0
      %v925 = vmax.f32 %v893, 0.0
      %v926 = vmax.f32 %v894, 0.0
      %v927 = vmax.f32 %v895, 0.0
      %v928 = vmax.f32 %v896, 0.0
      %v929 = vmax.f32 %v897, 0.0
      %v930 = vmax.f32 %v898, 0.0
      %v931 = vmax.f32 %v899, 0.0
      %v932 = vmax.f32 %v900, 0.0
      %v933 = vmax.f32 %v901, 0.0
      %v934 = vmax.f32 %v902, 0.0
      %v935 = vmax.f32 %v903, 0.0
      %v936 = vmax.f32 %v904, 0.0
      %v937 = vmax.f32 %v905, 0.0
      %v938 = vmax.f32 %v906, 0.0
      %v939 = vmax.f32 %v907, 0.0
      %v940 = vmax.f32 %v908, 0.0
      %v941 = vmax.f32 %v909, 0.0
      %v942 = vmax.f32 %v910, 0.0
      %v943 = vmax.f32 %v911, 0.0
      %v944 = vmax.f32 %v912, 0.0
      %v945 = vmax.f32 %v913, 0.0
      %v946 = vmax.f32 %v914, 0.0
      %v947 = vmax.f32 %v915, 0.0
      %948 = vst [vmem:[%s316] sm:$0xff] %v916
      %949 = vst [vmem:[%s316 + $0x8] sm:$0xff] %v917
      %950 = vst [vmem:[%s316 + $0x10] sm:$0xff] %v918
      %951 = vst [vmem:[%s316 + $0x18] sm:$0xff] %v919
      %952 = vst [vmem:[%s316 + $0x20] sm:$0xff] %v920
      %953 = vst [vmem:[%s316 + $0x28] sm:$0xff] %v921
      %954 = vst [vmem:[%s316 + $0x30] sm:$0xff] %v922
      %955 = vst [vmem:[%s316 + $0x38] sm:$0xff] %v923
      %956 = vst [vmem:[%s316 + $0x40] sm:$0xff] %v924
      %957 = vst [vmem:[%s316 + $0x48] sm:$0xff] %v925
      %958 = vst [vmem:[%s316 + $0x50] sm:$0xff] %v926
      %959 = vst [vmem:[%s316 + $0x58] sm:$0xff] %v927
      %960 = vst [vmem:[%s316 + $0x60] sm:$0xff] %v928
      %961 = vst [vmem:[%s316 + $0x68] sm:$0xff] %v929
      %962 = vst [vmem:[%s316 + $0x70] sm:$0xff] %v930
      %963 = vst [vmem:[%s316 + $0x78] sm:$0xff] %v931
      %964 = vst [vmem:[%s316 + $0x80] sm:$0xff] %v932
      %965 = vst [vmem:[%s316 + $0x88] sm:$0xff] %v933
      %966 = vst [vmem:[%s316 + $0x90] sm:$0xff] %v934
      %967 = vst [vmem:[%s316 + $0x98] sm:$0xff] %v935
      %968 = vst [vmem:[%s316 + $0xa0] sm:$0xff] %v936
      %969 = vst [vmem:[%s316 + $0xa8] sm:$0xff] %v937
      %970 = vst [vmem:[%s316 + $0xb0] sm:$0xff] %v938
      %971 = vst [vmem:[%s316 + $0xb8] sm:$0xff] %v939
      %972 = vst [vmem:[%s316 + $0xc0] sm:$0xff] %v940
      %973 = vst [vmem:[%s316 + $0xc8] sm:$0xff] %v941
      %974 = vst [vmem:[%s316 + $0xd0] sm:$0xff] %v942
      %975 = vst [vmem:[%s316 + $0xd8] sm:$0xff] %v943
      %976 = vst [vmem:[%s316 + $0xe0] sm:$0xff] %v944
      %977 = vst [vmem:[%s316 + $0xe8] sm:$0xff] %v945
      %978 = vst [vmem:[%s316 + $0xf0] sm:$0xff] %v946
      %979 = vst [vmem:[%s316 + $0xf8] sm:$0xff] %v947
      %s980 = smul.u32 32, %s20
      %p981 = scmp.lt.s32.totalorder %s980, 63
      %s982 = scalar_select %p981, %s980, 63
      %p983 = scmp.lt.s32.totalorder %s21, 0
      %s984 = scalar_select %p983, %s21, 0
      %s985 = sadd.s32 %s984, %s982
      %s986 = smul.addr %s985, 8
      %s987 = scalar_lea.vmem %s5, %s986
      // Predicated region
      $region41: #{bottleneck_forward.5} parent=39 // pred_check
        %p988 = pneg %p178
      $region42: #{bottleneck_forward.5} parent=39 // pred_check_branch
        %990 = sbr.rel (%p988) target = $region44
      $region43: #{bottleneck_forward.5} parent=39 // pred_region
        %s991 = smul.u32 32, %s20
      $region44: #{bottleneck_forward.5} parent=39 // pred_fallthru
        _
    $region40: #{bottleneck_forward.5} parent=5 // pred_fallthru
      _
    %p992 = scmp.le.s32.totalorder 2, %s11
    // Predicated region
    $region45: #{bottleneck_forward.5} parent=5 // pred_check
      %p993 = pneg %p992
    $region46: #{bottleneck_forward.5} parent=5 // pred_check_branch
      %995 = sbr.rel (%p993) target = $region48
    $region47: #{bottleneck_forward.5} parent=5 // pred_region
      %s996 = ssub.s32 %s11, 2
      // Predicated region
      $region49: #{bottleneck_forward.5} parent=47 // pred_check
        %p997 = pneg %p184
      $region50: #{bottleneck_forward.5} parent=47 // pred_check_branch
        %999 = sbr.rel (%p997) target = $region52
      $region51: #{bottleneck_forward.5} parent=47 // pred_region
        %s1000 = smul.u32 32, %s22
        %p1001 = scmp.lt.s32.totalorder %s1000, 63
        %s1002 = scalar_select %p1001, %s1000, 63
        %p1003 = scmp.lt.s32.totalorder %s23, 0
        %s1004 = scalar_select %p1003, %s23, 0
        %s1005 = sadd.s32 %s1004, %s1002
        %s1006 = smul.addr %s1005, 8
        %s1007 = scalar_lea.vmem %s5, %s1006
      $region52: #{bottleneck_forward.5} parent=47 // pred_fallthru
        _
    $region48: #{bottleneck_forward.5} parent=5 // pred_fallthru
      _
  $region6: #{bottleneck_forward.5} parent=0 // loop_footer
    %s15 = sadd.s32 1, %s11
  $region7: #{bottleneck_forward.5} parent=0 // loop_footer_branch
    %10 = sbr.rel target = $region3
  $region8: #{bottleneck_forward.5} parent=0 // loop_exit
    _

// kernel: bottleneck_forward.4
$region0: #{bottleneck_forward.4}
  #allocation0 [shape = 'u32[]', space=smem, size = 0x4, offset = 0x4, fixed_abs, tag = 'smem constant byte address 0x4 - core index']
  #allocation1 [shape = 'u32[72,128]{1,0:T(1,128)}', space=vmem, size = 0x9000, scoped, tag = 'internal scratch']
  #allocation2 [shape = 'bf16[10,24,128]{2,1,0:T(8,128)(2,1)}', space=vmem, size = 0xf000, scoped, tag = 'scratch operand']
  %s0 = inlined_call_operand.vmem [shape: bf16[2,16,16,128], index: 0, kind: input, shape index: {}]
  %s1 = inlined_call_operand.vmem [shape: bf16[1152,128], index: 1, kind: input, shape index: {}]
  %s2 = inlined_call_operand.vmem [shape: f32[1,128], index: 2, kind: input, shape index: {}]
  %s3 = inlined_call_operand.vmem [shape: bf16[2,16,16,128], index: 3, kind: output, shape index: {}]
  %s4 = sld [smem:[#allocation0]]
  $region85: #{bottleneck_forward.4} parent=0
    _
  %s6 = ssub.s32 1, %s4
  %s7 = scalar_select 0, %s6, %s4
  loop: start=0, step=1, limit=6
  $region2: #{bottleneck_forward.4} parent=0 // loop_pre_header
    _
  $region3: #{bottleneck_forward.4} parent=0 // loop_header
    %s9 = sphi 0, %s13
    %p10 = scmp.ge.s32.totalorder %s9, 6
    %s16 = sphi 0, %s35
    %s17 = sphi 0, %s31
    %s18 = sphi 0, %s27
    %s19 = sphi 0, %s16
    %s20 = sphi 0, %s17
    %s21 = sphi 0, %s18
    %s22 = sphi 0, %s19
    %s23 = sphi 0, %s20
    %s24 = sphi 0, %s21
    %s38 = sphi 0, %s40
    %s41 = sphi 0, %s38
    %s42 = sphi 0, %s41
    %s58 = sphi 0, %s42
    %s64 = sphi 0, %s66
    %s67 = sphi 0, %s64
    %s68 = sphi 0, %s67
    %s84 = sphi 0, %s68
    %s90 = sphi 0, %s92
    %s93 = sphi 0, %s90
    %s94 = sphi 0, %s93
    %s110 = sphi 0, %s94
    %s120 = sphi 0, %s122
    %s123 = sphi 0, %s120
    %s124 = sphi 0, %s123
    %s140 = sphi 0, %s124
  $region4: #{bottleneck_forward.4} parent=0 // loop_header_branch
    %12 = sbr.rel (%p10) target = $region8
  $region5: #{bottleneck_forward.4} parent=0 // loop_body
    %s14 = ssub.s32 %s9, 1
    %s15 = ssub.s32 %s9, 2
    %s25 = sadd.s32 1, %s18
    %p26 = scmp.ge.s32.totalorder %s25, 2
    %s27 = scalar_select %p26, 0, %s25
    %s28 = sadd.s32 1, %s17
    %s29 = scalar_select %p26, %s28, %s17
    %p30 = scmp.ge.s32.totalorder %s29, 1
    %s31 = scalar_select %p30, 0, %s29
    %s32 = sadd.s32 1, %s16
    %s33 = scalar_select %p30, %s32, %s16
    %p34 = scmp.ge.s32.totalorder %s33, 2
    %s35 = scalar_select %p34, 0, %s33
    %s36 = ssub.s32 %s16, %s35
    %p37 = scmp.eq.s32.totalorder %s36, 0
    %s39 = sadd.s32 %s38, 1
    %s40 = scalar_select %p37, %s38, %s39
    %p43 = pneg %p37
    %p44 = scmp.eq.s32.totalorder %s9, 3
    %p45 = por %p43, %p44
    %p46 = scmp.ne.s32.totalorder %s38, %s41
    %p47 = scmp.eq.s32.totalorder %s9, 0
    %p48 = por %p46, %p47
    %p49 = scmp.ne.s32.totalorder %s38, %s41
    %p50 = scmp.eq.s32.totalorder %s14, 3
    %p51 = por %p49, %p50
    %p52 = scmp.ne.s32.totalorder %s41, %s42
    %p53 = scmp.eq.s32.totalorder %s14, 0
    %p54 = por %p52, %p53
    %p55 = scmp.ne.s32.totalorder %s41, %s42
    %p56 = scmp.eq.s32.totalorder %s15, 3
    %p57 = por %p55, %p56
    %p59 = scmp.ne.s32.totalorder %s42, %s58
    %p60 = scmp.eq.s32.totalorder %s15, 0
    %p61 = por %p59, %p60
    %s62 = ssub.s32 %s17, %s31
    %p63 = scmp.eq.s32.totalorder %s62, 0
    %s65 = sadd.s32 %s64, 1
    %s66 = scalar_select %p63, %s64, %s65
    %p69 = pneg %p63
    %p70 = scmp.eq.s32.totalorder %s9, 3
    %p71 = por %p69, %p70
    %p72 = scmp.ne.s32.totalorder %s64, %s67
    %p73 = scmp.eq.s32.totalorder %s9, 0
    %p74 = por %p72, %p73
    %p75 = scmp.ne.s32.totalorder %s64, %s67
    %p76 = scmp.eq.s32.totalorder %s14, 3
    %p77 = por %p75, %p76
    %p78 = scmp.ne.s32.totalorder %s67, %s68
    %p79 = scmp.eq.s32.totalorder %s14, 0
    %p80 = por %p78, %p79
    %p81 = scmp.ne.s32.totalorder %s67, %s68
    %p82 = scmp.eq.s32.totalorder %s15, 3
    %p83 = por %p81, %p82
    %p85 = scmp.ne.s32.totalorder %s68, %s84
    %p86 = scmp.eq.s32.totalorder %s15, 0
    %p87 = por %p85, %p86
    %s88 = ssub.s32 %s17, %s31
    %p89 = scmp.eq.s32.totalorder %s88, 0
    %s91 = sadd.s32 %s90, 1
    %s92 = scalar_select %p89, %s90, %s91
    %p95 = pneg %p89
    %p96 = scmp.eq.s32.totalorder %s9, 3
    %p97 = por %p95, %p96
    %p98 = scmp.ne.s32.totalorder %s90, %s93
    %p99 = scmp.eq.s32.totalorder %s9, 0
    %p100 = por %p98, %p99
    %p101 = scmp.ne.s32.totalorder %s90, %s93
    %p102 = scmp.eq.s32.totalorder %s14, 3
    %p103 = por %p101, %p102
    %p104 = scmp.ne.s32.totalorder %s93, %s94
    %p105 = scmp.eq.s32.totalorder %s14, 0
    %p106 = por %p104, %p105
    %p107 = scmp.ne.s32.totalorder %s93, %s94
    %p108 = scmp.eq.s32.totalorder %s15, 3
    %p109 = por %p107, %p108
    %p111 = scmp.ne.s32.totalorder %s94, %s110
    %p112 = scmp.eq.s32.totalorder %s15, 0
    %p113 = por %p111, %p112
    %s114 = ssub.s32 %s16, %s35
    %s115 = ssub.s32 %s18, %s27
    %s116 = sor.u32 %s114, %s115
    %s117 = ssub.s32 %s17, %s31
    %s118 = sor.u32 %s116, %s117
    %p119 = scmp.eq.s32.totalorder %s118, 0
    %s121 = sadd.s32 %s120, 1
    %s122 = scalar_select %p119, %s120, %s121
    %p125 = pneg %p119
    %p126 = scmp.eq.s32.totalorder %s9, 3
    %p127 = por %p125, %p126
    %p128 = scmp.ne.s32.totalorder %s120, %s123
    %p129 = scmp.eq.s32.totalorder %s9, 0
    %p130 = por %p128, %p129
    %p131 = scmp.ne.s32.totalorder %s120, %s123
    %p132 = scmp.eq.s32.totalorder %s14, 3
    %p133 = por %p131, %p132
    %p134 = scmp.ne.s32.totalorder %s123, %s124
    %p135 = scmp.eq.s32.totalorder %s14, 0
    %p136 = por %p134, %p135
    %p137 = scmp.ne.s32.totalorder %s123, %s124
    %p138 = scmp.eq.s32.totalorder %s15, 3
    %p139 = por %p137, %p138
    %p141 = scmp.ne.s32.totalorder %s124, %s140
    %p142 = scmp.eq.s32.totalorder %s15, 0
    %p143 = por %p141, %p142
    %p144 = scmp.le.s32.totalorder 1, %s9
    %p145 = scmp.lt.s32.totalorder %s9, 5
    %p146 = pnand %p144, %p145
    %p147 = pneg %p146
    // Predicated region
    $region9: #{bottleneck_forward.4} parent=5 // pred_check
      _
    $region10: #{bottleneck_forward.4} parent=5 // pred_check_branch
      %149 = sbr.rel (%p146) target = $region12
    $region11: #{bottleneck_forward.4} parent=5 // pred_region
      %s150 = ssub.s32 %s9, 1
      // Predicated region
      $region13: #{bottleneck_forward.4} parent=11 // pred_check
        %p151 = pneg %p80
      $region14: #{bottleneck_forward.4} parent=11 // pred_check_branch
        %153 = sbr.rel (%p151) target = $region16
      $region15: #{bottleneck_forward.4} parent=11 // pred_region
        %p154 = scmp.lt.s32.totalorder %s20, 0
        %s155 = scalar_select %p154, %s20, 0
        %s156 = smul.addr %s155, 4
        %s157 = scalar_lea.vmem %s1, %s156
      $region16: #{bottleneck_forward.4} parent=11 // pred_fallthru
        _
      // Predicated region
      $region17: #{bottleneck_forward.4} parent=11 // pred_check
        %p158 = pneg %p106
      $region18: #{bottleneck_forward.4} parent=11 // pred_check_branch
        %160 = sbr.rel (%p158) target = $region20
      $region19: #{bottleneck_forward.4} parent=11 // pred_region
        %p161 = scmp.lt.s32.totalorder %s20, 0
        %s162 = scalar_select %p161, %s20, 0
        %s163 = scalar_lea.vmem %s2, %s162
      $region20: #{bottleneck_forward.4} parent=11 // pred_fallthru
        _
    $region12: #{bottleneck_forward.4} parent=5 // pred_fallthru
      _
    %p164 = scmp.lt.s32.totalorder %s9, 4
    // Predicated region
    $region21: #{bottleneck_forward.4} parent=5 // pred_check
      %p165 = pneg %p164
    $region22: #{bottleneck_forward.4} parent=5 // pred_check_branch
      %167 = sbr.rel (%p165) target = $region24
    $region23: #{bottleneck_forward.4} parent=5 // pred_region
      // Predicated region
      $region25: #{bottleneck_forward.4} parent=23 // pred_check
        %p168 = pneg %p48
      $region26: #{bottleneck_forward.4} parent=23 // pred_check_branch
        %170 = sbr.rel (%p168) target = $region28
      $region27: #{bottleneck_forward.4} parent=23 // pred_region
        %p171 = scmp.lt.s32.totalorder %s16, 1
        %s172 = scalar_select %p171, %s16, 1
        %s173 = smul.addr %s172, 32
        %s174 = smul.addr %s173, 4
        %s175 = scalar_lea.vmem %s0, %s174
      $region28: #{bottleneck_forward.4} parent=23 // pred_fallthru
        _
    $region24: #{bottleneck_forward.4} parent=5 // pred_fallthru
      _
    %p176 = scmp.le.s32.totalorder 1, %s9
    %p177 = scmp.lt.s32.totalorder %s9, 5
    %p178 = pnand %p176, %p177
    %p179 = pneg %p178
    // Predicated region
    $region29: #{bottleneck_forward.4} parent=5 // pred_check
      _
    $region30: #{bottleneck_forward.4} parent=5 // pred_check_branch
      %181 = sbr.rel (%p178) target = $region32
    $region31: #{bottleneck_forward.4} parent=5 // pred_region
      %s182 = ssub.s32 %s9, 1
      %p183 = scmp.lt.s32.totalorder %s19, 1
      %s184 = scalar_select %p183, %s19, 1
      %s185 = smul.addr %s184, 32
      %s186 = smul.addr %s185, 4
      %s187 = scalar_lea.vmem %s0, %s186
      %p188 = pneg %p54
      %p189 = pneg %p51
      %p190 = scmp.lt.s32.totalorder %s20, 0
      %s191 = scalar_select %p190, %s20, 0
      %s192 = smul.addr %s191, 4
      %s193 = scalar_lea.vmem %s1, %s192
      %p194 = pneg %p80
      %p195 = pneg %p77
      %p196 = scmp.lt.s32.totalorder %s20, 0
      %s197 = scalar_select %p196, %s20, 0
      %s198 = scalar_lea.vmem %s2, %s197
      %p199 = pneg %p106
      %p200 = pneg %p103
      %p201 = pneg %p136
      %p202 = pneg %p133
      %s203 = smul.u32 8, %s21
      %p204 = scmp.lt.s32.totalorder %s19, 1
      %s205 = scalar_select %p204, %s19, 1
      %p206 = scmp.lt.s32.totalorder %s203, 15
      %s207 = scalar_select %p206, %s203, 15
      %p208 = scmp.lt.s32.totalorder %s20, 0
      %s209 = scalar_select %p208, %s20, 0
      %s210 = smul.addr %s207, 2
      %s211 = sadd.s32 %s209, %s210
      %s212 = smul.addr %s205, 32
      %s213 = sadd.s32 %s211, %s212
      %s214 = smul.addr %s213, 4
      %s215 = scalar_lea.vmem %s3, %s214
      %p216 = scmp.lt.s32.totalorder %s19, 1
      %s217 = scalar_select %p216, %s19, 1
      %s218 = smul.addr %s217, 32
      %s219 = smul.addr %s218, 4
      %s220 = scalar_lea.vmem %s0, %s219
      %p221 = scmp.lt.s32.totalorder %s20, 0
      %s222 = scalar_select %p221, %s20, 0
      %s223 = smul.addr %s222, 4
      %s224 = scalar_lea.vmem %s1, %s223
      %p225 = scmp.lt.s32.totalorder %s20, 0
      %s226 = scalar_select %p225, %s20, 0
      %s227 = scalar_lea.vmem %s2, %s226
      %s228 = smul.u32 8, %s21
      %p229 = scmp.lt.s32.totalorder %s19, 1
      %s230 = scalar_select %p229, %s19, 1
      %p231 = scmp.lt.s32.totalorder %s228, 15
      %s232 = scalar_select %p231, %s228, 15
      %p233 = scmp.lt.s32.totalorder %s20, 0
      %s234 = scalar_select %p233, %s20, 0
      %s235 = smul.addr %s232, 2
      %s236 = sadd.s32 %s234, %s235
      %s237 = smul.addr %s230, 32
      %s238 = sadd.s32 %s236, %s237
      %s239 = smul.addr %s238, 4
      %s240 = scalar_lea.vmem %s3, %s239
      %s241 = smul.u32 8, %s21
      %s243 = smul.u32 %s21, 8
      %244 = vst [vmem:[#allocation2] sm:$0xf] 0
      %245 = vst [vmem:[#allocation2 + $0x4] sm:$0xf] 0
      %246 = vst [vmem:[#allocation2 + $0x8] sm:$0xf] 0
      %247 = vst [vmem:[#allocation2 + $0xc] sm:$0xf] 0
      %248 = vst [vmem:[#allocation2 + $0x10] sm:$0xf] 0
      %249 = vst [vmem:[#allocation2 + $0x14] sm:$0xf] 0
      %250 = vst [vmem:[#allocation2 + $0x18] sm:$0xf] 0
      %251 = vst [vmem:[#allocation2 + $0x1c] sm:$0xf] 0
      %252 = vst [vmem:[#allocation2 + $0x20] sm:$0xf] 0
      %253 = vst [vmem:[#allocation2 + $0x24] sm:$0xf] 0
      %254 = vst [vmem:[#allocation2 + $0x28] sm:$0xf] 0
      %255 = vst [vmem:[#allocation2 + $0x2c] sm:$0xf] 0
      %256 = vst [vmem:[#allocation2 + $0x30] sm:$0xf] 0
      %257 = vst [vmem:[#allocation2 + $0x34] sm:$0xf] 0
      %258 = vst [vmem:[#allocation2 + $0x38] sm:$0xf] 0
      %259 = vst [vmem:[#allocation2 + $0x3c] sm:$0xf] 0
      %260 = vst [vmem:[#allocation2 + $0x40] sm:$0xf] 0
      %261 = vst [vmem:[#allocation2 + $0x44] sm:$0xf] 0
      %262 = vst [vmem:[#allocation2 + $0x48] sm:$0xf] 0
      %263 = vst [vmem:[#allocation2 + $0x4c] sm:$0xf] 0
      %264 = vst [vmem:[#allocation2 + $0x50] sm:$0xf] 0
      %265 = vst [vmem:[#allocation2 + $0x54] sm:$0xf] 0
      %266 = vst [vmem:[#allocation2 + $0x58] sm:$0xf] 0
      %267 = vst [vmem:[#allocation2 + $0x5c] sm:$0xf] 0
      %268 = vst [vmem:[#allocation2 + $0x60] sm:$0xf] 0
      %269 = vst [vmem:[#allocation2 + $0x64] sm:$0xf] 0
      %270 = vst [vmem:[#allocation2 + $0x68] sm:$0xf] 0
      %271 = vst [vmem:[#allocation2 + $0x6c] sm:$0xf] 0
      %272 = vst [vmem:[#allocation2 + $0x70] sm:$0xf] 0
      %273 = vst [vmem:[#allocation2 + $0x74] sm:$0xf] 0
      %s274 = sadd.s32 %s243, 4294967295
      %p275 = scmp.ge.s32.totalorder %s274, 0
      %p276 = scmp.lt.s32.totalorder %s274, 16
      %p277 = pnand %p275, %p276
      %p278 = pneg %p277
      // Predicated region
      $region33: #{bottleneck_forward.4} parent=31 // pred_check
        _
      $region34: #{bottleneck_forward.4} parent=31 // pred_check_branch
        %280 = sbr.rel (%p277) target = $region36
      $region35: #{bottleneck_forward.4} parent=31 // pred_region
        %s281 = smul.u32 %s274, 2
        %s282 = smul.addr %s281, 4
        %s283 = scalar_lea.vmem %s220, %s282
        %v284 = vld [vmem:[%s283] sm:$0xf]
        %v285 = vld [vmem:[%s283 + $0x4] sm:$0xf]
        %vm286 = vsmask.f32 256
        %vm287 = vsmask.f32 4368
        %vm288 = vmor %vm286, %vm287
        %v290 = vshrl.u32 %v284, 16
        %v292 = vrot.slane %v290, 7
        %v293 = vshll.u32 %v284, 16
        %v295 = vor.u32 %v292, %v293
        %v296 = vrot.slane %v292, 4
        %v298 = vshrl.u32 %v285, 16
        %v300 = vrot.slane %v298, 7
        %v301 = vshll.u32 %v285, 16
        %v303 = vor.u32 %v300, %v301
        %v304 = vsel %vm288, %v296, %v303
        %v305 = vrot.slane %v300, 4
        %vm309 = vcmask 1043456
        %vm310 = vsmask.f32 7938
        %vm311 = vmand %vm309, %vm310
        %v312 = vld [vmem:[#allocation2] sm:$0xf]
        %v313 = vsel %vm311, %v295, %v312
        %314 = vst [vmem:[#allocation2] sm:$0xf] %v313
        %315 = vst [vmem:[#allocation2 + $0x4] sm:$0xf] %v304
        %vm316 = vcmask 1040384
        %vm317 = vmand %vm316, %vm286
        %v318 = vld [vmem:[#allocation2 + $0x8] sm:$0x1]
        %v319 = vsel %vm317, %v305, %v318
        %320 = vst [vmem:[#allocation2 + $0x8] sm:$0x1] %v319
      $region36: #{bottleneck_forward.4} parent=31 // pred_fallthru
        _
      %p321 = scmp.ge.s32.totalorder %s243, 0
      %p322 = scmp.lt.s32.totalorder %s243, 16
      %p323 = pnand %p321, %p322
      %p324 = pneg %p323
      // Predicated region
      $region37: #{bottleneck_forward.4} parent=31 // pred_check
        _
      $region38: #{bottleneck_forward.4} parent=31 // pred_check_branch
        %326 = sbr.rel (%p323) target = $region40
      $region39: #{bottleneck_forward.4} parent=31 // pred_region
        %s327 = smul.u32 %s243, 2
        %s328 = smul.addr %s327, 4
        %s329 = scalar_lea.vmem %s220, %s328
        %v330 = vld [vmem:[%s329] sm:$0xf]
        %v331 = vld [vmem:[%s329 + $0x4] sm:$0xf]
        %vm332 = vsmask.f32 256
        %vm333 = vsmask.f32 4368
        %vm334 = vmor %vm332, %vm333
        %v336 = vshrl.u32 %v330, 16
        %v338 = vrot.slane %v336, 7
        %v339 = vshll.u32 %v330, 16
        %v341 = vor.u32 %v338, %v339
        %v342 = vrot.slane %v338, 4
        %v344 = vshrl.u32 %v331, 16
        %v346 = vrot.slane %v344, 7
        %v347 = vshll.u32 %v331, 16
        %v349 = vor.u32 %v346, %v347
        %v350 = vsel %vm334, %v342, %v349
        %v351 = vrot.slane %v346, 4
        %s355 = scalar_lea.vmem [#allocation2], 12
        %vm356 = vcmask 1043456
        %vm357 = vsmask.f32 7938
        %vm358 = vmand %vm356, %vm357
        %v359 = vld [vmem:[%s355] sm:$0xf]
        %v360 = vsel %vm358, %v341, %v359
        %361 = vst [vmem:[%s355] sm:$0xf] %v360
        %362 = vst [vmem:[%s355 + $0x4] sm:$0xf] %v350
        %vm363 = vcmask 1040384
        %vm364 = vmand %vm363, %vm332
        %v365 = vld [vmem:[%s355 + $0x8] sm:$0x1]
        %v366 = vsel %vm364, %v351, %v365
        %367 = vst [vmem:[%s355 + $0x8] sm:$0x1] %v366
      $region40: #{bottleneck_forward.4} parent=31 // pred_fallthru
        _
      %s368 = sadd.s32 %s243, 1
      %p369 = scmp.ge.s32.totalorder %s368, 0
      %p370 = scmp.lt.s32.totalorder %s368, 16
      %p371 = pnand %p369, %p370
      %p372 = pneg %p371
      // Predicated region
      $region41: #{bottleneck_forward.4} parent=31 // pred_check
        _
      $region42: #{bottleneck_forward.4} parent=31 // pred_check_branch
        %374 = sbr.rel (%p371) target = $region44
      $region43: #{bottleneck_forward.4} parent=31 // pred_region
        %s375 = smul.u32 %s368, 2
        %s376 = smul.addr %s375, 4
        %s377 = scalar_lea.vmem %s220, %s376
        %v378 = vld [vmem:[%s377] sm:$0xf]
        %v379 = vld [vmem:[%s377 + $0x4] sm:$0xf]
        %vm380 = vsmask.f32 256
        %vm381 = vsmask.f32 4368
        %vm382 = vmor %vm380, %vm381
        %v384 = vshrl.u32 %v378, 16
        %v386 = vrot.slane %v384, 7
        %v387 = vshll.u32 %v378, 16
        %v389 = vor.u32 %v386, %v387
        %v390 = vrot.slane %v386, 4
        %v392 = vshrl.u32 %v379, 16
        %v394 = vrot.slane %v392, 7
        %v395 = vshll.u32 %v379, 16
        %v397 = vor.u32 %v394, %v395
        %v398 = vsel %vm382, %v390, %v397
        %v399 = vrot.slane %v394, 4
        %s403 = scalar_lea.vmem [#allocation2], 24
        %vm404 = vcmask 1043456
        %vm405 = vsmask.f32 7938
        %vm406 = vmand %vm404, %vm405
        %v407 = vld [vmem:[%s403] sm:$0xf]
        %v408 = vsel %vm406, %v389, %v407
        %409 = vst [vmem:[%s403] sm:$0xf] %v408
        %410 = vst [vmem:[%s403 + $0x4] sm:$0xf] %v398
        %vm411 = vcmask 1040384
        %vm412 = vmand %vm411, %vm380
        %v413 = vld [vmem:[%s403 + $0x8] sm:$0x1]
        %v414 = vsel %vm412, %v399, %v413
        %415 = vst [vmem:[%s403 + $0x8] sm:$0x1] %v414
      $region44: #{bottleneck_forward.4} parent=31 // pred_fallthru
        _
      %s416 = sadd.s32 %s243, 2
      %p417 = scmp.ge.s32.totalorder %s416, 0
      %p418 = scmp.lt.s32.totalorder %s416, 16
      %p419 = pnand %p417, %p418
      %p420 = pneg %p419
      // Predicated region
      $region45: #{bottleneck_forward.4} parent=31 // pred_check
        _
      $region46: #{bottleneck_forward.4} parent=31 // pred_check_branch
        %422 = sbr.rel (%p419) target = $region48
      $region47: #{bottleneck_forward.4} parent=31 // pred_region
        %s423 = smul.u32 %s416, 2
        %s424 = smul.addr %s423, 4
        %s425 = scalar_lea.vmem %s220, %s424
        %v426 = vld [vmem:[%s425] sm:$0xf]
        %v427 = vld [vmem:[%s425 + $0x4] sm:$0xf]
        %vm428 = vsmask.f32 256
        %vm429 = vsmask.f32 4368
        %vm430 = vmor %vm428, %vm429
        %v432 = vshrl.u32 %v426, 16
        %v434 = vrot.slane %v432, 7
        %v435 = vshll.u32 %v426, 16
        %v437 = vor.u32 %v434, %v435
        %v438 = vrot.slane %v434, 4
        %v440 = vshrl.u32 %v427, 16
        %v442 = vrot.slane %v440, 7
        %v443 = vshll.u32 %v427, 16
        %v445 = vor.u32 %v442, %v443
        %v446 = vsel %vm430, %v438, %v445
        %v447 = vrot.slane %v442, 4
        %s451 = scalar_lea.vmem [#allocation2], 36
        %vm452 = vcmask 1043456
        %vm453 = vsmask.f32 7938
        %vm454 = vmand %vm452, %vm453
        %v455 = vld [vmem:[%s451] sm:$0xf]
        %v456 = vsel %vm454, %v437, %v455
        %457 = vst [vmem:[%s451] sm:$0xf] %v456
        %458 = vst [vmem:[%s451 + $0x4] sm:$0xf] %v446
        %vm459 = vcmask 1040384
        %vm460 = vmand %vm459, %vm428
        %v461 = vld [vmem:[%s451 + $0x8] sm:$0x1]
        %v462 = vsel %vm460, %v447, %v461
        %463 = vst [vmem:[%s451 + $0x8] sm:$0x1] %v462
      $region48: #{bottleneck_forward.4} parent=31 // pred_fallthru
        _
      %s464 = sadd.s32 %s243, 3
      %p465 = scmp.ge.s32.totalorder %s464, 0
      %p466 = scmp.lt.s32.totalorder %s464, 16
      %p467 = pnand %p465, %p466
      %p468 = pneg %p467
      // Predicated region
      $region49: #{bottleneck_forward.4} parent=31 // pred_check
        _
      $region50: #{bottleneck_forward.4} parent=31 // pred_check_branch
        %470 = sbr.rel (%p467) target = $region52
      $region51: #{bottleneck_forward.4} parent=31 // pred_region
        %s471 = smul.u32 %s464, 2
        %s472 = smul.addr %s471, 4
        %s473 = scalar_lea.vmem %s220, %s472
        %v474 = vld [vmem:[%s473] sm:$0xf]
        %v475 = vld [vmem:[%s473 + $0x4] sm:$0xf]
        %vm476 = vsmask.f32 256
        %vm477 = vsmask.f32 4368
        %vm478 = vmor %vm476, %vm477
        %v480 = vshrl.u32 %v474, 16
        %v482 = vrot.slane %v480, 7
        %v483 = vshll.u32 %v474, 16
        %v485 = vor.u32 %v482, %v483
        %v486 = vrot.slane %v482, 4
        %v488 = vshrl.u32 %v475, 16
        %v490 = vrot.slane %v488, 7
        %v491 = vshll.u32 %v475, 16
        %v493 = vor.u32 %v490, %v491
        %v494 = vsel %vm478, %v486, %v493
        %v495 = vrot.slane %v490, 4
        %s499 = scalar_lea.vmem [#allocation2], 48
        %vm500 = vcmask 1043456
        %vm501 = vsmask.f32 7938
        %vm502 = vmand %vm500, %vm501
        %v503 = vld [vmem:[%s499] sm:$0xf]
        %v504 = vsel %vm502, %v485, %v503
        %505 = vst [vmem:[%s499] sm:$0xf] %v504
        %506 = vst [vmem:[%s499 + $0x4] sm:$0xf] %v494
        %vm507 = vcmask 1040384
        %vm508 = vmand %vm507, %vm476
        %v509 = vld [vmem:[%s499 + $0x8] sm:$0x1]
        %v510 = vsel %vm508, %v495, %v509
        %511 = vst [vmem:[%s499 + $0x8] sm:$0x1] %v510
      $region52: #{bottleneck_forward.4} parent=31 // pred_fallthru
        _
      %s512 = sadd.s32 %s243, 4
      %p513 = scmp.ge.s32.totalorder %s512, 0
      %p514 = scmp.lt.s32.totalorder %s512, 16
      %p515 = pnand %p513, %p514
      %p516 = pneg %p515
      // Predicated region
      $region53: #{bottleneck_forward.4} parent=31 // pred_check
        _
      $region54: #{bottleneck_forward.4} parent=31 // pred_check_branch
        %518 = sbr.rel (%p515) target = $region56
      $region55: #{bottleneck_forward.4} parent=31 // pred_region
        %s519 = smul.u32 %s512, 2
        %s520 = smul.addr %s519, 4
        %s521 = scalar_lea.vmem %s220, %s520
        %v522 = vld [vmem:[%s521] sm:$0xf]
        %v523 = vld [vmem:[%s521 + $0x4] sm:$0xf]
        %vm524 = vsmask.f32 256
        %vm525 = vsmask.f32 4368
        %vm526 = vmor %vm524, %vm525
        %v528 = vshrl.u32 %v522, 16
        %v530 = vrot.slane %v528, 7
        %v531 = vshll.u32 %v522, 16
        %v533 = vor.u32 %v530, %v531
        %v534 = vrot.slane %v530, 4
        %v536 = vshrl.u32 %v523, 16
        %v538 = vrot.slane %v536, 7
        %v539 = vshll.u32 %v523, 16
        %v541 = vor.u32 %v538, %v539
        %v542 = vsel %vm526, %v534, %v541
        %v543 = vrot.slane %v538, 4
        %s547 = scalar_lea.vmem [#allocation2], 60
        %vm548 = vcmask 1043456
        %vm549 = vsmask.f32 7938
        %vm550 = vmand %vm548, %vm549
        %v551 = vld [vmem:[%s547] sm:$0xf]
        %v552 = vsel %vm550, %v533, %v551
        %553 = vst [vmem:[%s547] sm:$0xf] %v552
        %554 = vst [vmem:[%s547 + $0x4] sm:$0xf] %v542
        %vm555 = vcmask 1040384
        %vm556 = vmand %vm555, %vm524
        %v557 = vld [vmem:[%s547 + $0x8] sm:$0x1]
        %v558 = vsel %vm556, %v543, %v557
        %559 = vst [vmem:[%s547 + $0x8] sm:$0x1] %v558
      $region56: #{bottleneck_forward.4} parent=31 // pred_fallthru
        _
      %s560 = sadd.s32 %s243, 5
      %p561 = scmp.ge.s32.totalorder %s560, 0
      %p562 = scmp.lt.s32.totalorder %s560, 16
      %p563 = pnand %p561, %p562
      %p564 = pneg %p563
      // Predicated region
      $region57: #{bottleneck_forward.4} parent=31 // pred_check
        _
      $region58: #{bottleneck_forward.4} parent=31 // pred_check_branch
        %566 = sbr.rel (%p563) target = $region60
      $region59: #{bottleneck_forward.4} parent=31 // pred_region
        %s567 = smul.u32 %s560, 2
        %s568 = smul.addr %s567, 4
        %s569 = scalar_lea.vmem %s220, %s568
        %v570 = vld [vmem:[%s569] sm:$0xf]
        %v571 = vld [vmem:[%s569 + $0x4] sm:$0xf]
        %vm572 = vsmask.f32 256
        %vm573 = vsmask.f32 4368
        %vm574 = vmor %vm572, %vm573
        %v576 = vshrl.u32 %v570, 16
        %v578 = vrot.slane %v576, 7
        %v579 = vshll.u32 %v570, 16
        %v581 = vor.u32 %v578, %v579
        %v582 = vrot.slane %v578, 4
        %v584 = vshrl.u32 %v571, 16
        %v586 = vrot.slane %v584, 7
        %v587 = vshll.u32 %v571, 16
        %v589 = vor.u32 %v586, %v587
        %v590 = vsel %vm574, %v582, %v589
        %v591 = vrot.slane %v586, 4
        %s595 = scalar_lea.vmem [#allocation2], 72
        %vm596 = vcmask 1043456
        %vm597 = vsmask.f32 7938
        %vm598 = vmand %vm596, %vm597
        %v599 = vld [vmem:[%s595] sm:$0xf]
        %v600 = vsel %vm598, %v581, %v599
        %601 = vst [vmem:[%s595] sm:$0xf] %v600
        %602 = vst [vmem:[%s595 + $0x4] sm:$0xf] %v590
        %vm603 = vcmask 1040384
        %vm604 = vmand %vm603, %vm572
        %v605 = vld [vmem:[%s595 + $0x8] sm:$0x1]
        %v606 = vsel %vm604, %v591, %v605
        %607 = vst [vmem:[%s595 + $0x8] sm:$0x1] %v606
      $region60: #{bottleneck_forward.4} parent=31 // pred_fallthru
        _
      %s608 = sadd.s32 %s243, 6
      %p609 = scmp.ge.s32.totalorder %s608, 0
      %p610 = scmp.lt.s32.totalorder %s608, 16
      %p611 = pnand %p609, %p610
      %p612 = pneg %p611
      // Predicated region
      $region61: #{bottleneck_forward.4} parent=31 // pred_check
        _
      $region62: #{bottleneck_forward.4} parent=31 // pred_check_branch
        %614 = sbr.rel (%p611) target = $region64
      $region63: #{bottleneck_forward.4} parent=31 // pred_region
        %s615 = smul.u32 %s608, 2
        %s616 = smul.addr %s615, 4
        %s617 = scalar_lea.vmem %s220, %s616
        %v618 = vld [vmem:[%s617] sm:$0xf]
        %v619 = vld [vmem:[%s617 + $0x4] sm:$0xf]
        %vm620 = vsmask.f32 256
        %vm621 = vsmask.f32 4368
        %vm622 = vmor %vm620, %vm621
        %v624 = vshrl.u32 %v618, 16
        %v626 = vrot.slane %v624, 7
        %v627 = vshll.u32 %v618, 16
        %v629 = vor.u32 %v626, %v627
        %v630 = vrot.slane %v626, 4
        %v632 = vshrl.u32 %v619, 16
        %v634 = vrot.slane %v632, 7
        %v635 = vshll.u32 %v619, 16
        %v637 = vor.u32 %v634, %v635
        %v638 = vsel %vm622, %v630, %v637
        %v639 = vrot.slane %v634, 4
        %s643 = scalar_lea.vmem [#allocation2], 84
        %vm644 = vcmask 1043456
        %vm645 = vsmask.f32 7938
        %vm646 = vmand %vm644, %vm645
        %v647 = vld [vmem:[%s643] sm:$0xf]
        %v648 = vsel %vm646, %v629, %v647
        %649 = vst [vmem:[%s643] sm:$0xf] %v648
        %650 = vst [vmem:[%s643 + $0x4] sm:$0xf] %v638
        %vm651 = vcmask 1040384
        %vm652 = vmand %vm651, %vm620
        %v653 = vld [vmem:[%s643 + $0x8] sm:$0x1]
        %v654 = vsel %vm652, %v639, %v653
        %655 = vst [vmem:[%s643 + $0x8] sm:$0x1] %v654
      $region64: #{bottleneck_forward.4} parent=31 // pred_fallthru
        _
      %s656 = sadd.s32 %s243, 7
      %p657 = scmp.ge.s32.totalorder %s656, 0
      %p658 = scmp.lt.s32.totalorder %s656, 16
      %p659 = pnand %p657, %p658
      %p660 = pneg %p659
      // Predicated region
      $region65: #{bottleneck_forward.4} parent=31 // pred_check
        _
      $region66: #{bottleneck_forward.4} parent=31 // pred_check_branch
        %662 = sbr.rel (%p659) target = $region68
      $region67: #{bottleneck_forward.4} parent=31 // pred_region
        %s663 = smul.u32 %s656, 2
        %s664 = smul.addr %s663, 4
        %s665 = scalar_lea.vmem %s220, %s664
        %v666 = vld [vmem:[%s665] sm:$0xf]
        %v667 = vld [vmem:[%s665 + $0x4] sm:$0xf]
        %vm668 = vsmask.f32 256
        %vm669 = vsmask.f32 4368
        %vm670 = vmor %vm668, %vm669
        %v672 = vshrl.u32 %v666, 16
        %v674 = vrot.slane %v672, 7
        %v675 = vshll.u32 %v666, 16
        %v677 = vor.u32 %v674, %v675
        %v678 = vrot.slane %v674, 4
        %v680 = vshrl.u32 %v667, 16
        %v682 = vrot.slane %v680, 7
        %v683 = vshll.u32 %v667, 16
        %v685 = vor.u32 %v682, %v683
        %v686 = vsel %vm670, %v678, %v685
        %v687 = vrot.slane %v682, 4
        %s691 = scalar_lea.vmem [#allocation2], 96
        %vm692 = vcmask 1043456
        %vm693 = vsmask.f32 7938
        %vm694 = vmand %vm692, %vm693
        %v695 = vld [vmem:[%s691] sm:$0xf]
        %v696 = vsel %vm694, %v677, %v695
        %697 = vst [vmem:[%s691] sm:$0xf] %v696
        %698 = vst [vmem:[%s691 + $0x4] sm:$0xf] %v686
        %vm699 = vcmask 1040384
        %vm700 = vmand %vm699, %vm668
        %v701 = vld [vmem:[%s691 + $0x8] sm:$0x1]
        %v702 = vsel %vm700, %v687, %v701
        %703 = vst [vmem:[%s691 + $0x8] sm:$0x1] %v702
      $region68: #{bottleneck_forward.4} parent=31 // pred_fallthru
        _
      %s704 = sadd.s32 %s243, 8
      %p705 = scmp.ge.s32.totalorder %s704, 0
      %p706 = scmp.lt.s32.totalorder %s704, 16
      %p707 = pnand %p705, %p706
      %p708 = pneg %p707
      // Predicated region
      $region69: #{bottleneck_forward.4} parent=31 // pred_check
        _
      $region70: #{bottleneck_forward.4} parent=31 // pred_check_branch
        %710 = sbr.rel (%p707) target = $region72
      $region71: #{bottleneck_forward.4} parent=31 // pred_region
        %s711 = smul.u32 %s704, 2
        %s712 = smul.addr %s711, 4
        %s713 = scalar_lea.vmem %s220, %s712
        %v714 = vld [vmem:[%s713] sm:$0xf]
        %v715 = vld [vmem:[%s713 + $0x4] sm:$0xf]
        %vm716 = vsmask.f32 256
        %vm717 = vsmask.f32 4368
        %vm718 = vmor %vm716, %vm717
        %v720 = vshrl.u32 %v714, 16
        %v722 = vrot.slane %v720, 7
        %v723 = vshll.u32 %v714, 16
        %v725 = vor.u32 %v722, %v723
        %v726 = vrot.slane %v722, 4
        %v728 = vshrl.u32 %v715, 16
        %v730 = vrot.slane %v728, 7
        %v731 = vshll.u32 %v715, 16
        %v733 = vor.u32 %v730, %v731
        %v734 = vsel %vm718, %v726, %v733
        %v735 = vrot.slane %v730, 4
        %s739 = scalar_lea.vmem [#allocation2], 108
        %vm740 = vcmask 1043456
        %vm741 = vsmask.f32 7938
        %vm742 = vmand %vm740, %vm741
        %v743 = vld [vmem:[%s739] sm:$0xf]
        %v744 = vsel %vm742, %v725, %v743
        %745 = vst [vmem:[%s739] sm:$0xf] %v744
        %746 = vst [vmem:[%s739 + $0x4] sm:$0xf] %v734
        %vm747 = vcmask 1040384
        %vm748 = vmand %vm747, %vm716
        %v749 = vld [vmem:[%s739 + $0x8] sm:$0x1]
        %v750 = vsel %vm748, %v735, %v749
        %751 = vst [vmem:[%s739 + $0x8] sm:$0x1] %v750
      $region72: #{bottleneck_forward.4} parent=31 // pred_fallthru
        _
      %v752 = vld [vmem:[#allocation2] sm:$0xf]
      %v753 = vld [vmem:[#allocation2 + $0x4] sm:$0xf]
      %v754 = vld [vmem:[#allocation2 + $0x8] sm:$0xf]
      %v755 = vld [vmem:[#allocation2 + $0xc] sm:$0xf]
      %v756 = vld [vmem:[#allocation2 + $0x10] sm:$0xf]
      %v757 = vld [vmem:[#allocation2 + $0x14] sm:$0xf]
      %v758 = vld [vmem:[#allocation2 + $0x18] sm:$0xf]
      %v759 = vld [vmem:[#allocation2 + $0x1c] sm:$0xf]
      %v760 = vld [vmem:[#allocation2 + $0x20] sm:$0xf]
      %v761 = vld [vmem:[#allocation2 + $0x24] sm:$0xf]
      %v762 = vld [vmem:[#allocation2 + $0x28] sm:$0xf]
      %v763 = vld [vmem:[#allocation2 + $0x2c] sm:$0xf]
      %v764 = vld [vmem:[#allocation2 + $0x30] sm:$0xf]
      %v765 = vld [vmem:[#allocation2 + $0x34] sm:$0xf]
      %v766 = vld [vmem:[#allocation2 + $0x38] sm:$0xf]
      %v767 = vld [vmem:[#allocation2 + $0x3c] sm:$0xf]
      %v768 = vld [vmem:[#allocation2 + $0x40] sm:$0xf]
      %v769 = vld [vmem:[#allocation2 + $0x44] sm:$0xf]
      %v770 = vld [vmem:[#allocation2 + $0x48] sm:$0xf]
      %v771 = vld [vmem:[#allocation2 + $0x4c] sm:$0xf]
      %v772 = vld [vmem:[#allocation2 + $0x50] sm:$0xf]
      %v773 = vld [vmem:[#allocation2 + $0x54] sm:$0xf]
      %v774 = vld [vmem:[#allocation2 + $0x58] sm:$0xf]
      %v775 = vld [vmem:[#allocation2 + $0x5c] sm:$0xf]
      %v776 = vld [vmem:[%s224] sm:$0xf]
      %v777 = vld [vmem:[%s224 + $0x4] sm:$0xf]
      %v778 = vld [vmem:[%s224 + $0x8] sm:$0xf]
      %v779 = vld [vmem:[%s224 + $0xc] sm:$0xf]
      %v780 = vld [vmem:[%s224 + $0x10] sm:$0xf]
      %v781 = vld [vmem:[%s224 + $0x14] sm:$0xf]
      %v782 = vld [vmem:[%s224 + $0x18] sm:$0xf]
      %v783 = vld [vmem:[%s224 + $0x1c] sm:$0xf]
      %v784 = vld [vmem:[%s224 + $0x20] sm:$0xf]
      %v785 = vld [vmem:[%s224 + $0x24] sm:$0xf]
      %v786 = vld [vmem:[%s224 + $0x28] sm:$0xf]
      %v787 = vld [vmem:[%s224 + $0x2c] sm:$0xf]
      %v788 = vld [vmem:[%s224 + $0x30] sm:$0xf]
      %v789 = vld [vmem:[%s224 + $0x34] sm:$0xf]
      %v790 = vld [vmem:[%s224 + $0x38] sm:$0xf]
      %v791 = vld [vmem:[%s224 + $0x3c] sm:$0xf]
      %v792 = vld [vmem:[%s224 + $0x40] sm:$0xf]
      %v793 = vld [vmem:[%s224 + $0x44] sm:$0xf]
      %v794 = vld [vmem:[%s224 + $0x48] sm:$0xf]
      %v795 = vld [vmem:[%s224 + $0x4c] sm:$0xf]
      %v796 = vld [vmem:[%s224 + $0x50] sm:$0xf]
      %v797 = vld [vmem:[%s224 + $0x54] sm:$0xf]
      %v798 = vld [vmem:[%s224 + $0x58] sm:$0xf]
      %v799 = vld [vmem:[%s224 + $0x5c] sm:$0xf]
      %v800 = vld [vmem:[%s224 + $0x60] sm:$0xf]
      %v801 = vld [vmem:[%s224 + $0x64] sm:$0xf]
      %v802 = vld [vmem:[%s224 + $0x68] sm:$0xf]
      %v803 = vld [vmem:[%s224 + $0x6c] sm:$0xf]
      %v804 = vld [vmem:[%s224 + $0x70] sm:$0xf]
      %v805 = vld [vmem:[%s224 + $0x74] sm:$0xf]
      %v806 = vld [vmem:[%s224 + $0x78] sm:$0xf]
      %v807 = vld [vmem:[%s224 + $0x7c] sm:$0xf]
      %v808 = vld [vmem:[%s224 + $0x80] sm:$0xf]
      %v809 = vld [vmem:[%s224 + $0x84] sm:$0xf]
      %v810 = vld [vmem:[%s224 + $0x88] sm:$0xf]
      %v811 = vld [vmem:[%s224 + $0x8c] sm:$0xf]
      %v812 = vld [vmem:[%s224 + $0x90] sm:$0xf]
      %v813 = vld [vmem:[%s224 + $0x94] sm:$0xf]
      %v814 = vld [vmem:[%s224 + $0x98] sm:$0xf]
      %v815 = vld [vmem:[%s224 + $0x9c] sm:$0xf]
      %v816 = vld [vmem:[%s224 + $0xa0] sm:$0xf]
      %v817 = vld [vmem:[%s224 + $0xa4] sm:$0xf]
      %v818 = vld [vmem:[%s224 + $0xa8] sm:$0xf]
      %v819 = vld [vmem:[%s224 + $0xac] sm:$0xf]
      %v820 = vld [vmem:[%s224 + $0xb0] sm:$0xf]
      %v821 = vld [vmem:[%s224 + $0xb4] sm:$0xf]
      %v822 = vld [vmem:[%s224 + $0xb8] sm:$0xf]
      %v823 = vld [vmem:[%s224 + $0xbc] sm:$0xf]
      %s824 = scalar_lea.vmem [#allocation2], 12
      %v825 = vld [vmem:[%s824] sm:$0xf]
      %v826 = vld [vmem:[%s824 + $0x4] sm:$0xf]
      %v827 = vld [vmem:[%s824 + $0x8] sm:$0xf]
      %v828 = vld [vmem:[%s824 + $0xc] sm:$0xf]
      %v829 = vld [vmem:[%s824 + $0x10] sm:$0xf]
      %v830 = vld [vmem:[%s824 + $0x14] sm:$0xf]
      %v831 = vld [vmem:[%s824 + $0x18] sm:$0xf]
      %v832 = vld [vmem:[%s824 + $0x1c] sm:$0xf]
      %v833 = vld [vmem:[%s824 + $0x20] sm:$0xf]
      %v834 = vld [vmem:[%s824 + $0x24] sm:$0xf]
      %v835 = vld [vmem:[%s824 + $0x28] sm:$0xf]
      %v836 = vld [vmem:[%s824 + $0x2c] sm:$0xf]
      %v837 = vld [vmem:[%s824 + $0x30] sm:$0xf]
      %v838 = vld [vmem:[%s824 + $0x34] sm:$0xf]
      %v839 = vld [vmem:[%s824 + $0x38] sm:$0xf]
      %v840 = vld [vmem:[%s824 + $0x3c] sm:$0xf]
      %v841 = vld [vmem:[%s824 + $0x40] sm:$0xf]
      %v842 = vld [vmem:[%s824 + $0x44] sm:$0xf]
      %v843 = vld [vmem:[%s824 + $0x48] sm:$0xf]
      %v844 = vld [vmem:[%s824 + $0x4c] sm:$0xf]
      %v845 = vld [vmem:[%s824 + $0x50] sm:$0xf]
      %v846 = vld [vmem:[%s824 + $0x54] sm:$0xf]
      %v847 = vld [vmem:[%s824 + $0x58] sm:$0xf]
      %v848 = vld [vmem:[%s824 + $0x5c] sm:$0xf]
      %v849 = vld [vmem:[%s224 + $0xc0] sm:$0xf]
      %v850 = vld [vmem:[%s224 + $0xc4] sm:$0xf]
      %v851 = vld [vmem:[%s224 + $0xc8] sm:$0xf]
      %v852 = vld [vmem:[%s224 + $0xcc] sm:$0xf]
      %v853 = vld [vmem:[%s224 + $0xd0] sm:$0xf]
      %v854 = vld [vmem:[%s224 + $0xd4] sm:$0xf]
      %v855 = vld [vmem:[%s224 + $0xd8] sm:$0xf]
      %v856 = vld [vmem:[%s224 + $0xdc] sm:$0xf]
      %v857 = vld [vmem:[%s224 + $0xe0] sm:$0xf]
      %v858 = vld [vmem:[%s224 + $0xe4] sm:$0xf]
      %v859 = vld [vmem:[%s224 + $0xe8] sm:$0xf]
      %v860 = vld [vmem:[%s224 + $0xec] sm:$0xf]
      %v861 = vld [vmem:[%s224 + $0xf0] sm:$0xf]
      %v862 = vld [vmem:[%s224 + $0xf4] sm:$0xf]
      %v863 = vld [vmem:[%s224 + $0xf8] sm:$0xf]
      %v864 = vld [vmem:[%s224 + $0xfc] sm:$0xf]
      %v889 = vunpack.c.l.b16 %v825
      %v890 = vunpack.c.l.b16 %v826
      %v891 = vunpack.c.l.b16 %v827
      %v892 = vunpack.c.l.b16 %v828
      %v893 = vunpack.c.l.b16 %v829
      %v894 = vunpack.c.l.b16 %v830
      %v895 = vunpack.c.l.b16 %v831
      %v896 = vunpack.c.l.b16 %v832
      %v897 = vunpack.c.l.b16 %v833
      %v898 = vunpack.c.l.b16 %v834
      %v899 = vunpack.c.l.b16 %v835
      %v900 = vunpack.c.l.b16 %v836
      %v901 = vunpack.c.l.b16 %v837
      %v902 = vunpack.c.l.b16 %v838
      %v903 = vunpack.c.l.b16 %v839
      %v904 = vunpack.c.l.b16 %v840
      %v905 = vunpack.c.l.b16 %v841
      %v906 = vunpack.c.l.b16 %v842
      %v907 = vunpack.c.l.b16 %v843
      %v908 = vunpack.c.l.b16 %v844
      %v909 = vunpack.c.l.b16 %v845
      %v910 = vunpack.c.l.b16 %v846
      %v911 = vunpack.c.l.b16 %v847
      %v912 = vunpack.c.l.b16 %v848
      %v913 = vpack.c.b16 %v890, %v889
      %v914 = vpack.c.b16 %v892, %v891
      %v915 = vpack.c.b16 %v894, %v893
      %v916 = vpack.c.b16 %v896, %v895
      %v917 = vpack.c.b16 %v898, %v897
      %v918 = vpack.c.b16 %v900, %v899
      %v919 = vpack.c.b16 %v902, %v901
      %v920 = vpack.c.b16 %v904, %v903
      %v921 = vpack.c.b16 %v906, %v905
      %v922 = vpack.c.b16 %v908, %v907
      %v923 = vpack.c.b16 %v910, %v909
      %v924 = vpack.c.b16 %v912, %v911
      %v953 = vunpack.c.l.b16 %v849
      %v954 = vunpack.c.l.b16 %v850
      %v955 = vunpack.c.l.b16 %v851
      %v956 = vunpack.c.l.b16 %v852
      %v957 = vunpack.c.l.b16 %v853
      %v958 = vunpack.c.l.b16 %v854
      %v959 = vunpack.c.l.b16 %v855
      %v960 = vunpack.c.l.b16 %v856
      %v961 = vunpack.c.l.b16 %v857
      %v962 = vunpack.c.l.b16 %v858
      %v963 = vunpack.c.l.b16 %v859
      %v964 = vunpack.c.l.b16 %v860
      %v965 = vunpack.c.l.b16 %v861
      %v966 = vunpack.c.l.b16 %v862
      %v967 = vunpack.c.l.b16 %v863
      %v968 = vunpack.c.l.b16 %v864
      %v969 = vpack.c.b16 %v954, %v953
      %v970 = vpack.c.b16 %v956, %v955
      %v971 = vpack.c.b16 %v958, %v957
      %v972 = vpack.c.b16 %v960, %v959
      %v973 = vpack.c.b16 %v962, %v961
      %v974 = vpack.c.b16 %v964, %v963
      %v975 = vpack.c.b16 %v966, %v965
      %v976 = vpack.c.b16 %v968, %v967
      %985 = vmatpush.bf16.msra.mxu0 %v976
      %986 = vmatpush.bf16.msra.mxu0 %v975
      %987 = vmatpush.bf16.msra.mxu0 %v974
      %988 = vmatpush.bf16.msra.mxu0 %v973
      %989 = vmatpush.bf16.msra.mxu0 %v972
      %990 = vmatpush.bf16.msra.mxu0 %v971
      %991 = vmatpush.bf16.msra.mxu0 %v970
      %992 = vmatpush.bf16.msra.mxu0 %v969
      %993 = vmatmul.bf16.gmra.mxu0 %v913
      %v994 = vpop.f32.mrf.mxu0
      %v995 = vadd.f32 0.0, %v994
      %v996 = vpop.f32.mrf.mxu0
      %v997 = vadd.f32 0.0, %v996
      %998 = vmatmul.bf16.gmra.mxu0 %v914
      %v999 = vpop.f32.mrf.mxu0
      %v1000 = vpop.f32.mrf.mxu0
      %v1001 = vadd.f32 0.0, %v1000
      %1002 = vmatmul.bf16.gmra.mxu0 %v915
      %v1003 = vpop.f32.mrf.mxu0
      %v1004 = vadd.f32 0.0, %v1003
      %v1005 = vpop.f32.mrf.mxu0
      %1006 = vmatmul.bf16.gmra.mxu0 %v916
      %v1007 = vpop.f32.mrf.mxu0
      %v1008 = vadd.f32 0.0, %v1007
      %v1009 = vpop.f32.mrf.mxu0
      %v1010 = vadd.f32 0.0, %v1009
      %1011 = vmatmul.bf16.gmra.mxu0 %v917
      %v1012 = vpop.f32.mrf.mxu0
      %v1013 = vpop.f32.mrf.mxu0
      %v1014 = vadd.f32 0.0, %v1013
      %1015 = vmatmul.bf16.gmra.mxu0 %v918
      %v1016 = vpop.f32.mrf.mxu0
      %v1017 = vadd.f32 0.0, %v1016
      %v1018 = vpop.f32.mrf.mxu0
      %1019 = vmatmul.bf16.gmra.mxu0 %v919
      %v1020 = vpop.f32.mrf.mxu0
      %v1021 = vadd.f32 0.0, %v1020
      %v1022 = vpop.f32.mrf.mxu0
      %v1023 = vadd.f32 0.0, %v1022
      %1024 = vmatmul.bf16.gmra.mxu0 %v920
      %v1025 = vpop.f32.mrf.mxu0
      %v1026 = vpop.f32.mrf.mxu0
      %v1027 = vadd.f32 0.0, %v1026
      %1028 = vmatmul.bf16.gmra.mxu0 %v921
      %v1029 = vpop.f32.mrf.mxu0
      %v1030 = vadd.f32 0.0, %v1029
      %v1031 = vpop.f32.mrf.mxu0
      %1032 = vmatmul.bf16.gmra.mxu0 %v922
      %v1033 = vpop.f32.mrf.mxu0
      %v1034 = vadd.f32 0.0, %v1033
      %v1035 = vpop.f32.mrf.mxu0
      %v1036 = vadd.f32 0.0, %v1035
      %1037 = vmatmul.bf16.gmra.mxu0 %v923
      %v1038 = vpop.f32.mrf.mxu0
      %v1039 = vpop.f32.mrf.mxu0
      %v1040 = vadd.f32 0.0, %v1039
      %1041 = vmatmul.bf16.gmra.mxu0 %v924
      %v1042 = vpop.f32.mrf.mxu0
      %v1043 = vadd.f32 0.0, %v1042
      %v1044 = vpop.f32.mrf.mxu0
      %1045 = vdwg.mxu0
      %v1070 = vunpack.c.l.b16 %v752
      %v1071 = vunpack.c.l.b16 %v753
      %v1072 = vunpack.c.l.b16 %v754
      %v1073 = vunpack.c.l.b16 %v755
      %v1074 = vunpack.c.l.b16 %v756
      %v1075 = vunpack.c.l.b16 %v757
      %v1076 = vunpack.c.l.b16 %v758
      %v1077 = vunpack.c.l.b16 %v759
      %v1078 = vunpack.c.l.b16 %v760
      %v1079 = vunpack.c.l.b16 %v761
      %v1080 = vunpack.c.l.b16 %v762
      %v1081 = vunpack.c.l.b16 %v763
      %v1082 = vunpack.c.l.b16 %v764
      %v1083 = vunpack.c.l.b16 %v765
      %v1084 = vunpack.c.l.b16 %v766
      %v1085 = vunpack.c.l.b16 %v767
      %v1086 = vunpack.c.l.b16 %v768
      %v1087 = vunpack.c.l.b16 %v769
      %v1088 = vunpack.c.l.b16 %v770
      %v1089 = vunpack.c.l.b16 %v771
      %v1090 = vunpack.c.l.b16 %v772
      %v1091 = vunpack.c.l.b16 %v773
      %v1092 = vunpack.c.l.b16 %v774
      %v1093 = vunpack.c.l.b16 %v775
      %v1094 = vpack.c.b16 %v1071, %v1070
      %v1095 = vpack.c.b16 %v1073, %v1072
      %v1096 = vpack.c.b16 %v1075, %v1074
      %v1097 = vpack.c.b16 %v1077, %v1076
      %v1098 = vpack.c.b16 %v1079, %v1078
      %v1099 = vpack.c.b16 %v1081, %v1080
      %v1100 = vpack.c.b16 %v1083, %v1082
      %v1101 = vpack.c.b16 %v1085, %v1084
      %v1102 = vpack.c.b16 %v1087, %v1086
      %v1103 = vpack.c.b16 %v1089, %v1088
      %v1104 = vpack.c.b16 %v1091, %v1090
      %v1105 = vpack.c.b16 %v1093, %v1092
      %v1134 = vunpack.c.l.b16 %v776
      %v1135 = vunpack.c.l.b16 %v777
      %v1136 = vunpack.c.l.b16 %v778
      %v1137 = vunpack.c.l.b16 %v779
      %v1138 = vunpack.c.l.b16 %v780
      %v1139 = vunpack.c.l.b16 %v781
      %v1140 = vunpack.c.l.b16 %v782
      %v1141 = vunpack.c.l.b16 %v783
      %v1142 = vunpack.c.l.b16 %v784
      %v1143 = vunpack.c.l.b16 %v785
      %v1144 = vunpack.c.l.b16 %v786
      %v1145 = vunpack.c.l.b16 %v787
      %v1146 = vunpack.c.l.b16 %v788
      %v1147 = vunpack.c.l.b16 %v789
      %v1148 = vunpack.c.l.b16 %v790
      %v1149 = vunpack.c.l.b16 %v791
      %v1150 = vpack.c.b16 %v1135, %v1134
      %v1151 = vpack.c.b16 %v1137, %v1136
      %v1152 = vpack.c.b16 %v1139, %v1138
      %v1153 = vpack.c.b16 %v1141, %v1140
      %v1154 = vpack.c.b16 %v1143, %v1142
      %v1155 = vpack.c.b16 %v1145, %v1144
      %v1156 = vpack.c.b16 %v1147, %v1146
      %v1157 = vpack.c.b16 %v1149, %v1148
      %1166 = vmatpush.bf16.msra.mxu0 %v1157
      %1167 = vmatpush.bf16.msra.mxu0 %v1156
      %1168 = vmatpush.bf16.msra.mxu0 %v1155
      %1169 = vmatpush.bf16.msra.mxu0 %v1154
      %1170 = vmatpush.bf16.msra.mxu0 %v1153
      %1171 = vmatpush.bf16.msra.mxu0 %v1152
      %1172 = vmatpush.bf16.msra.mxu0 %v1151
      %1173 = vmatpush.bf16.msra.mxu0 %v1150
      %1174 = vmatmul.bf16.gmra.mxu0 %v1094
      %v1175 = vpop.f32.mrf.mxu0
      %v1176 = vadd.f32 %v995, %v1175
      %v1177 = vpop.f32.mrf.mxu0
      %v1178 = vadd.f32 %v997, %v1177
      %1179 = vmatmul.bf16.gmra.mxu0 %v1095
      %v1180 = vpop.f32.mrf.mxu0
      %v1181 = vpop.f32.mrf.mxu0
      %v1182 = vadd.f32 %v1001, %v1181
      %1183 = vmatmul.bf16.gmra.mxu0 %v1096
      %v1184 = vpop.f32.mrf.mxu0
      %v1185 = vadd.f32 %v1004, %v1184
      %v1186 = vpop.f32.mrf.mxu0
      %1187 = vmatmul.bf16.gmra.mxu0 %v1097
      %v1188 = vpop.f32.mrf.mxu0
      %v1189 = vadd.f32 %v1008, %v1188
      %v1190 = vpop.f32.mrf.mxu0
      %v1191 = vadd.f32 %v1010, %v1190
      %1192 = vmatmul.bf16.gmra.mxu0 %v1098
      %v1193 = vpop.f32.mrf.mxu0
      %v1194 = vpop.f32.mrf.mxu0
      %v1195 = vadd.f32 %v1014, %v1194
      %1196 = vmatmul.bf16.gmra.mxu0 %v1099
      %v1197 = vpop.f32.mrf.mxu0
      %v1198 = vadd.f32 %v1017, %v1197
      %v1199 = vpop.f32.mrf.mxu0
      %1200 = vmatmul.bf16.gmra.mxu0 %v1100
      %v1201 = vpop.f32.mrf.mxu0
      %v1202 = vadd.f32 %v1021, %v1201
      %v1203 = vpop.f32.mrf.mxu0
      %v1204 = vadd.f32 %v1023, %v1203
      %1205 = vmatmul.bf16.gmra.mxu0 %v1101
      %v1206 = vpop.f32.mrf.mxu0
      %v1207 = vpop.f32.mrf.mxu0
      %v1208 = vadd.f32 %v1027, %v1207
      %1209 = vmatmul.bf16.gmra.mxu0 %v1102
      %v1210 = vpop.f32.mrf.mxu0
      %v1211 = vadd.f32 %v1030, %v1210
      %v1212 = vpop.f32.mrf.mxu0
      %1213 = vmatmul.bf16.gmra.mxu0 %v1103
      %v1214 = vpop.f32.mrf.mxu0
      %v1215 = vadd.f32 %v1034, %v1214
      %v1216 = vpop.f32.mrf.mxu0
      %v1217 = vadd.f32 %v1036, %v1216
      %1218 = vmatmul.bf16.gmra.mxu0 %v1104
      %v1219 = vpop.f32.mrf.mxu0
      %v1220 = vpop.f32.mrf.mxu0
      %v1221 = vadd.f32 %v1040, %v1220
      %1222 = vmatmul.bf16.gmra.mxu0 %v1105
      %v1223 = vpop.f32.mrf.mxu0
      %v1224 = vadd.f32 %v1043, %v1223
      %v1225 = vpop.f32.mrf.mxu0
      %1226 = vdwg.mxu0
      %v1227 = vld [vmem:[%s224 + $0x100] sm:$0xf]
      %v1228 = vld [vmem:[%s224 + $0x104] sm:$0xf]
      %v1229 = vld [vmem:[%s224 + $0x108] sm:$0xf]
      %v1230 = vld [vmem:[%s224 + $0x10c] sm:$0xf]
      %v1231 = vld [vmem:[%s224 + $0x110] sm:$0xf]
      %v1232 = vld [vmem:[%s224 + $0x114] sm:$0xf]
      %v1233 = vld [vmem:[%s224 + $0x118] sm:$0xf]
      %v1234 = vld [vmem:[%s224 + $0x11c] sm:$0xf]
      %v1235 = vld [vmem:[%s224 + $0x120] sm:$0xf]
      %v1236 = vld [vmem:[%s224 + $0x124] sm:$0xf]
      %v1237 = vld [vmem:[%s224 + $0x128] sm:$0xf]
      %v1238 = vld [vmem:[%s224 + $0x12c] sm:$0xf]
      %v1239 = vld [vmem:[%s224 + $0x130] sm:$0xf]
      %v1240 = vld [vmem:[%s224 + $0x134] sm:$0xf]
      %v1241 = vld [vmem:[%s224 + $0x138] sm:$0xf]
      %v1242 = vld [vmem:[%s224 + $0x13c] sm:$0xf]
      %v1259 = vunpack.c.l.b16 %v1227
      %v1260 = vunpack.c.l.b16 %v1228
      %v1261 = vunpack.c.l.b16 %v1229
      %v1262 = vunpack.c.l.b16 %v1230
      %v1263 = vunpack.c.l.b16 %v1231
      %v1264 = vunpack.c.l.b16 %v1232
      %v1265 = vunpack.c.l.b16 %v1233
      %v1266 = vunpack.c.l.b16 %v1234
      %v1267 = vunpack.c.l.b16 %v1235
      %v1268 = vunpack.c.l.b16 %v1236
      %v1269 = vunpack.c.l.b16 %v1237
      %v1270 = vunpack.c.l.b16 %v1238
      %v1271 = vunpack.c.l.b16 %v1239
      %v1272 = vunpack.c.l.b16 %v1240
      %v1273 = vunpack.c.l.b16 %v1241
      %v1274 = vunpack.c.l.b16 %v1242
      %v1275 = vpack.c.b16 %v1260, %v1259
      %v1276 = vpack.c.b16 %v1262, %v1261
      %v1277 = vpack.c.b16 %v1264, %v1263
      %v1278 = vpack.c.b16 %v1266, %v1265
      %v1279 = vpack.c.b16 %v1268, %v1267
      %v1280 = vpack.c.b16 %v1270, %v1269
      %v1281 = vpack.c.b16 %v1272, %v1271
      %v1282 = vpack.c.b16 %v1274, %v1273
      %1291 = vmatpush.bf16.msra.mxu0 %v1282
      %1292 = vmatpush.bf16.msra.mxu0 %v1281
      %1293 = vmatpush.bf16.msra.mxu0 %v1280
      %1294 = vmatpush.bf16.msra.mxu0 %v1279
      %1295 = vmatpush.bf16.msra.mxu0 %v1278
      %1296 = vmatpush.bf16.msra.mxu0 %v1277
      %1297 = vmatpush.bf16.msra.mxu0 %v1276
      %1298 = vmatpush.bf16.msra.mxu0 %v1275
      %1299 = vmatmul.bf16.gmra.mxu0 %v913
      %v1300 = vpop.f32.mrf.mxu0
      %v1301 = vadd.f32 0.0, %v1300
      %v1302 = vpop.f32.mrf.mxu0
      %v1303 = vadd.f32 0.0, %v1302
      %1304 = vmatmul.bf16.gmra.mxu0 %v914
      %v1305 = vpop.f32.mrf.mxu0
      %v1306 = vadd.f32 0.0, %v1305
      %v1307 = vpop.f32.mrf.mxu0
      %v1308 = vadd.f32 0.0, %v1307
      %1309 = vmatmul.bf16.gmra.mxu0 %v915
      %v1310 = vpop.f32.mrf.mxu0
      %v1311 = vadd.f32 0.0, %v1310
      %v1312 = vpop.f32.mrf.mxu0
      %v1313 = vadd.f32 0.0, %v1312
      %1314 = vmatmul.bf16.gmra.mxu0 %v916
      %v1315 = vpop.f32.mrf.mxu0
      %v1316 = vadd.f32 0.0, %v1315
      %v1317 = vpop.f32.mrf.mxu0
      %v1318 = vadd.f32 0.0, %v1317
      %1319 = vmatmul.bf16.gmra.mxu0 %v917
      %v1320 = vpop.f32.mrf.mxu0
      %v1321 = vadd.f32 0.0, %v1320
      %v1322 = vpop.f32.mrf.mxu0
      %v1323 = vadd.f32 0.0, %v1322
      %1324 = vmatmul.bf16.gmra.mxu0 %v918
      %v1325 = vpop.f32.mrf.mxu0
      %v1326 = vadd.f32 0.0, %v1325
      %v1327 = vpop.f32.mrf.mxu0
      %v1328 = vadd.f32 0.0, %v1327
      %1329 = vmatmul.bf16.gmra.mxu0 %v919
      %v1330 = vpop.f32.mrf.mxu0
      %v1331 = vadd.f32 0.0, %v1330
      %v1332 = vpop.f32.mrf.mxu0
      %v1333 = vadd.f32 0.0, %v1332
      %1334 = vmatmul.bf16.gmra.mxu0 %v920
      %v1335 = vpop.f32.mrf.mxu0
      %v1336 = vadd.f32 0.0, %v1335
      %v1337 = vpop.f32.mrf.mxu0
      %v1338 = vadd.f32 0.0, %v1337
      %1339 = vmatmul.bf16.gmra.mxu0 %v921
      %v1340 = vpop.f32.mrf.mxu0
      %v1341 = vadd.f32 0.0, %v1340
      %v1342 = vpop.f32.mrf.mxu0
      %v1343 = vadd.f32 0.0, %v1342
      %1344 = vmatmul.bf16.gmra.mxu0 %v922
      %v1345 = vpop.f32.mrf.mxu0
      %v1346 = vadd.f32 0.0, %v1345
      %v1347 = vpop.f32.mrf.mxu0
      %v1348 = vadd.f32 0.0, %v1347
      %1349 = vmatmul.bf16.gmra.mxu0 %v923
      %v1350 = vpop.f32.mrf.mxu0
      %v1351 = vadd.f32 0.0, %v1350
      %v1352 = vpop.f32.mrf.mxu0
      %v1353 = vadd.f32 0.0, %v1352
      %1354 = vmatmul.bf16.gmra.mxu0 %v924
      %v1355 = vpop.f32.mrf.mxu0
      %v1356 = vadd.f32 0.0, %v1355
      %v1357 = vpop.f32.mrf.mxu0
      %v1358 = vadd.f32 0.0, %v1357
      %1359 = vdwg.mxu0
      %v1376 = vunpack.c.l.b16 %v792
      %v1377 = vunpack.c.l.b16 %v793
      %v1378 = vunpack.c.l.b16 %v794
      %v1379 = vunpack.c.l.b16 %v795
      %v1380 = vunpack.c.l.b16 %v796
      %v1381 = vunpack.c.l.b16 %v797
      %v1382 = vunpack.c.l.b16 %v798
      %v1383 = vunpack.c.l.b16 %v799
      %v1384 = vunpack.c.l.b16 %v800
      %v1385 = vunpack.c.l.b16 %v801
      %v1386 = vunpack.c.l.b16 %v802
      %v1387 = vunpack.c.l.b16 %v803
      %v1388 = vunpack.c.l.b16 %v804
      %v1389 = vunpack.c.l.b16 %v805
      %v1390 = vunpack.c.l.b16 %v806
      %v1391 = vunpack.c.l.b16 %v807
      %v1392 = vpack.c.b16 %v1377, %v1376
      %v1393 = vpack.c.b16 %v1379, %v1378
      %v1394 = vpack.c.b16 %v1381, %v1380
      %v1395 = vpack.c.b16 %v1383, %v1382
      %v1396 = vpack.c.b16 %v1385, %v1384
      %v1397 = vpack.c.b16 %v1387, %v1386
      %v1398 = vpack.c.b16 %v1389, %v1388
      %v1399 = vpack.c.b16 %v1391, %v1390
      %1408 = vmatpush.bf16.msra.mxu0 %v1399
      %1409 = vmatpush.bf16.msra.mxu0 %v1398
      %1410 = vmatpush.bf16.msra.mxu0 %v1397
      %1411 = vmatpush.bf16.msra.mxu0 %v1396
      %1412 = vmatpush.bf16.msra.mxu0 %v1395
      %1413 = vmatpush.bf16.msra.mxu0 %v1394
      %1414 = vmatpush.bf16.msra.mxu0 %v1393
      %1415 = vmatpush.bf16.msra.mxu0 %v1392
      %1416 = vmatmul.bf16.gmra.mxu0 %v1094
      %v1417 = vpop.f32.mrf.mxu0
      %v1418 = vadd.f32 %v1301, %v1417
      %v1419 = vpop.f32.mrf.mxu0
      %v1420 = vadd.f32 %v1303, %v1419
      %1421 = vmatmul.bf16.gmra.mxu0 %v1095
      %v1422 = vpop.f32.mrf.mxu0
      %v1423 = vadd.f32 %v1306, %v1422
      %v1424 = vpop.f32.mrf.mxu0
      %v1425 = vadd.f32 %v1308, %v1424
      %1426 = vmatmul.bf16.gmra.mxu0 %v1096
      %v1427 = vpop.f32.mrf.mxu0
      %v1428 = vadd.f32 %v1311, %v1427
      %v1429 = vpop.f32.mrf.mxu0
      %v1430 = vadd.f32 %v1313, %v1429
      %1431 = vmatmul.bf16.gmra.mxu0 %v1097
      %v1432 = vpop.f32.mrf.mxu0
      %v1433 = vadd.f32 %v1316, %v1432
      %v1434 = vpop.f32.mrf.mxu0
      %v1435 = vadd.f32 %v1318, %v1434
      %1436 = vmatmul.bf16.gmra.mxu0 %v1098
      %v1437 = vpop.f32.mrf.mxu0
      %v1438 = vadd.f32 %v1321, %v1437
      %v1439 = vpop.f32.mrf.mxu0
      %v1440 = vadd.f32 %v1323, %v1439
      %1441 = vmatmul.bf16.gmra.mxu0 %v1099
      %v1442 = vpop.f32.mrf.mxu0
      %v1443 = vadd.f32 %v1326, %v1442
      %v1444 = vpop.f32.mrf.mxu0
      %v1445 = vadd.f32 %v1328, %v1444
      %1446 = vmatmul.bf16.gmra.mxu0 %v1100
      %v1447 = vpop.f32.mrf.mxu0
      %v1448 = vadd.f32 %v1331, %v1447
      %v1449 = vpop.f32.mrf.mxu0
      %v1450 = vadd.f32 %v1333, %v1449
      %1451 = vmatmul.bf16.gmra.mxu0 %v1101
      %v1452 = vpop.f32.mrf.mxu0
      %v1453 = vadd.f32 %v1336, %v1452
      %v1454 = vpop.f32.mrf.mxu0
      %v1455 = vadd.f32 %v1338, %v1454
      %1456 = vmatmul.bf16.gmra.mxu0 %v1102
      %v1457 = vpop.f32.mrf.mxu0
      %v1458 = vadd.f32 %v1341, %v1457
      %v1459 = vpop.f32.mrf.mxu0
      %v1460 = vadd.f32 %v1343, %v1459
      %1461 = vmatmul.bf16.gmra.mxu0 %v1103
      %v1462 = vpop.f32.mrf.mxu0
      %v1463 = vadd.f32 %v1346, %v1462
      %v1464 = vpop.f32.mrf.mxu0
      %v1465 = vadd.f32 %v1348, %v1464
      %1466 = vmatmul.bf16.gmra.mxu0 %v1104
      %v1467 = vpop.f32.mrf.mxu0
      %v1468 = vadd.f32 %v1351, %v1467
      %v1469 = vpop.f32.mrf.mxu0
      %v1470 = vadd.f32 %v1353, %v1469
      %1471 = vmatmul.bf16.gmra.mxu0 %v1105
      %v1472 = vpop.f32.mrf.mxu0
      %v1473 = vadd.f32 %v1356, %v1472
      %v1474 = vpop.f32.mrf.mxu0
      %v1475 = vadd.f32 %v1358, %v1474
      %1476 = vdwg.mxu0
      %v1477 = vld [vmem:[%s224 + $0x140] sm:$0xf]
      %v1478 = vld [vmem:[%s224 + $0x144] sm:$0xf]
      %v1479 = vld [vmem:[%s224 + $0x148] sm:$0xf]
      %v1480 = vld [vmem:[%s224 + $0x14c] sm:$0xf]
      %v1481 = vld [vmem:[%s224 + $0x150] sm:$0xf]
      %v1482 = vld [vmem:[%s224 + $0x154] sm:$0xf]
      %v1483 = vld [vmem:[%s224 + $0x158] sm:$0xf]
      %v1484 = vld [vmem:[%s224 + $0x15c] sm:$0xf]
      %v1485 = vld [vmem:[%s224 + $0x160] sm:$0xf]
      %v1486 = vld [vmem:[%s224 + $0x164] sm:$0xf]
      %v1487 = vld [vmem:[%s224 + $0x168] sm:$0xf]
      %v1488 = vld [vmem:[%s224 + $0x16c] sm:$0xf]
      %v1489 = vld [vmem:[%s224 + $0x170] sm:$0xf]
      %v1490 = vld [vmem:[%s224 + $0x174] sm:$0xf]
      %v1491 = vld [vmem:[%s224 + $0x178] sm:$0xf]
      %v1492 = vld [vmem:[%s224 + $0x17c] sm:$0xf]
      %v1509 = vunpack.c.l.b16 %v1477
      %v1510 = vunpack.c.l.b16 %v1478
      %v1511 = vunpack.c.l.b16 %v1479
      %v1512 = vunpack.c.l.b16 %v1480
      %v1513 = vunpack.c.l.b16 %v1481
      %v1514 = vunpack.c.l.b16 %v1482
      %v1515 = vunpack.c.l.b16 %v1483
      %v1516 = vunpack.c.l.b16 %v1484
      %v1517 = vunpack.c.l.b16 %v1485
      %v1518 = vunpack.c.l.b16 %v1486
      %v1519 = vunpack.c.l.b16 %v1487
      %v1520 = vunpack.c.l.b16 %v1488
      %v1521 = vunpack.c.l.b16 %v1489
      %v1522 = vunpack.c.l.b16 %v1490
      %v1523 = vunpack.c.l.b16 %v1491
      %v1524 = vunpack.c.l.b16 %v1492
      %v1525 = vpack.c.b16 %v1510, %v1509
      %v1526 = vpack.c.b16 %v1512, %v1511
      %v1527 = vpack.c.b16 %v1514, %v1513
      %v1528 = vpack.c.b16 %v1516, %v1515
      %v1529 = vpack.c.b16 %v1518, %v1517
      %v1530 = vpack.c.b16 %v1520, %v1519
      %v1531 = vpack.c.b16 %v1522, %v1521
      %v1532 = vpack.c.b16 %v1524, %v1523
      %1541 = vmatpush.bf16.msra.mxu0 %v1532
      %1542 = vmatpush.bf16.msra.mxu0 %v1531
      %1543 = vmatpush.bf16.msra.mxu0 %v1530
      %1544 = vmatpush.bf16.msra.mxu0 %v1529
      %1545 = vmatpush.bf16.msra.mxu0 %v1528
      %1546 = vmatpush.bf16.msra.mxu0 %v1527
      %1547 = vmatpush.bf16.msra.mxu0 %v1526
      %1548 = vmatpush.bf16.msra.mxu0 %v1525
      %1549 = vmatmul.bf16.gmra.mxu0 %v913
      %v1550 = vpop.f32.mrf.mxu0
      %v1551 = vadd.f32 0.0, %v1550
      %v1552 = vpop.f32.mrf.mxu0
      %v1553 = vadd.f32 0.0, %v1552
      %1554 = vmatmul.bf16.gmra.mxu0 %v914
      %v1555 = vpop.f32.mrf.mxu0
      %v1556 = vadd.f32 0.0, %v1555
      %v1557 = vpop.f32.mrf.mxu0
      %v1558 = vadd.f32 0.0, %v1557
      %1559 = vmatmul.bf16.gmra.mxu0 %v915
      %v1560 = vpop.f32.mrf.mxu0
      %v1561 = vadd.f32 0.0, %v1560
      %v1562 = vpop.f32.mrf.mxu0
      %v1563 = vadd.f32 0.0, %v1562
      %1564 = vmatmul.bf16.gmra.mxu0 %v916
      %v1565 = vpop.f32.mrf.mxu0
      %v1566 = vadd.f32 0.0, %v1565
      %v1567 = vpop.f32.mrf.mxu0
      %v1568 = vadd.f32 0.0, %v1567
      %1569 = vmatmul.bf16.gmra.mxu0 %v917
      %v1570 = vpop.f32.mrf.mxu0
      %v1571 = vadd.f32 0.0, %v1570
      %v1572 = vpop.f32.mrf.mxu0
      %v1573 = vadd.f32 0.0, %v1572
      %1574 = vmatmul.bf16.gmra.mxu0 %v918
      %v1575 = vpop.f32.mrf.mxu0
      %v1576 = vadd.f32 0.0, %v1575
      %v1577 = vpop.f32.mrf.mxu0
      %v1578 = vadd.f32 0.0, %v1577
      %1579 = vmatmul.bf16.gmra.mxu0 %v919
      %v1580 = vpop.f32.mrf.mxu0
      %v1581 = vadd.f32 0.0, %v1580
      %v1582 = vpop.f32.mrf.mxu0
      %v1583 = vadd.f32 0.0, %v1582
      %1584 = vmatmul.bf16.gmra.mxu0 %v920
      %v1585 = vpop.f32.mrf.mxu0
      %v1586 = vadd.f32 0.0, %v1585
      %v1587 = vpop.f32.mrf.mxu0
      %v1588 = vadd.f32 0.0, %v1587
      %1589 = vmatmul.bf16.gmra.mxu0 %v921
      %v1590 = vpop.f32.mrf.mxu0
      %v1591 = vadd.f32 0.0, %v1590
      %v1592 = vpop.f32.mrf.mxu0
      %v1593 = vadd.f32 0.0, %v1592
      %1594 = vmatmul.bf16.gmra.mxu0 %v922
      %v1595 = vpop.f32.mrf.mxu0
      %v1596 = vadd.f32 0.0, %v1595
      %v1597 = vpop.f32.mrf.mxu0
      %v1598 = vadd.f32 0.0, %v1597
      %1599 = vmatmul.bf16.gmra.mxu0 %v923
      %v1600 = vpop.f32.mrf.mxu0
      %v1601 = vadd.f32 0.0, %v1600
      %v1602 = vpop.f32.mrf.mxu0
      %v1603 = vadd.f32 0.0, %v1602
      %1604 = vmatmul.bf16.gmra.mxu0 %v924
      %v1605 = vpop.f32.mrf.mxu0
      %v1606 = vadd.f32 0.0, %v1605
      %v1607 = vpop.f32.mrf.mxu0
      %v1608 = vadd.f32 0.0, %v1607
      %1609 = vdwg.mxu0
      %v1626 = vunpack.c.l.b16 %v808
      %v1627 = vunpack.c.l.b16 %v809
      %v1628 = vunpack.c.l.b16 %v810
      %v1629 = vunpack.c.l.b16 %v811
      %v1630 = vunpack.c.l.b16 %v812
      %v1631 = vunpack.c.l.b16 %v813
      %v1632 = vunpack.c.l.b16 %v814
      %v1633 = vunpack.c.l.b16 %v815
      %v1634 = vunpack.c.l.b16 %v816
      %v1635 = vunpack.c.l.b16 %v817
      %v1636 = vunpack.c.l.b16 %v818
      %v1637 = vunpack.c.l.b16 %v819
      %v1638 = vunpack.c.l.b16 %v820
      %v1639 = vunpack.c.l.b16 %v821
      %v1640 = vunpack.c.l.b16 %v822
      %v1641 = vunpack.c.l.b16 %v823
      %v1642 = vpack.c.b16 %v1627, %v1626
      %v1643 = vpack.c.b16 %v1629, %v1628
      %v1644 = vpack.c.b16 %v1631, %v1630
      %v1645 = vpack.c.b16 %v1633, %v1632
      %v1646 = vpack.c.b16 %v1635, %v1634
      %v1647 = vpack.c.b16 %v1637, %v1636
      %v1648 = vpack.c.b16 %v1639, %v1638
      %v1649 = vpack.c.b16 %v1641, %v1640
      %1658 = vmatpush.bf16.msra.mxu0 %v1649
      %1659 = vmatpush.bf16.msra.mxu0 %v1648
      %1660 = vmatpush.bf16.msra.mxu0 %v1647
      %1661 = vmatpush.bf16.msra.mxu0 %v1646
      %1662 = vmatpush.bf16.msra.mxu0 %v1645
      %1663 = vmatpush.bf16.msra.mxu0 %v1644
      %1664 = vmatpush.bf16.msra.mxu0 %v1643
      %1665 = vmatpush.bf16.msra.mxu0 %v1642
      %1666 = vmatmul.bf16.gmra.mxu0 %v1094
      %v1667 = vpop.f32.mrf.mxu0
      %v1668 = vadd.f32 %v1551, %v1667
      %v1669 = vpop.f32.mrf.mxu0
      %v1670 = vadd.f32 %v1553, %v1669
      %1671 = vmatmul.bf16.gmra.mxu0 %v1095
      %v1672 = vpop.f32.mrf.mxu0
      %v1673 = vadd.f32 %v1556, %v1672
      %v1674 = vpop.f32.mrf.mxu0
      %v1675 = vadd.f32 %v1558, %v1674
      %1676 = vmatmul.bf16.gmra.mxu0 %v1096
      %v1677 = vpop.f32.mrf.mxu0
      %v1678 = vadd.f32 %v1561, %v1677
      %v1679 = vpop.f32.mrf.mxu0
      %v1680 = vadd.f32 %v1563, %v1679
      %1681 = vmatmul.bf16.gmra.mxu0 %v1097
      %v1682 = vpop.f32.mrf.mxu0
      %v1683 = vadd.f32 %v1566, %v1682
      %v1684 = vpop.f32.mrf.mxu0
      %v1685 = vadd.f32 %v1568, %v1684
      %1686 = vmatmul.bf16.gmra.mxu0 %v1098
      %v1687 = vpop.f32.mrf.mxu0
      %v1688 = vadd.f32 %v1571, %v1687
      %v1689 = vpop.f32.mrf.mxu0
      %v1690 = vadd.f32 %v1573, %v1689
      %1691 = vmatmul.bf16.gmra.mxu0 %v1099
      %v1692 = vpop.f32.mrf.mxu0
      %v1693 = vadd.f32 %v1576, %v1692
      %v1694 = vpop.f32.mrf.mxu0
      %v1695 = vadd.f32 %v1578, %v1694
      %1696 = vmatmul.bf16.gmra.mxu0 %v1100
      %v1697 = vpop.f32.mrf.mxu0
      %v1698 = vadd.f32 %v1581, %v1697
      %v1699 = vpop.f32.mrf.mxu0
      %v1700 = vadd.f32 %v1583, %v1699
      %1701 = vmatmul.bf16.gmra.mxu0 %v1101
      %v1702 = vpop.f32.mrf.mxu0
      %v1703 = vadd.f32 %v1586, %v1702
      %v1704 = vpop.f32.mrf.mxu0
      %v1705 = vadd.f32 %v1588, %v1704
      %1706 = vmatmul.bf16.gmra.mxu0 %v1102
      %v1707 = vpop.f32.mrf.mxu0
      %v1708 = vadd.f32 %v1591, %v1707
      %v1709 = vpop.f32.mrf.mxu0
      %v1710 = vadd.f32 %v1593, %v1709
      %1711 = vmatmul.bf16.gmra.mxu0 %v1103
      %v1712 = vpop.f32.mrf.mxu0
      %v1713 = vadd.f32 %v1596, %v1712
      %v1714 = vpop.f32.mrf.mxu0
      %v1715 = vadd.f32 %v1598, %v1714
      %1716 = vmatmul.bf16.gmra.mxu0 %v1104
      %v1717 = vpop.f32.mrf.mxu0
      %v1718 = vadd.f32 %v1601, %v1717
      %v1719 = vpop.f32.mrf.mxu0
      %v1720 = vadd.f32 %v1603, %v1719
      %1721 = vmatmul.bf16.gmra.mxu0 %v1105
      %v1722 = vpop.f32.mrf.mxu0
      %v1723 = vadd.f32 %v1606, %v1722
      %v1724 = vpop.f32.mrf.mxu0
      %v1725 = vadd.f32 %v1608, %v1724
      %1726 = vdwg.mxu0
      %s1727 = scalar_lea.vmem [#allocation2], 24
      %v1728 = vld [vmem:[%s1727] sm:$0xf]
      %v1729 = vld [vmem:[%s1727 + $0x4] sm:$0xf]
      %v1730 = vld [vmem:[%s1727 + $0x8] sm:$0xf]
      %v1731 = vld [vmem:[%s1727 + $0xc] sm:$0xf]
      %v1732 = vld [vmem:[%s1727 + $0x10] sm:$0xf]
      %v1733 = vld [vmem:[%s1727 + $0x14] sm:$0xf]
      %v1734 = vld [vmem:[%s1727 + $0x18] sm:$0xf]
      %v1735 = vld [vmem:[%s1727 + $0x1c] sm:$0xf]
      %v1736 = vld [vmem:[%s1727 + $0x20] sm:$0xf]
      %v1737 = vld [vmem:[%s1727 + $0x24] sm:$0xf]
      %v1738 = vld [vmem:[%s1727 + $0x28] sm:$0xf]
      %v1739 = vld [vmem:[%s1727 + $0x2c] sm:$0xf]
      %v1740 = vld [vmem:[%s1727 + $0x30] sm:$0xf]
      %v1741 = vld [vmem:[%s1727 + $0x34] sm:$0xf]
      %v1742 = vld [vmem:[%s1727 + $0x38] sm:$0xf]
      %v1743 = vld [vmem:[%s1727 + $0x3c] sm:$0xf]
      %v1744 = vld [vmem:[%s1727 + $0x40] sm:$0xf]
      %v1745 = vld [vmem:[%s1727 + $0x44] sm:$0xf]
      %v1746 = vld [vmem:[%s1727 + $0x48] sm:$0xf]
      %v1747 = vld [vmem:[%s1727 + $0x4c] sm:$0xf]
      %v1748 = vld [vmem:[%s1727 + $0x50] sm:$0xf]
      %v1749 = vld [vmem:[%s1727 + $0x54] sm:$0xf]
      %v1750 = vld [vmem:[%s1727 + $0x58] sm:$0xf]
      %v1751 = vld [vmem:[%s1727 + $0x5c] sm:$0xf]
      %v1752 = vld [vmem:[%s224 + $0x180] sm:$0xf]
      %v1753 = vld [vmem:[%s224 + $0x184] sm:$0xf]
      %v1754 = vld [vmem:[%s224 + $0x188] sm:$0xf]
      %v1755 = vld [vmem:[%s224 + $0x18c] sm:$0xf]
      %v1756 = vld [vmem:[%s224 + $0x190] sm:$0xf]
      %v1757 = vld [vmem:[%s224 + $0x194] sm:$0xf]
      %v1758 = vld [vmem:[%s224 + $0x198] sm:$0xf]
      %v1759 = vld [vmem:[%s224 + $0x19c] sm:$0xf]
      %v1760 = vld [vmem:[%s224 + $0x1a0] sm:$0xf]
      %v1761 = vld [vmem:[%s224 + $0x1a4] sm:$0xf]
      %v1762 = vld [vmem:[%s224 + $0x1a8] sm:$0xf]
      %v1763 = vld [vmem:[%s224 + $0x1ac] sm:$0xf]
      %v1764 = vld [vmem:[%s224 + $0x1b0] sm:$0xf]
      %v1765 = vld [vmem:[%s224 + $0x1b4] sm:$0xf]
      %v1766 = vld [vmem:[%s224 + $0x1b8] sm:$0xf]
      %v1767 = vld [vmem:[%s224 + $0x1bc] sm:$0xf]
      %v1792 = vunpack.c.l.b16 %v1728
      %v1793 = vunpack.c.l.b16 %v1729
      %v1794 = vunpack.c.l.b16 %v1730
      %v1795 = vunpack.c.l.b16 %v1731
      %v1796 = vunpack.c.l.b16 %v1732
      %v1797 = vunpack.c.l.b16 %v1733
      %v1798 = vunpack.c.l.b16 %v1734
      %v1799 = vunpack.c.l.b16 %v1735
      %v1800 = vunpack.c.l.b16 %v1736
      %v1801 = vunpack.c.l.b16 %v1737
      %v1802 = vunpack.c.l.b16 %v1738
      %v1803 = vunpack.c.l.b16 %v1739
      %v1804 = vunpack.c.l.b16 %v1740
      %v1805 = vunpack.c.l.b16 %v1741
      %v1806 = vunpack.c.l.b16 %v1742
      %v1807 = vunpack.c.l.b16 %v1743
      %v1808 = vunpack.c.l.b16 %v1744
      %v1809 = vunpack.c.l.b16 %v1745
      %v1810 = vunpack.c.l.b16 %v1746
      %v1811 = vunpack.c.l.b16 %v1747
      %v1812 = vunpack.c.l.b16 %v1748
      %v1813 = vunpack.c.l.b16 %v1749
      %v1814 = vunpack.c.l.b16 %v1750
      %v1815 = vunpack.c.l.b16 %v1751
      %v1816 = vpack.c.b16 %v1793, %v1792
      %v1817 = vpack.c.b16 %v1795, %v1794
      %v1818 = vpack.c.b16 %v1797, %v1796
      %v1819 = vpack.c.b16 %v1799, %v1798
      %v1820 = vpack.c.b16 %v1801, %v1800
      %v1821 = vpack.c.b16 %v1803, %v1802
      %v1822 = vpack.c.b16 %v1805, %v1804
      %v1823 = vpack.c.b16 %v1807, %v1806
      %v1824 = vpack.c.b16 %v1809, %v1808
      %v1825 = vpack.c.b16 %v1811, %v1810
      %v1826 = vpack.c.b16 %v1813, %v1812
      %v1827 = vpack.c.b16 %v1815, %v1814
      %v1856 = vunpack.c.l.b16 %v1752
      %v1857 = vunpack.c.l.b16 %v1753
      %v1858 = vunpack.c.l.b16 %v1754
      %v1859 = vunpack.c.l.b16 %v1755
      %v1860 = vunpack.c.l.b16 %v1756
      %v1861 = vunpack.c.l.b16 %v1757
      %v1862 = vunpack.c.l.b16 %v1758
      %v1863 = vunpack.c.l.b16 %v1759
      %v1864 = vunpack.c.l.b16 %v1760
      %v1865 = vunpack.c.l.b16 %v1761
      %v1866 = vunpack.c.l.b16 %v1762
      %v1867 = vunpack.c.l.b16 %v1763
      %v1868 = vunpack.c.l.b16 %v1764
      %v1869 = vunpack.c.l.b16 %v1765
      %v1870 = vunpack.c.l.b16 %v1766
      %v1871 = vunpack.c.l.b16 %v1767
      %v1872 = vpack.c.b16 %v1857, %v1856
      %v1873 = vpack.c.b16 %v1859, %v1858
      %v1874 = vpack.c.b16 %v1861, %v1860
      %v1875 = vpack.c.b16 %v1863, %v1862
      %v1876 = vpack.c.b16 %v1865, %v1864
      %v1877 = vpack.c.b16 %v1867, %v1866
      %v1878 = vpack.c.b16 %v1869, %v1868
      %v1879 = vpack.c.b16 %v1871, %v1870
      %1888 = vmatpush.bf16.msra.mxu0 %v1879
      %1889 = vmatpush.bf16.msra.mxu0 %v1878
      %1890 = vmatpush.bf16.msra.mxu0 %v1877
      %1891 = vmatpush.bf16.msra.mxu0 %v1876
      %1892 = vmatpush.bf16.msra.mxu0 %v1875
      %1893 = vmatpush.bf16.msra.mxu0 %v1874
      %1894 = vmatpush.bf16.msra.mxu0 %v1873
      %1895 = vmatpush.bf16.msra.mxu0 %v1872
      %1896 = vmatmul.bf16.gmra.mxu0 %v1816
      %v1897 = vpop.f32.mrf.mxu0
      %v1898 = vadd.f32 0.0, %v1897
      %v1899 = vpop.f32.mrf.mxu0
      %v1900 = vadd.f32 0.0, %v1899
      %1901 = vmatmul.bf16.gmra.mxu0 %v1817
      %v1902 = vpop.f32.mrf.mxu0
      %v1903 = vpop.f32.mrf.mxu0
      %v1904 = vadd.f32 0.0, %v1903
      %1905 = vmatmul.bf16.gmra.mxu0 %v1818
      %v1906 = vpop.f32.mrf.mxu0
      %v1907 = vadd.f32 0.0, %v1906
      %v1908 = vpop.f32.mrf.mxu0
      %1909 = vmatmul.bf16.gmra.mxu0 %v1819
      %v1910 = vpop.f32.mrf.mxu0
      %v1911 = vadd.f32 0.0, %v1910
      %v1912 = vpop.f32.mrf.mxu0
      %v1913 = vadd.f32 0.0, %v1912
      %1914 = vmatmul.bf16.gmra.mxu0 %v1820
      %v1915 = vpop.f32.mrf.mxu0
      %v1916 = vpop.f32.mrf.mxu0
      %v1917 = vadd.f32 0.0, %v1916
      %1918 = vmatmul.bf16.gmra.mxu0 %v1821
      %v1919 = vpop.f32.mrf.mxu0
      %v1920 = vadd.f32 0.0, %v1919
      %v1921 = vpop.f32.mrf.mxu0
      %1922 = vmatmul.bf16.gmra.mxu0 %v1822
      %v1923 = vpop.f32.mrf.mxu0
      %v1924 = vadd.f32 0.0, %v1923
      %v1925 = vpop.f32.mrf.mxu0
      %v1926 = vadd.f32 0.0, %v1925
      %1927 = vmatmul.bf16.gmra.mxu0 %v1823
      %v1928 = vpop.f32.mrf.mxu0
      %v1929 = vpop.f32.mrf.mxu0
      %v1930 = vadd.f32 0.0, %v1929
      %1931 = vmatmul.bf16.gmra.mxu0 %v1824
      %v1932 = vpop.f32.mrf.mxu0
      %v1933 = vadd.f32 0.0, %v1932
      %v1934 = vpop.f32.mrf.mxu0
      %1935 = vmatmul.bf16.gmra.mxu0 %v1825
      %v1936 = vpop.f32.mrf.mxu0
      %v1937 = vadd.f32 0.0, %v1936
      %v1938 = vpop.f32.mrf.mxu0
      %v1939 = vadd.f32 0.0, %v1938
      %1940 = vmatmul.bf16.gmra.mxu0 %v1826
      %v1941 = vpop.f32.mrf.mxu0
      %v1942 = vpop.f32.mrf.mxu0
      %v1943 = vadd.f32 0.0, %v1942
      %1944 = vmatmul.bf16.gmra.mxu0 %v1827
      %v1945 = vpop.f32.mrf.mxu0
      %v1946 = vadd.f32 0.0, %v1945
      %v1947 = vpop.f32.mrf.mxu0
      %1948 = vdwg.mxu0
      %v1949 = vadd.f32 %v1176, %v1898
      %v1950 = vadd.f32 %v1178, %v1900
      %v1951 = vadd.f32 %v1182, %v1904
      %v1952 = vadd.f32 %v1185, %v1907
      %v1953 = vadd.f32 %v1189, %v1911
      %v1954 = vadd.f32 %v1191, %v1913
      %v1955 = vadd.f32 %v1195, %v1917
      %v1956 = vadd.f32 %v1198, %v1920
      %v1957 = vadd.f32 %v1202, %v1924
      %v1958 = vadd.f32 %v1204, %v1926
      %v1959 = vadd.f32 %v1208, %v1930
      %v1960 = vadd.f32 %v1211, %v1933
      %v1961 = vadd.f32 %v1215, %v1937
      %v1962 = vadd.f32 %v1217, %v1939
      %v1963 = vadd.f32 %v1221, %v1943
      %v1964 = vadd.f32 %v1224, %v1946
      %v1965 = vld [vmem:[%s224 + $0x1c0] sm:$0xf]
      %v1966 = vld [vmem:[%s224 + $0x1c4] sm:$0xf]
      %v1967 = vld [vmem:[%s224 + $0x1c8] sm:$0xf]
      %v1968 = vld [vmem:[%s224 + $0x1cc] sm:$0xf]
      %v1969 = vld [vmem:[%s224 + $0x1d0] sm:$0xf]
      %v1970 = vld [vmem:[%s224 + $0x1d4] sm:$0xf]
      %v1971 = vld [vmem:[%s224 + $0x1d8] sm:$0xf]
      %v1972 = vld [vmem:[%s224 + $0x1dc] sm:$0xf]
      %v1973 = vld [vmem:[%s224 + $0x1e0] sm:$0xf]
      %v1974 = vld [vmem:[%s224 + $0x1e4] sm:$0xf]
      %v1975 = vld [vmem:[%s224 + $0x1e8] sm:$0xf]
      %v1976 = vld [vmem:[%s224 + $0x1ec] sm:$0xf]
      %v1977 = vld [vmem:[%s224 + $0x1f0] sm:$0xf]
      %v1978 = vld [vmem:[%s224 + $0x1f4] sm:$0xf]
      %v1979 = vld [vmem:[%s224 + $0x1f8] sm:$0xf]
      %v1980 = vld [vmem:[%s224 + $0x1fc] sm:$0xf]
      %v1997 = vunpack.c.l.b16 %v1965
      %v1998 = vunpack.c.l.b16 %v1966
      %v1999 = vunpack.c.l.b16 %v1967
      %v2000 = vunpack.c.l.b16 %v1968
      %v2001 = vunpack.c.l.b16 %v1969
      %v2002 = vunpack.c.l.b16 %v1970
      %v2003 = vunpack.c.l.b16 %v1971
      %v2004 = vunpack.c.l.b16 %v1972
      %v2005 = vunpack.c.l.b16 %v1973
      %v2006 = vunpack.c.l.b16 %v1974
      %v2007 = vunpack.c.l.b16 %v1975
      %v2008 = vunpack.c.l.b16 %v1976
      %v2009 = vunpack.c.l.b16 %v1977
      %v2010 = vunpack.c.l.b16 %v1978
      %v2011 = vunpack.c.l.b16 %v1979
      %v2012 = vunpack.c.l.b16 %v1980
      %v2013 = vpack.c.b16 %v1998, %v1997
      %v2014 = vpack.c.b16 %v2000, %v1999
      %v2015 = vpack.c.b16 %v2002, %v2001
      %v2016 = vpack.c.b16 %v2004, %v2003
      %v2017 = vpack.c.b16 %v2006, %v2005
      %v2018 = vpack.c.b16 %v2008, %v2007
      %v2019 = vpack.c.b16 %v2010, %v2009
      %v2020 = vpack.c.b16 %v2012, %v2011
      %2029 = vmatpush.bf16.msra.mxu0 %v2020
      %2030 = vmatpush.bf16.msra.mxu0 %v2019
      %2031 = vmatpush.bf16.msra.mxu0 %v2018
      %2032 = vmatpush.bf16.msra.mxu0 %v2017
      %2033 = vmatpush.bf16.msra.mxu0 %v2016
      %2034 = vmatpush.bf16.msra.mxu0 %v2015
      %2035 = vmatpush.bf16.msra.mxu0 %v2014
      %2036 = vmatpush.bf16.msra.mxu0 %v2013
      %2037 = vmatmul.bf16.gmra.mxu0 %v1816
      %v2038 = vpop.f32.mrf.mxu0
      %v2039 = vadd.f32 0.0, %v2038
      %v2040 = vpop.f32.mrf.mxu0
      %v2041 = vadd.f32 0.0, %v2040
      %2042 = vmatmul.bf16.gmra.mxu0 %v1817
      %v2043 = vpop.f32.mrf.mxu0
      %v2044 = vadd.f32 0.0, %v2043
      %v2045 = vpop.f32.mrf.mxu0
      %v2046 = vadd.f32 0.0, %v2045
      %2047 = vmatmul.bf16.gmra.mxu0 %v1818
      %v2048 = vpop.f32.mrf.mxu0
      %v2049 = vadd.f32 0.0, %v2048
      %v2050 = vpop.f32.mrf.mxu0
      %v2051 = vadd.f32 0.0, %v2050
      %2052 = vmatmul.bf16.gmra.mxu0 %v1819
      %v2053 = vpop.f32.mrf.mxu0
      %v2054 = vadd.f32 0.0, %v2053
      %v2055 = vpop.f32.mrf.mxu0
      %v2056 = vadd.f32 0.0, %v2055
      %2057 = vmatmul.bf16.gmra.mxu0 %v1820
      %v2058 = vpop.f32.mrf.mxu0
      %v2059 = vadd.f32 0.0, %v2058
      %v2060 = vpop.f32.mrf.mxu0
      %v2061 = vadd.f32 0.0, %v2060
      %2062 = vmatmul.bf16.gmra.mxu0 %v1821
      %v2063 = vpop.f32.mrf.mxu0
      %v2064 = vadd.f32 0.0, %v2063
      %v2065 = vpop.f32.mrf.mxu0
      %v2066 = vadd.f32 0.0, %v2065
      %2067 = vmatmul.bf16.gmra.mxu0 %v1822
      %v2068 = vpop.f32.mrf.mxu0
      %v2069 = vadd.f32 0.0, %v2068
      %v2070 = vpop.f32.mrf.mxu0
      %v2071 = vadd.f32 0.0, %v2070
      %2072 = vmatmul.bf16.gmra.mxu0 %v1823
      %v2073 = vpop.f32.mrf.mxu0
      %v2074 = vadd.f32 0.0, %v2073
      %v2075 = vpop.f32.mrf.mxu0
      %v2076 = vadd.f32 0.0, %v2075
      %2077 = vmatmul.bf16.gmra.mxu0 %v1824
      %v2078 = vpop.f32.mrf.mxu0
      %v2079 = vadd.f32 0.0, %v2078
      %v2080 = vpop.f32.mrf.mxu0
      %v2081 = vadd.f32 0.0, %v2080
      %2082 = vmatmul.bf16.gmra.mxu0 %v1825
      %v2083 = vpop.f32.mrf.mxu0
      %v2084 = vadd.f32 0.0, %v2083
      %v2085 = vpop.f32.mrf.mxu0
      %v2086 = vadd.f32 0.0, %v2085
      %2087 = vmatmul.bf16.gmra.mxu0 %v1826
      %v2088 = vpop.f32.mrf.mxu0
      %v2089 = vadd.f32 0.0, %v2088
      %v2090 = vpop.f32.mrf.mxu0
      %v2091 = vadd.f32 0.0, %v2090
      %2092 = vmatmul.bf16.gmra.mxu0 %v1827
      %v2093 = vpop.f32.mrf.mxu0
      %v2094 = vadd.f32 0.0, %v2093
      %v2095 = vpop.f32.mrf.mxu0
      %v2096 = vadd.f32 0.0, %v2095
      %2097 = vdwg.mxu0
      %v2098 = vadd.f32 %v1418, %v2039
      %v2099 = vadd.f32 %v1420, %v2041
      %v2100 = vadd.f32 %v1423, %v2044
      %v2101 = vadd.f32 %v1425, %v2046
      %v2102 = vadd.f32 %v1428, %v2049
      %v2103 = vadd.f32 %v1430, %v2051
      %v2104 = vadd.f32 %v1433, %v2054
      %v2105 = vadd.f32 %v1435, %v2056
      %v2106 = vadd.f32 %v1438, %v2059
      %v2107 = vadd.f32 %v1440, %v2061
      %v2108 = vadd.f32 %v1443, %v2064
      %v2109 = vadd.f32 %v1445, %v2066
      %v2110 = vadd.f32 %v1448, %v2069
      %v2111 = vadd.f32 %v1450, %v2071
      %v2112 = vadd.f32 %v1453, %v2074
      %v2113 = vadd.f32 %v1455, %v2076
      %v2114 = vadd.f32 %v1458, %v2079
      %v2115 = vadd.f32 %v1460, %v2081
      %v2116 = vadd.f32 %v1463, %v2084
      %v2117 = vadd.f32 %v1465, %v2086
      %v2118 = vadd.f32 %v1468, %v2089
      %v2119 = vadd.f32 %v1470, %v2091
      %v2120 = vadd.f32 %v1473, %v2094
      %v2121 = vadd.f32 %v1475, %v2096
      %v2122 = vld [vmem:[%s224 + $0x200] sm:$0xf]
      %v2123 = vld [vmem:[%s224 + $0x204] sm:$0xf]
      %v2124 = vld [vmem:[%s224 + $0x208] sm:$0xf]
      %v2125 = vld [vmem:[%s224 + $0x20c] sm:$0xf]
      %v2126 = vld [vmem:[%s224 + $0x210] sm:$0xf]
      %v2127 = vld [vmem:[%s224 + $0x214] sm:$0xf]
      %v2128 = vld [vmem:[%s224 + $0x218] sm:$0xf]
      %v2129 = vld [vmem:[%s224 + $0x21c] sm:$0xf]
      %v2130 = vld [vmem:[%s224 + $0x220] sm:$0xf]
      %v2131 = vld [vmem:[%s224 + $0x224] sm:$0xf]
      %v2132 = vld [vmem:[%s224 + $0x228] sm:$0xf]
      %v2133 = vld [vmem:[%s224 + $0x22c] sm:$0xf]
      %v2134 = vld [vmem:[%s224 + $0x230] sm:$0xf]
      %v2135 = vld [vmem:[%s224 + $0x234] sm:$0xf]
      %v2136 = vld [vmem:[%s224 + $0x238] sm:$0xf]
      %v2137 = vld [vmem:[%s224 + $0x23c] sm:$0xf]
      %v2154 = vunpack.c.l.b16 %v2122
      %v2155 = vunpack.c.l.b16 %v2123
      %v2156 = vunpack.c.l.b16 %v2124
      %v2157 = vunpack.c.l.b16 %v2125
      %v2158 = vunpack.c.l.b16 %v2126
      %v2159 = vunpack.c.l.b16 %v2127
      %v2160 = vunpack.c.l.b16 %v2128
      %v2161 = vunpack.c.l.b16 %v2129
      %v2162 = vunpack.c.l.b16 %v2130
      %v2163 = vunpack.c.l.b16 %v2131
      %v2164 = vunpack.c.l.b16 %v2132
      %v2165 = vunpack.c.l.b16 %v2133
      %v2166 = vunpack.c.l.b16 %v2134
      %v2167 = vunpack.c.l.b16 %v2135
      %v2168 = vunpack.c.l.b16 %v2136
      %v2169 = vunpack.c.l.b16 %v2137
      %v2170 = vpack.c.b16 %v2155, %v2154
      %v2171 = vpack.c.b16 %v2157, %v2156
      %v2172 = vpack.c.b16 %v2159, %v2158
      %v2173 = vpack.c.b16 %v2161, %v2160
      %v2174 = vpack.c.b16 %v2163, %v2162
      %v2175 = vpack.c.b16 %v2165, %v2164
      %v2176 = vpack.c.b16 %v2167, %v2166
      %v2177 = vpack.c.b16 %v2169, %v2168
      %2186 = vmatpush.bf16.msra.mxu0 %v2177
      %2187 = vmatpush.bf16.msra.mxu0 %v2176
      %2188 = vmatpush.bf16.msra.mxu0 %v2175
      %2189 = vmatpush.bf16.msra.mxu0 %v2174
      %2190 = vmatpush.bf16.msra.mxu0 %v2173
      %2191 = vmatpush.bf16.msra.mxu0 %v2172
      %2192 = vmatpush.bf16.msra.mxu0 %v2171
      %2193 = vmatpush.bf16.msra.mxu0 %v2170
      %2194 = vmatmul.bf16.gmra.mxu0 %v1816
      %v2195 = vpop.f32.mrf.mxu0
      %v2196 = vadd.f32 0.0, %v2195
      %v2197 = vpop.f32.mrf.mxu0
      %v2198 = vadd.f32 0.0, %v2197
      %2199 = vmatmul.bf16.gmra.mxu0 %v1817
      %v2200 = vpop.f32.mrf.mxu0
      %v2201 = vadd.f32 0.0, %v2200
      %v2202 = vpop.f32.mrf.mxu0
      %v2203 = vadd.f32 0.0, %v2202
      %2204 = vmatmul.bf16.gmra.mxu0 %v1818
      %v2205 = vpop.f32.mrf.mxu0
      %v2206 = vadd.f32 0.0, %v2205
      %v2207 = vpop.f32.mrf.mxu0
      %v2208 = vadd.f32 0.0, %v2207
      %2209 = vmatmul.bf16.gmra.mxu0 %v1819
      %v2210 = vpop.f32.mrf.mxu0
      %v2211 = vadd.f32 0.0, %v2210
      %v2212 = vpop.f32.mrf.mxu0
      %v2213 = vadd.f32 0.0, %v2212
      %2214 = vmatmul.bf16.gmra.mxu0 %v1820
      %v2215 = vpop.f32.mrf.mxu0
      %v2216 = vadd.f32 0.0, %v2215
      %v2217 = vpop.f32.mrf.mxu0
      %v2218 = vadd.f32 0.0, %v2217
      %2219 = vmatmul.bf16.gmra.mxu0 %v1821
      %v2220 = vpop.f32.mrf.mxu0
      %v2221 = vadd.f32 0.0, %v2220
      %v2222 = vpop.f32.mrf.mxu0
      %v2223 = vadd.f32 0.0, %v2222
      %2224 = vmatmul.bf16.gmra.mxu0 %v1822
      %v2225 = vpop.f32.mrf.mxu0
      %v2226 = vadd.f32 0.0, %v2225
      %v2227 = vpop.f32.mrf.mxu0
      %v2228 = vadd.f32 0.0, %v2227
      %2229 = vmatmul.bf16.gmra.mxu0 %v1823
      %v2230 = vpop.f32.mrf.mxu0
      %v2231 = vadd.f32 0.0, %v2230
      %v2232 = vpop.f32.mrf.mxu0
      %v2233 = vadd.f32 0.0, %v2232
      %2234 = vmatmul.bf16.gmra.mxu0 %v1824
      %v2235 = vpop.f32.mrf.mxu0
      %v2236 = vadd.f32 0.0, %v2235
      %v2237 = vpop.f32.mrf.mxu0
      %v2238 = vadd.f32 0.0, %v2237
      %2239 = vmatmul.bf16.gmra.mxu0 %v1825
      %v2240 = vpop.f32.mrf.mxu0
      %v2241 = vadd.f32 0.0, %v2240
      %v2242 = vpop.f32.mrf.mxu0
      %v2243 = vadd.f32 0.0, %v2242
      %2244 = vmatmul.bf16.gmra.mxu0 %v1826
      %v2245 = vpop.f32.mrf.mxu0
      %v2246 = vadd.f32 0.0, %v2245
      %v2247 = vpop.f32.mrf.mxu0
      %v2248 = vadd.f32 0.0, %v2247
      %2249 = vmatmul.bf16.gmra.mxu0 %v1827
      %v2250 = vpop.f32.mrf.mxu0
      %v2251 = vadd.f32 0.0, %v2250
      %v2252 = vpop.f32.mrf.mxu0
      %v2253 = vadd.f32 0.0, %v2252
      %2254 = vdwg.mxu0
      %v2255 = vadd.f32 %v1668, %v2196
      %v2256 = vadd.f32 %v1670, %v2198
      %v2257 = vadd.f32 %v1673, %v2201
      %v2258 = vadd.f32 %v1675, %v2203
      %v2259 = vadd.f32 %v1678, %v2206
      %v2260 = vadd.f32 %v1680, %v2208
      %v2261 = vadd.f32 %v1683, %v2211
      %v2262 = vadd.f32 %v1685, %v2213
      %v2263 = vadd.f32 %v1688, %v2216
      %v2264 = vadd.f32 %v1690, %v2218
      %v2265 = vadd.f32 %v1693, %v2221
      %v2266 = vadd.f32 %v1695, %v2223
      %v2267 = vadd.f32 %v1698, %v2226
      %v2268 = vadd.f32 %v1700, %v2228
      %v2269 = vadd.f32 %v1703, %v2231
      %v2270 = vadd.f32 %v1705, %v2233
      %v2271 = vadd.f32 %v1708, %v2236
      %v2272 = vadd.f32 %v1710, %v2238
      %v2273 = vadd.f32 %v1713, %v2241
      %v2274 = vadd.f32 %v1715, %v2243
      %v2275 = vadd.f32 %v1718, %v2246
      %v2276 = vadd.f32 %v1720, %v2248
      %v2277 = vadd.f32 %v1723, %v2251
      %v2278 = vadd.f32 %v1725, %v2253
      %vm2303 = vcmask 1046528
      %v2304 = vrot.slane %v2098, 1
      %v2305 = vrot.slane %v2099, 1
      %v2306 = vsel %vm2303, %v2304, %v2305
      %v2307 = vrot.slane %v2100, 1
      %v2308 = vsel %vm2303, %v2305, %v2307
      %v2309 = vrot.slane %v2101, 1
      %v2310 = vrot.slane %v2102, 1
      %v2311 = vsel %vm2303, %v2309, %v2310
      %v2312 = vrot.slane %v2103, 1
      %v2313 = vsel %vm2303, %v2310, %v2312
      %v2314 = vrot.slane %v2104, 1
      %v2315 = vrot.slane %v2105, 1
      %v2316 = vsel %vm2303, %v2314, %v2315
      %v2317 = vrot.slane %v2106, 1
      %v2318 = vsel %vm2303, %v2315, %v2317
      %v2319 = vrot.slane %v2107, 1
      %v2320 = vrot.slane %v2108, 1
      %v2321 = vsel %vm2303, %v2319, %v2320
      %v2322 = vrot.slane %v2109, 1
      %v2323 = vsel %vm2303, %v2320, %v2322
      %v2324 = vrot.slane %v2110, 1
      %v2325 = vrot.slane %v2111, 1
      %v2326 = vsel %vm2303, %v2324, %v2325
      %v2327 = vrot.slane %v2112, 1
      %v2328 = vsel %vm2303, %v2325, %v2327
      %v2329 = vrot.slane %v2113, 1
      %v2330 = vrot.slane %v2114, 1
      %v2331 = vsel %vm2303, %v2329, %v2330
      %v2332 = vrot.slane %v2115, 1
      %v2333 = vsel %vm2303, %v2330, %v2332
      %v2334 = vrot.slane %v2116, 1
      %v2335 = vrot.slane %v2117, 1
      %v2336 = vsel %vm2303, %v2334, %v2335
      %v2337 = vrot.slane %v2118, 1
      %v2338 = vsel %vm2303, %v2335, %v2337
      %v2339 = vrot.slane %v2119, 1
      %v2340 = vrot.slane %v2120, 1
      %v2341 = vsel %vm2303, %v2339, %v2340
      %v2342 = vrot.slane %v2121, 1
      %v2343 = vsel %vm2303, %v2340, %v2342
      %v2360 = vadd.f32 %v1949, %v2306
      %v2361 = vadd.f32 %v1950, %v2308
      %v2362 = vadd.f32 %v1951, %v2311
      %v2363 = vadd.f32 %v1952, %v2313
      %v2364 = vadd.f32 %v1953, %v2316
      %v2365 = vadd.f32 %v1954, %v2318
      %v2366 = vadd.f32 %v1955, %v2321
      %v2367 = vadd.f32 %v1956, %v2323
      %v2368 = vadd.f32 %v1957, %v2326
      %v2369 = vadd.f32 %v1958, %v2328
      %v2370 = vadd.f32 %v1959, %v2331
      %v2371 = vadd.f32 %v1960, %v2333
      %v2372 = vadd.f32 %v1961, %v2336
      %v2373 = vadd.f32 %v1962, %v2338
      %v2374 = vadd.f32 %v1963, %v2341
      %v2375 = vadd.f32 %v1964, %v2343
      %vm2400 = vcmask 1045504
      %v2401 = vrot.slane %v2255, 2
      %v2402 = vrot.slane %v2256, 2
      %v2403 = vsel %vm2400, %v2401, %v2402
      %v2404 = vrot.slane %v2257, 2
      %v2405 = vsel %vm2400, %v2402, %v2404
      %v2406 = vrot.slane %v2258, 2
      %v2407 = vrot.slane %v2259, 2
      %v2408 = vsel %vm2400, %v2406, %v2407
      %v2409 = vrot.slane %v2260, 2
      %v2410 = vsel %vm2400, %v2407, %v2409
      %v2411 = vrot.slane %v2261, 2
      %v2412 = vrot.slane %v2262, 2
      %v2413 = vsel %vm2400, %v2411, %v2412
      %v2414 = vrot.slane %v2263, 2
      %v2415 = vsel %vm2400, %v2412, %v2414
      %v2416 = vrot.slane %v2264, 2
      %v2417 = vrot.slane %v2265, 2
      %v2418 = vsel %vm2400, %v2416, %v2417
      %v2419 = vrot.slane %v2266, 2
      %v2420 = vsel %vm2400, %v2417, %v2419
      %v2421 = vrot.slane %v2267, 2
      %v2422 = vrot.slane %v2268, 2
      %v2423 = vsel %vm2400, %v2421, %v2422
      %v2424 = vrot.slane %v2269, 2
      %v2425 = vsel %vm2400, %v2422, %v2424
      %v2426 = vrot.slane %v2270, 2
      %v2427 = vrot.slane %v2271, 2
      %v2428 = vsel %vm2400, %v2426, %v2427
      %v2429 = vrot.slane %v2272, 2
      %v2430 = vsel %vm2400, %v2427, %v2429
      %v2431 = vrot.slane %v2273, 2
      %v2432 = vrot.slane %v2274, 2
      %v2433 = vsel %vm2400, %v2431, %v2432
      %v2434 = vrot.slane %v2275, 2
      %v2435 = vsel %vm2400, %v2432, %v2434
      %v2436 = vrot.slane %v2276, 2
      %v2437 = vrot.slane %v2277, 2
      %v2438 = vsel %vm2400, %v2436, %v2437
      %v2439 = vrot.slane %v2278, 2
      %v2440 = vsel %vm2400, %v2437, %v2439
      %v2457 = vadd.f32 %v2360, %v2403
      %v2458 = vadd.f32 %v2361, %v2405
      %v2459 = vadd.f32 %v2362, %v2408
      %v2460 = vadd.f32 %v2363, %v2410
      %v2461 = vadd.f32 %v2364, %v2413
      %v2462 = vadd.f32 %v2365, %v2415
      %v2463 = vadd.f32 %v2366, %v2418
      %v2464 = vadd.f32 %v2367, %v2420
      %v2465 = vadd.f32 %v2368, %v2423
      %v2466 = vadd.f32 %v2369, %v2425
      %v2467 = vadd.f32 %v2370, %v2428
      %v2468 = vadd.f32 %v2371, %v2430
      %v2469 = vadd.f32 %v2372, %v2433
      %v2470 = vadd.f32 %v2373, %v2435
      %v2471 = vadd.f32 %v2374, %v2438
      %v2472 = vadd.f32 %v2375, %v2440
      %v2473 = vld [vmem:[%s227] sm:$0x1]
      %v2475 = vperm.slane %v2473, 0
      %v2477 = vadd.f32 %v2457, %v2475
      %v2478 = vadd.f32 %v2458, %v2475
      %v2479 = vadd.f32 %v2459, %v2475
      %v2480 = vadd.f32 %v2460, %v2475
      %v2481 = vadd.f32 %v2461, %v2475
      %v2482 = vadd.f32 %v2462, %v2475
      %v2483 = vadd.f32 %v2463, %v2475
      %v2484 = vadd.f32 %v2464, %v2475
      %v2485 = vadd.f32 %v2465, %v2475
      %v2486 = vadd.f32 %v2466, %v2475
      %v2487 = vadd.f32 %v2467, %v2475
      %v2488 = vadd.f32 %v2468, %v2475
      %v2489 = vadd.f32 %v2469, %v2475
      %v2490 = vadd.f32 %v2470, %v2475
      %v2491 = vadd.f32 %v2471, %v2475
      %v2492 = vadd.f32 %v2472, %v2475
      %v2493 = vmax.f32 %v2477, 0.0
      %v2494 = vmax.f32 %v2478, 0.0
      %v2495 = vmax.f32 %v2479, 0.0
      %v2496 = vmax.f32 %v2480, 0.0
      %v2497 = vmax.f32 %v2481, 0.0
      %v2498 = vmax.f32 %v2482, 0.0
      %v2499 = vmax.f32 %v2483, 0.0
      %v2500 = vmax.f32 %v2484, 0.0
      %v2501 = vmax.f32 %v2485, 0.0
      %v2502 = vmax.f32 %v2486, 0.0
      %v2503 = vmax.f32 %v2487, 0.0
      %v2504 = vmax.f32 %v2488, 0.0
      %v2505 = vmax.f32 %v2489, 0.0
      %v2506 = vmax.f32 %v2490, 0.0
      %v2507 = vmax.f32 %v2491, 0.0
      %v2508 = vmax.f32 %v2492, 0.0
      %v2509 = vpack.c.bf16 %v2493, %v2493
      %v2510 = vpack.c.bf16 %v2494, %v2494
      %v2511 = vpack.c.bf16 %v2495, %v2495
      %v2512 = vpack.c.bf16 %v2496, %v2496
      %v2513 = vpack.c.bf16 %v2497, %v2497
      %v2514 = vpack.c.bf16 %v2498, %v2498
      %v2515 = vpack.c.bf16 %v2499, %v2499
      %v2516 = vpack.c.bf16 %v2500, %v2500
      %v2517 = vpack.c.bf16 %v2501, %v2501
      %v2518 = vpack.c.bf16 %v2502, %v2502
      %v2519 = vpack.c.bf16 %v2503, %v2503
      %v2520 = vpack.c.bf16 %v2504, %v2504
      %v2521 = vpack.c.bf16 %v2505, %v2505
      %v2522 = vpack.c.bf16 %v2506, %v2506
      %v2523 = vpack.c.bf16 %v2507, %v2507
      %v2524 = vpack.c.bf16 %v2508, %v2508
      %2525 = vst [vmem:[%s240] sm:$0xf] %v2509
      %2526 = vst [vmem:[%s240 + $0x4] sm:$0xf] %v2510
      %2527 = vst [vmem:[%s240 + $0x8] sm:$0xf] %v2511
      %2528 = vst [vmem:[%s240 + $0xc] sm:$0xf] %v2512
      %2529 = vst [vmem:[%s240 + $0x10] sm:$0xf] %v2513
      %2530 = vst [vmem:[%s240 + $0x14] sm:$0xf] %v2514
      %2531 = vst [vmem:[%s240 + $0x18] sm:$0xf] %v2515
      %2532 = vst [vmem:[%s240 + $0x1c] sm:$0xf] %v2516
      %2533 = vst [vmem:[%s240 + $0x20] sm:$0xf] %v2517
      %2534 = vst [vmem:[%s240 + $0x24] sm:$0xf] %v2518
      %2535 = vst [vmem:[%s240 + $0x28] sm:$0xf] %v2519
      %2536 = vst [vmem:[%s240 + $0x2c] sm:$0xf] %v2520
      %2537 = vst [vmem:[%s240 + $0x30] sm:$0xf] %v2521
      %2538 = vst [vmem:[%s240 + $0x34] sm:$0xf] %v2522
      %2539 = vst [vmem:[%s240 + $0x38] sm:$0xf] %v2523
      %2540 = vst [vmem:[%s240 + $0x3c] sm:$0xf] %v2524
      %s2541 = smul.u32 8, %s21
      %p2542 = scmp.lt.s32.totalorder %s19, 1
      %s2543 = scalar_select %p2542, %s19, 1
      %p2544 = scmp.lt.s32.totalorder %s2541, 15
      %s2545 = scalar_select %p2544, %s2541, 15
      %p2546 = scmp.lt.s32.totalorder %s20, 0
      %s2547 = scalar_select %p2546, %s20, 0
      %s2548 = smul.addr %s2545, 2
      %s2549 = sadd.s32 %s2547, %s2548
      %s2550 = smul.addr %s2543, 32
      %s2551 = sadd.s32 %s2549, %s2550
      %s2552 = smul.addr %s2551, 4
      %s2553 = scalar_lea.vmem %s3, %s2552
      // Predicated region
      $region73: #{bottleneck_forward.4} parent=31 // pred_check
        %p2554 = pneg %p133
      $region74: #{bottleneck_forward.4} parent=31 // pred_check_branch
        %2556 = sbr.rel (%p2554) target = $region76
      $region75: #{bottleneck_forward.4} parent=31 // pred_region
        %s2557 = smul.u32 8, %s21
      $region76: #{bottleneck_forward.4} parent=31 // pred_fallthru
        _
    $region32: #{bottleneck_forward.4} parent=5 // pred_fallthru
      _
    %p2558 = scmp.le.s32.totalorder 2, %s9
    // Predicated region
    $region77: #{bottleneck_forward.4} parent=5 // pred_check
      %p2559 = pneg %p2558
    $region78: #{bottleneck_forward.4} parent=5 // pred_check_branch
      %2561 = sbr.rel (%p2559) target = $region80
    $region79: #{bottleneck_forward.4} parent=5 // pred_region
      %s2562 = ssub.s32 %s9, 2
      // Predicated region
      $region81: #{bottleneck_forward.4} parent=79 // pred_check
        %p2563 = pneg %p139
      $region82: #{bottleneck_forward.4} parent=79 // pred_check_branch
        %2565 = sbr.rel (%p2563) target = $region84
      $region83: #{bottleneck_forward.4} parent=79 // pred_region
        %s2566 = smul.u32 8, %s24
        %p2567 = scmp.lt.s32.totalorder %s22, 1
        %s2568 = scalar_select %p2567, %s22, 1
        %p2569 = scmp.lt.s32.totalorder %s2566, 15
        %s2570 = scalar_select %p2569, %s2566, 15
        %p2571 = scmp.lt.s32.totalorder %s23, 0
        %s2572 = scalar_select %p2571, %s23, 0
        %s2573 = smul.addr %s2570, 2
        %s2574 = sadd.s32 %s2572, %s2573
        %s2575 = smul.addr %s2568, 32
        %s2576 = sadd.s32 %s2574, %s2575
        %s2577 = smul.addr %s2576, 4
        %s2578 = scalar_lea.vmem %s3, %s2577
      $region84: #{bottleneck_forward.4} parent=79 // pred_fallthru
        _
    $region80: #{bottleneck_forward.4} parent=5 // pred_fallthru
      _
  $region6: #{bottleneck_forward.4} parent=0 // loop_footer
    %s13 = sadd.s32 1, %s9
  $region7: #{bottleneck_forward.4} parent=0 // loop_footer_branch
    %8 = sbr.rel target = $region3
  $region8: #{bottleneck_forward.4} parent=0 // loop_exit
    _

</llo_original>
